<compile_context>
chip_gen: v7x
topology: tpu7x:2x2x1
jax: 0.10.0
libtpu: 0.0.40
codegen_flags: <defaults>
</compile_context>

<pallas_src>
import functools

import jax
import jax.numpy as jnp
from jax import lax
from jax.experimental import pallas as pl
from jax.experimental.pallas import tpu as pltpu

_NEG_INF = -1e30            # finite mask value (safe for online softmax)


# ----------------------------------------------------------------------------
# small helpers
# ----------------------------------------------------------------------------
def _layernorm(h, w, b, eps):
    mu = jnp.mean(h, axis=-1, keepdims=True)
    var = jnp.mean(jnp.square(h - mu), axis=-1, keepdims=True)
    return (h - mu) * lax.rsqrt(var + eps) * w + b


def _gelu_tanh(x):
    c = jnp.float32(0.7978845608028654)  # sqrt(2/pi)
    return 0.5 * x * (1.0 + jnp.tanh(c * (x + 0.044715 * x * x * x)))


_VMEM_LIMIT = None


def _vmem_limit_bytes():
    """Generation-aware scoped-VMEM limit (v7x: 64 MiB/TC, v5e/v6e: 128 MiB)."""
    global _VMEM_LIMIT
    if _VMEM_LIMIT is None:
        try:
            cap = pltpu.get_tpu_info().vmem_capacity_bytes
        except Exception:
            cap = 128 * 1024 * 1024
        _VMEM_LIMIT = max(32 * 1024 * 1024,
                          min(cap - 16 * 1024 * 1024, 96 * 1024 * 1024))
    return _VMEM_LIMIT


_SINGLE_BUFFER_OK = None


def _probe_single_buffer():
    """Check once (eagerly, before any jit trace) whether pipeline_mode=
    pl.Buffered(1) is supported; fall back gracefully otherwise."""
    global _SINGLE_BUFFER_OK
    if _SINGLE_BUFFER_OK is not None:
        return _SINGLE_BUFFER_OK
    try:
        spec = pl.BlockSpec((8, 128), lambda i: (0, 0), pipeline_mode=pl.Buffered(1))

        def k(x_ref, o_ref):
            o_ref[...] = x_ref[...] + 1.0

        y = pl.pallas_call(
            k,
            out_shape=jax.ShapeDtypeStruct((8, 128), jnp.float32),
            grid=(1,),
            in_specs=[spec],
            out_specs=pl.BlockSpec((8, 128), lambda i: (0, 0)),
        )(jnp.zeros((8, 128), jnp.float32))
        jax.block_until_ready(y)
        _SINGLE_BUFFER_OK = True
    except Exception:
        _SINGLE_BUFFER_OK = False
    return _SINGLE_BUFFER_OK


def _resident_spec(shape):
    """Full-array BlockSpec with a constant index map (stays resident across the
    grid); single-buffered when supported so its VMEM footprint is not doubled."""
    ndim = len(shape)
    idx = lambda *_: (0,) * ndim
    if _probe_single_buffer():
        return pl.BlockSpec(shape, idx, pipeline_mode=pl.Buffered(1))
    return pl.BlockSpec(shape, idx)


def _pick_tile(n, target, mult):
    """Largest divisor of n that is a multiple of `mult` and <= target, else n."""
    best, c, lim = None, mult, min(n, target)
    while c <= lim:
        if n % c == 0:
            best = c
        c += mult
    return best if best is not None else n


def _default_block(T):
    # 128 is native for v5e's 4x128^2 MXU and safe everywhere; pass block_size=256
    # explicitly on v6e/v7x (2x256^2 MXU) when T allows it.
    if T % 128 == 0 and T > 128:
        return 128
    return T


# ----------------------------------------------------------------------------
# pass 1: LN1 + fused QKV projection -> per-head layout, K pre-transposed
# ----------------------------------------------------------------------------
def qkv_kernel(x_ref, ln1_w_ref, ln1_b_ref, wqkv_ref, bqkv_ref,
               q_out, kT_out, v_out, *, n_head, eps):
    C = x_ref.shape[2]
    D = C // n_head
    h = _layernorm(x_ref[0], ln1_w_ref[...], ln1_b_ref[...], eps)
    qkv = jnp.dot(h.astype(jnp.bfloat16), wqkv_ref[...],
                  preferred_element_type=jnp.float32) + bqkv_ref[...]
    scale = jnp.float32(1.0 / (D ** 0.5))
    q = (qkv[:, 0:C] * scale).astype(jnp.bfloat16)         # Q pre-scaled by 1/sqrt(D)
    v = qkv[:, 2 * C:3 * C].astype(jnp.bfloat16)
    kT = qkv[:, C:2 * C].T.astype(jnp.bfloat16)             # one transpose per tile
    for hh in range(n_head):                                # head split done once here,
        q_out[0, hh, 0] = q[:, hh * D:(hh + 1) * D]         # never in the flash loop
        v_out[0, hh, 0] = v[:, hh * D:(hh + 1) * D]
        kT_out[0, hh, 0] = kT[hh * D:(hh + 1) * D, :]


# ----------------------------------------------------------------------------
# pass 2: flash attention + residual + MLP + residual (fully parallel grid)
# ----------------------------------------------------------------------------
def attn_mlp_kernel(x_ref, q_ref, kT_ref, v_ref,
                    wo_ref, bo_ref, ln2_w_ref, ln2_b_ref,
                    wfc_ref, bfc_ref, wproj_ref, bproj_ref,
                    out_ref, attn_scr, *, n_head, eps, blk, mlp_chunk):
    C = x_ref.shape[2]
    D = C // n_head
    qi = pl.program_id(1)

    q_heads = [q_ref[0, h, 0] for h in range(n_head)]       # [blk, D] bf16, pre-scaled

    m0 = jnp.full((blk, 1), _NEG_INF, jnp.float32)
    l0 = jnp.zeros((blk, 1), jnp.float32)
    a0 = jnp.zeros((blk, D), jnp.float32)
    carry0 = tuple((m0, l0, a0) for _ in range(n_head))

    def kv_step(kv, carry, mask):
        new = []
        for h in range(n_head):
            m, l, acc = carry[h]
            k_blk = kT_ref[0, h, kv]                         # [D, blk] (pre-transposed K)
            v_blk = v_ref[0, h, kv]                          # [blk, D]
            s = jnp.dot(q_heads[h], k_blk,
                        preferred_element_type=jnp.float32)  # native [M,K]@[K,N] on MXU
            if mask is not None:
                s = jnp.where(mask, s, _NEG_INF)
            m_new = jnp.maximum(m, jnp.max(s, axis=-1, keepdims=True))
            alpha = jnp.exp(m - m_new)
            p = jnp.exp(s - m_new)                           # f32 exp (safe on all gens)
            l_new = alpha * l + jnp.sum(p, axis=-1, keepdims=True)
            pv = jnp.dot(p.astype(jnp.bfloat16), v_blk,
                         preferred_element_type=jnp.float32)
            new.append((m_new, l_new, alpha * acc + pv))
        return tuple(new)

    # KV blocks strictly below the diagonal block: no mask work at all.
    carry = lax.fori_loop(0, qi, lambda kv, c: kv_step(kv, c, None), carry0)
    # Exactly one diagonal KV block: static block-local lower-triangular mask.
    diag_mask = (lax.broadcasted_iota(jnp.int32, (blk, blk), 1)
                 <= lax.broadcasted_iota(jnp.int32, (blk, blk), 0))
    carry = kv_step(qi, carry, diag_mask)

    # per-head normalization into a lane-dense [blk, C] scratch (no concat relayout)
    for h in range(n_head):
        _, l, acc = carry[h]
        attn_scr[:, h * D:(h + 1) * D] = acc * pl.reciprocal(l, approx=True)

    attn = jnp.dot(attn_scr[...].astype(jnp.bfloat16), wo_ref[...],
                   preferred_element_type=jnp.float32) + bo_ref[...]
    x1 = x_ref[0] + attn

    # MLP, chunked over the 4C hidden dimension
    h2 = _layernorm(x1, ln2_w_ref[...], ln2_b_ref[...], eps).astype(jnp.bfloat16)
    hidden = wfc_ref.shape[1]
    mlp = jnp.zeros((blk, C), jnp.float32)
    for c0 in range(0, hidden, mlp_chunk):
        fc = jnp.dot(h2, wfc_ref[:, c0:c0 + mlp_chunk],
                     preferred_element_type=jnp.float32) + bfc_ref[:, c0:c0 + mlp_chunk]
        g = _gelu_tanh(fc)                                   # f32 GELU
        mlp = mlp + jnp.dot(g.astype(jnp.bfloat16), wproj_ref[c0:c0 + mlp_chunk, :],
                            preferred_element_type=jnp.float32)
    out_ref[0] = x1 + mlp + bproj_ref[...]


def gpt2_block(x, p, *, n_head, eps, block_size=None):
    B, T, C = x.shape
    blk = block_size if block_size is not None else _default_block(T)
    assert T % blk == 0 and (blk % 8 == 0 or blk == T)
    D = C // n_head
    NB = T // blk
    bf16 = jnp.bfloat16

    hidden = 4 * C
    mlp_chunk = 512 if (hidden > 512 and hidden % 512 == 0) else hidden

    # ---- pass 1: LN1 + QKV projection (per-head layout, K stored transposed) ----
    qkv_args = [p['ln1_w'], p['ln1_b'], p['wqkv'].astype(bf16), p['bqkv']]
    q, kT, v = pl.pallas_call(
        functools.partial(qkv_kernel, n_head=n_head, eps=eps),
        out_shape=(jax.ShapeDtypeStruct((B, n_head, NB, blk, D), bf16),
                   jax.ShapeDtypeStruct((B, n_head, NB, D, blk), bf16),
                   jax.ShapeDtypeStruct((B, n_head, NB, blk, D), bf16)),
        grid=(B, NB),
        in_specs=[pl.BlockSpec((1, blk, C), lambda b, t: (b, t, 0))]
                 + [_resident_spec(a.shape) for a in qkv_args],
        out_specs=(pl.BlockSpec((1, n_head, 1, blk, D), lambda b, t: (b, 0, t, 0, 0)),
                   pl.BlockSpec((1, n_head, 1, D, blk), lambda b, t: (b, 0, t, 0, 0)),
                   pl.BlockSpec((1, n_head, 1, blk, D), lambda b, t: (b, 0, t, 0, 0))),
        compiler_params=pltpu.CompilerParams(
            dimension_semantics=("parallel", "parallel"),
            vmem_limit_bytes=_vmem_limit_bytes()),
    )(x, *qkv_args)

    # ---- pass 2: flash attention + wo + residual + MLP + residual ---------------
    blk_args = [p['wo'].astype(bf16), p['bo'], p['ln2_w'], p['ln2_b'],
                p['wfc'].astype(bf16), p['bfc'], p['wproj'].astype(bf16), p['bproj']]
    in_specs = [
        pl.BlockSpec((1, blk, C), lambda b, qi: (b, qi, 0)),                    # residual tile
        pl.BlockSpec((1, n_head, 1, blk, D), lambda b, qi: (b, 0, qi, 0, 0)),   # Q tile
        pl.BlockSpec((1, n_head, NB, D, blk), lambda b, qi: (b, 0, 0, 0, 0)),   # K^T (resident per b)
        pl.BlockSpec((1, n_head, NB, blk, D), lambda b, qi: (b, 0, 0, 0, 0)),   # V   (resident per b)
    ] + [_resident_spec(a.shape) for a in blk_args]

    return pl.pallas_call(
        functools.partial(attn_mlp_kernel, n_head=n_head, eps=eps,
                          blk=blk, mlp_chunk=mlp_chunk),
        out_shape=jax.ShapeDtypeStruct((B, T, C), jnp.float32),
        grid=(B, NB),
        in_specs=in_specs,
        out_specs=pl.BlockSpec((1, blk, C), lambda b, qi: (b, qi, 0)),
        scratch_shapes=[pltpu.VMEM((blk, C), jnp.float32)],      # lane-dense attn output
        compiler_params=pltpu.CompilerParams(
            dimension_semantics=("parallel", "parallel"),
            vmem_limit_bytes=_vmem_limit_bytes()),
    )(x, q, kT, v, *blk_args)


# ----------------------------------------------------------------------------
# final LayerNorm + (weight-tied) lm_head, vocab-tiled
# ----------------------------------------------------------------------------
def lnf_head_kernel(x_ref, w_ref, b_ref, wteT_ref, out_ref, *, eps):
    xn = _layernorm(x_ref[0], w_ref[...], b_ref[...], eps)
    out_ref[0] = jnp.dot(xn.astype(jnp.bfloat16), wteT_ref[...],
                         preferred_element_type=jnp.float32)


def lnf_lm_head(x, lnf_w, lnf_b, wte, *, eps):
    B, T, C = x.shape
    V = wte.shape[0]
    wteT = wte.T.astype(jnp.bfloat16)                # [C, V], pre-transposed once
    V_pad = V
    if V % 128 != 0:                                 # pad vocab to a lane multiple
        V_pad = ((V + 127) // 128) * 128
        wteT = jnp.pad(wteT, ((0, 0), (0, V_pad - V)))
    block_v = _pick_tile(V_pad, 2048, 128)           # vocab tiles (HBM-streamed RHS)
    block_t = _pick_tile(T, 256, 8)

    in_specs = [
        pl.BlockSpec((1, block_t, C), lambda b, t, v: (b, t, 0)),
        _resident_spec(lnf_w.shape),
        _resident_spec(lnf_b.shape),
        pl.BlockSpec((C, block_v), lambda b, t, v: (0, v)),
    ]
    out = pl.pallas_call(
        functools.partial(lnf_head_kernel, eps=eps),
        out_shape=jax.ShapeDtypeStruct((B, T, V_pad), jnp.float32),
        grid=(B, T // block_t, V_pad // block_v),
        in_specs=in_specs,
        out_specs=pl.BlockSpec((1, block_t, block_v), lambda b, t, v: (b, t, v)),
        compiler_params=pltpu.CompilerParams(
            dimension_semantics=("parallel", "parallel", "parallel"),
            vmem_limit_bytes=_vmem_limit_bytes()),
    )(x, lnf_w, lnf_b, wteT)
    return out[:, :, :V] if V_pad != V else out


# ----------------------------------------------------------------------------
# full Transformer forward (training-mode head: logits for all positions)
# ----------------------------------------------------------------------------
def transformer_forward(idx, params, *, n_head, eps, block_size=None):
    T = idx.shape[1]
    # TODO(synk): token/position embedding gather stays in XLA (jnp.take); it is a
    # memory-bound lookup with no benefit from a hand-written Pallas kernel.
    x = jnp.take(params['wte'], idx, axis=0) + params['wpe'][:T][None, :, :]
    x = x.astype(jnp.float32)
    for bp in params['blocks']:
        x = gpt2_block(x, bp, n_head=n_head, eps=eps, block_size=block_size)
    return lnf_lm_head(x, params['lnf_w'], params['lnf_b'], params['wte'], eps=eps)


# ----------------------------------------------------------------------------
# pure-JAX reference (f32 everywhere), mirrors the PyTorch module exactly
# ----------------------------------------------------------------------------
def ref_block(x, p, *, n_head, eps):
    B, T, C = x.shape
    D = C // n_head

    def ln(h, w, b):
        mu = h.mean(-1, keepdims=True)
        var = ((h - mu) ** 2).mean(-1, keepdims=True)
        return (h - mu) / jnp.sqrt(var + eps) * w + b

    h = ln(x, p['ln1_w'], p['ln1_b'])
    qkv = h @ p['wqkv'] + p['bqkv']
    q, k, v = jnp.split(qkv, 3, axis=-1)
    q = q.reshape(B, T, n_head, D).transpose(0, 2, 1, 3)
    k = k.reshape(B, T, n_head, D).transpose(0, 2, 1, 3)
    v = v.reshape(B, T, n_head, D).transpose(0, 2, 1, 3)
    s = (q @ k.transpose(0, 1, 3, 2)) / jnp.sqrt(jnp.float32(D))
    mask = jnp.tril(jnp.ones((T, T), bool))
    s = jnp.where(mask[None, None], s, -jnp.inf)
    a = jax.nn.softmax(s, axis=-1)
    attn = (a @ v).transpose(0, 2, 1, 3).reshape(B, T, C)
    x = x + attn @ p['wo'] + p['bo']
    h2 = ln(x, p['ln2_w'], p['ln2_b'])
    fc = h2 @ p['wfc'] + p['bfc']
    g = 0.5 * fc * (1.0 + jnp.tanh(0.7978845608028654 * (fc + 0.044715 * fc ** 3)))
    return x + g @ p['wproj'] + p['bproj']


def ref_transformer(idx, params, *, n_head, eps):
    T = idx.shape[1]
    x = params['wte'][idx] + params['wpe'][:T][None]
    for bp in params['blocks']:
        x = ref_block(x, bp, n_head=n_head, eps=eps)
    mu = x.mean(-1, keepdims=True)
    var = ((x - mu) ** 2).mean(-1, keepdims=True)
    xn = (x - mu) / jnp.sqrt(var + eps) * params['lnf_w'] + params['lnf_b']
    return xn @ params['wte'].T          # weight-tied lm_head (no bias)


def init_params(key, *, vocab_size, n_ctx, n_embd, n_layer):
    C = n_embd
    s = 0.02
    keys = jax.random.split(key, 2 + n_layer)
    params = {
        'wte': s * jax.random.normal(keys[0], (vocab_size, C), jnp.float32),
        'wpe': s * jax.random.normal(keys[1], (n_ctx, C), jnp.float32),
        'lnf_w': jnp.ones((1, C), jnp.float32),
        'lnf_b': jnp.zeros((1, C), jnp.float32),
        'blocks': [],
    }
    for li in range(n_layer):
        ks = jax.random.split(keys[2 + li], 8)
        params['blocks'].append({
            'ln1_w': jnp.ones((1, C), jnp.float32),
            'ln1_b': jnp.zeros((1, C), jnp.float32),
            'wqkv': s * jax.random.normal(ks[0], (C, 3 * C), jnp.float32),
            'bqkv': s * jax.random.normal(ks[1], (1, 3 * C), jnp.float32),
            'wo':   s * jax.random.normal(ks[2], (C, C), jnp.float32),
            'bo':   s * jax.random.normal(ks[3], (1, C), jnp.float32),
            'ln2_w': jnp.ones((1, C), jnp.float32),
            'ln2_b': jnp.zeros((1, C), jnp.float32),
            'wfc':  s * jax.random.normal(ks[4], (C, 4 * C), jnp.float32),
            'bfc':  s * jax.random.normal(ks[5], (1, 4 * C), jnp.float32),
            'wproj': s * jax.random.normal(ks[6], (4 * C, C), jnp.float32),
            'bproj': s * jax.random.normal(ks[7], (1, C), jnp.float32),
        })
    return params


if __name__ == "__main__":
    # small GPT-2-style config: B=2, n_ctx=T=16, n_embd=32, n_head=4 (head_dim=8),
    # vocab=64, n_layer=2; block_size=8 so the unmasked-vs-diagonal flash loop,
    # the per-head K^T layout, the parallel sequence grid axis and the padded
    # vocab-tiled lm_head are all actually exercised.
    B, T, C, H = 2, 16, 32, 4
    V, NL = 64, 2
    eps = 1e-5

    key = jax.random.PRNGKey(0)
    k_idx, k_p = jax.random.split(key)
    idx = jax.random.randint(k_idx, (B, T), 0, V, dtype=jnp.int32)
    params = init_params(k_p, vocab_size=V, n_ctx=T, n_embd=C, n_layer=NL)

    _probe_single_buffer()   # decide single-buffered weight specs eagerly (pre-jit)
    _vmem_limit_bytes()

    fwd = jax.jit(functools.partial(transformer_forward, n_head=H, eps=eps,
                                    block_size=8))
    logits = jax.block_until_ready(fwd(idx, params))

    ref = ref_transformer(idx, params, n_head=H, eps=eps)
    assert logits.shape == (B, T, V)
    assert bool(jnp.all(jnp.isfinite(logits)))
    err = jnp.max(jnp.abs(logits - ref))
    # bf16 MXU inputs (f32 accumulation) vs the pure-f32 reference -> relaxed atol
    assert err < 3e-2, f"max err {err}"
    print("KERNEL_OK")
</pallas_src>

<mosaic_0001>
module attributes {stable_mosaic.version = 11 : i64} {
  func.func @k(%arg0: i32, %arg1: memref<8x128xf32, #tpu.memory_space<vmem>>, %arg2: memref<8x128xf32, #tpu.memory_space<vmem>>) attributes {dimension_semantics = [#tpu.dimension_semantics<arbitrary>], iteration_bounds = array<i64: 1>, scalar_prefetch = 0 : i64, scratch_operands = 0 : i64, tpu.core_type = #tpu.core_type<tc>, window_params = [{pipeline_mode = #tpu.pipeline_mode<synchronous>, transform_indices = @transform_0, window_bounds = array<i64: 8, 128>}, {pipeline_mode = #tpu.pipeline_mode<synchronous>, transform_indices = @transform_1, window_bounds = array<i64: 8, 128>}]} {
    %c0 = arith.constant 0 : index
    %c0_0 = arith.constant 0 : index
    %0 = vector.load %arg1[%c0, %c0_0] : memref<8x128xf32, #tpu.memory_space<vmem>>, vector<8x128xf32>
    %cst = arith.constant 1.000000e+00 : f32
    %1 = vector.broadcast %cst : f32 to vector<8x128xf32>
    %2 = arith.addf %0, %1 : vector<8x128xf32>
    %c0_1 = arith.constant 0 : index
    %c0_2 = arith.constant 0 : index
    %3 = vector.load %arg2[%c0_1, %c0_2] : memref<8x128xf32, #tpu.memory_space<vmem>>, vector<8x128xf32>
    tpu.vector_store %arg2[%c0_1, %c0_2], %2 {strides = array<i32>} : memref<8x128xf32, #tpu.memory_space<vmem>>, vector<8x128xf32>,
    return
  }
  func.func @transform_0(%arg0: i32) -> (i32, i32) {
    %c0_i32 = arith.constant 0 : i32
    %c0_i32_0 = arith.constant 0 : i32
    %c0_i32_1 = arith.constant 0 : i32
    return %c0_i32, %c0_i32_0 : i32, i32
  }
  func.func @transform_1(%arg0: i32) -> (i32, i32) {
    %c0_i32 = arith.constant 0 : i32
    %c0_i32_0 = arith.constant 0 : i32
    %c0_i32_1 = arith.constant 0 : i32
    return %c0_i32, %c0_i32_0 : i32, i32
  }
}

module attributes {stable_mosaic.version = 11 : i64} {
  func.func @attn_mlp_kernel(%arg0: i32, %arg1: i32, %arg2: memref<1x8x32xf32, #tpu.memory_space<vmem>>, %arg3: memref<1x4x1x8x8xbf16, #tpu.memory_space<vmem>>, %arg4: memref<1x4x2x8x8xbf16, #tpu.memory_space<vmem>>, %arg5: memref<1x4x2x8x8xbf16, #tpu.memory_space<vmem>>, %arg6: memref<32x32xbf16, #tpu.memory_space<vmem>>, %arg7: memref<1x32xf32, #tpu.memory_space<vmem>>, %arg8: memref<1x32xf32, #tpu.memory_space<vmem>>, %arg9: memref<1x32xf32, #tpu.memory_space<vmem>>, %arg10: memref<32x128xbf16, #tpu.memory_space<vmem>>, %arg11: memref<1x128xf32, #tpu.memory_space<vmem>>, %arg12: memref<128x32xbf16, #tpu.memory_space<vmem>>, %arg13: memref<1x32xf32, #tpu.memory_space<vmem>>, %arg14: memref<1x8x32xf32, #tpu.memory_space<vmem>>, %arg15: memref<8x32xf32, #tpu.memory_space<vmem>>) attributes {dimension_semantics = [#tpu.dimension_semantics<parallel>, #tpu.dimension_semantics<parallel>], iteration_bounds = array<i64: 2, 2>, scalar_prefetch = 0 : i64, scratch_operands = 1 : i64, tpu.core_type = #tpu.core_type<tc>, window_params = [{transform_indices = @transform_0, window_bounds = array<i64: 1, 8, 32>}, {transform_indices = @transform_1, window_bounds = array<i64: 1, 4, 1, 8, 8>}, {transform_indices = @transform_2, window_bounds = array<i64: 1, 4, 2, 8, 8>}, {transform_indices = @transform_3, window_bounds = array<i64: 1, 4, 2, 8, 8>}, {pipeline_mode = #tpu.pipeline_mode<synchronous>, transform_indices = @transform_4, window_bounds = array<i64: 32, 32>}, {pipeline_mode = #tpu.pipeline_mode<synchronous>, transform_indices = @transform_5, window_bounds = array<i64: 1, 32>}, {pipeline_mode = #tpu.pipeline_mode<synchronous>, transform_indices = @transform_6, window_bounds = array<i64: 1, 32>}, {pipeline_mode = #tpu.pipeline_mode<synchronous>, transform_indices = @transform_7, window_bounds = array<i64: 1, 32>}, {pipeline_mode = #tpu.pipeline_mode<synchronous>, transform_indices = @transform_8, window_bounds = array<i64: 32, 128>}, {pipeline_mode = #tpu.pipeline_mode<synchronous>, transform_indices = @transform_9, window_bounds = array<i64: 1, 128>}, {pipeline_mode = #tpu.pipeline_mode<synchronous>, transform_indices = @transform_10, window_bounds = array<i64: 128, 32>}, {pipeline_mode = #tpu.pipeline_mode<synchronous>, transform_indices = @transform_11, window_bounds = array<i64: 1, 32>}, {transform_indices = @transform_12, window_bounds = array<i64: 1, 8, 32>}]} {
    %c0 = arith.constant 0 : index
    %c0_0 = arith.constant 0 : index
    %c0_1 = arith.constant 0 : index
    %c0_2 = arith.constant 0 : index
    %c0_3 = arith.constant 0 : index
    %0 = vector.load %arg3[%c0, %c0_0, %c0_1, %c0_2, %c0_3] : memref<1x4x1x8x8xbf16, #tpu.memory_space<vmem>>, vector<1x1x1x8x8xbf16>
    %1 = vector.shape_cast %0 : vector<1x1x1x8x8xbf16> to vector<8x8xbf16>
    %c0_4 = arith.constant 0 : index
    %c1 = arith.constant 1 : index
    %c0_5 = arith.constant 0 : index
    %c0_6 = arith.constant 0 : index
    %c0_7 = arith.constant 0 : index
    %2 = vector.load %arg3[%c0_4, %c1, %c0_5, %c0_6, %c0_7] : memref<1x4x1x8x8xbf16, #tpu.memory_space<vmem>>, vector<1x1x1x8x8xbf16>
    %3 = vector.shape_cast %2 : vector<1x1x1x8x8xbf16> to vector<8x8xbf16>
    %c0_8 = arith.constant 0 : index
    %c2 = arith.constant 2 : index
    %c0_9 = arith.constant 0 : index
    %c0_10 = arith.constant 0 : index
    %c0_11 = arith.constant 0 : index
    %4 = vector.load %arg3[%c0_8, %c2, %c0_9, %c0_10, %c0_11] : memref<1x4x1x8x8xbf16, #tpu.memory_space<vmem>>, vector<1x1x1x8x8xbf16>
    %5 = vector.shape_cast %4 : vector<1x1x1x8x8xbf16> to vector<8x8xbf16>
    %c0_12 = arith.constant 0 : index
    %c3 = arith.constant 3 : index
    %c0_13 = arith.constant 0 : index
    %c0_14 = arith.constant 0 : index
    %c0_15 = arith.constant 0 : index
    %6 = vector.load %arg3[%c0_12, %c3, %c0_13, %c0_14, %c0_15] : memref<1x4x1x8x8xbf16, #tpu.memory_space<vmem>>, vector<1x1x1x8x8xbf16>
    %7 = vector.shape_cast %6 : vector<1x1x1x8x8xbf16> to vector<8x8xbf16>
    %cst = arith.constant -1.000000e+30 : f32
    %8 = vector.broadcast %cst : f32 to vector<8x1xf32>
    %cst_16 = arith.constant 0.000000e+00 : f32
    %9 = vector.broadcast %cst_16 : f32 to vector<8x1xf32>
    %cst_17 = arith.constant 0.000000e+00 : f32
    %10 = vector.broadcast %cst_17 : f32 to vector<8x8xf32>
    %c0_i32 = arith.constant 0 : i32
    %11 = arith.subi %arg1, %c0_i32 : i32
    %12 = arith.addi %c0_i32, %11 : i32
    %c1_i32 = arith.constant 1 : i32
    %13:12 = scf.for %arg16 = %c0_i32 to %12 step %c1_i32 iter_args(%arg17 = %8, %arg18 = %9, %arg19 = %10, %arg20 = %8, %arg21 = %9, %arg22 = %10, %arg23 = %8, %arg24 = %9, %arg25 = %10, %arg26 = %8, %arg27 = %9, %arg28 = %10) -> (vector<8x1xf32>, vector<8x1xf32>, vector<8x8xf32>, vector<8x1xf32>, vector<8x1xf32>, vector<8x8xf32>, vector<8x1xf32>, vector<8x1xf32>, vector<8x8xf32>, vector<8x1xf32>, vector<8x1xf32>, vector<8x8xf32>)  : i32 {
      %c0_112 = arith.constant 0 : index
      %c0_113 = arith.constant 0 : index
      %202 = arith.index_cast %arg16 : i32 to index
      %c0_114 = arith.constant 0 : index
      %c0_115 = arith.constant 0 : index
      %203 = vector.load %arg4[%c0_112, %c0_113, %202, %c0_114, %c0_115] : memref<1x4x2x8x8xbf16, #tpu.memory_space<vmem>>, vector<1x1x1x8x8xbf16>
      %204 = vector.shape_cast %203 : vector<1x1x1x8x8xbf16> to vector<8x8xbf16>
      %c0_116 = arith.constant 0 : index
      %c0_117 = arith.constant 0 : index
      %205 = arith.index_cast %arg16 : i32 to index
      %c0_118 = arith.constant 0 : index
      %c0_119 = arith.constant 0 : index
      %206 = vector.load %arg5[%c0_116, %c0_117, %205, %c0_118, %c0_119] : memref<1x4x2x8x8xbf16, #tpu.memory_space<vmem>>, vector<1x1x1x8x8xbf16>
      %207 = vector.shape_cast %206 : vector<1x1x1x8x8xbf16> to vector<8x8xbf16>
      %cst_120 = arith.constant dense<0.000000e+00> : vector<8x8xf32>
      %208 = tpu.matmul %1, %204, %cst_120 {dimension_numbers = #tpu.dot_dimension_numbers<[1], [0], [0], [1], [0, 0, 1, 1], [], []>} : vector<8x8xbf16>, vector<8x8xbf16>, vector<8x8xf32> -> vector<8x8xf32>
      %cst_121 = arith.constant dense<0xFF800000> : vector<8xf32>
      %209 = vector.multi_reduction <maximumf>, %208, %cst_121 [1] : vector<8x8xf32> to vector<8xf32>
      %210 = vector.shape_cast %209 : vector<8xf32> to vector<8x1xf32>
      %211 = arith.maximumf %arg17, %210 : vector<8x1xf32>
      %212 = arith.subf %arg17, %211 : vector<8x1xf32>
      %213 = math.exp %212 : vector<8x1xf32>
      %214 = vector.broadcast %211 : vector<8x1xf32> to vector<8x8xf32>
      %215 = arith.subf %208, %214 : vector<8x8xf32>
      %216 = math.exp %215 : vector<8x8xf32>
      %217 = arith.mulf %213, %arg18 : vector<8x1xf32>
      %cst_122 = arith.constant dense<0.000000e+00> : vector<8xf32>
      %218 = vector.multi_reduction <add>, %216, %cst_122 [1] : vector<8x8xf32> to vector<8xf32>
      %219 = vector.shape_cast %218 : vector<8xf32> to vector<8x1xf32>
      %220 = arith.addf %217, %219 : vector<8x1xf32>
      %221 = arith.truncf %216 : vector<8x8xf32> to vector<8x8xbf16>
      %cst_123 = arith.constant dense<0.000000e+00> : vector<8x8xf32>
      %222 = tpu.matmul %221, %207, %cst_123 {dimension_numbers = #tpu.dot_dimension_numbers<[1], [0], [0], [1], [0, 0, 1, 1], [], []>} : vector<8x8xbf16>, vector<8x8xbf16>, vector<8x8xf32> -> vector<8x8xf32>
      %223 = vector.broadcast %213 : vector<8x1xf32> to vector<8x8xf32>
      %224 = arith.mulf %223, %arg19 : vector<8x8xf32>
      %225 = arith.addf %224, %222 : vector<8x8xf32>
      %c0_124 = arith.constant 0 : index
      %c1_125 = arith.constant 1 : index
      %226 = arith.index_cast %arg16 : i32 to index
      %c0_126 = arith.constant 0 : index
      %c0_127 = arith.constant 0 : index
      %227 = vector.load %arg4[%c0_124, %c1_125, %226, %c0_126, %c0_127] : memref<1x4x2x8x8xbf16, #tpu.memory_space<vmem>>, vector<1x1x1x8x8xbf16>
      %228 = vector.shape_cast %227 : vector<1x1x1x8x8xbf16> to vector<8x8xbf16>
      %c0_128 = arith.constant 0 : index
      %c1_129 = arith.constant 1 : index
      %229 = arith.index_cast %arg16 : i32 to index
      %c0_130 = arith.constant 0 : index
      %c0_131 = arith.constant 0 : index
      %230 = vector.load %arg5[%c0_128, %c1_129, %229, %c0_130, %c0_131] : memref<1x4x2x8x8xbf16, #tpu.memory_space<vmem>>, vector<1x1x1x8x8xbf16>
      %231 = vector.shape_cast %230 : vector<1x1x1x8x8xbf16> to vector<8x8xbf16>
      %cst_132 = arith.constant dense<0.000000e+00> : vector<8x8xf32>
      %232 = tpu.matmul %3, %228, %cst_132 {dimension_numbers = #tpu.dot_dimension_numbers<[1], [0], [0], [1], [0, 0, 1, 1], [], []>} : vector<8x8xbf16>, vector<8x8xbf16>, vector<8x8xf32> -> vector<8x8xf32>
      %cst_133 = arith.constant dense<0xFF800000> : vector<8xf32>
      %233 = vector.multi_reduction <maximumf>, %232, %cst_133 [1] : vector<8x8xf32> to vector<8xf32>
      %234 = vector.shape_cast %233 : vector<8xf32> to vector<8x1xf32>
      %235 = arith.maximumf %arg20, %234 : vector<8x1xf32>
      %236 = arith.subf %arg20, %235 : vector<8x1xf32>
      %237 = math.exp %236 : vector<8x1xf32>
      %238 = vector.broadcast %235 : vector<8x1xf32> to vector<8x8xf32>
      %239 = arith.subf %232, %238 : vector<8x8xf32>
      %240 = math.exp %239 : vector<8x8xf32>
      %241 = arith.mulf %237, %arg21 : vector<8x1xf32>
      %cst_134 = arith.constant dense<0.000000e+00> : vector<8xf32>
      %242 = vector.multi_reduction <add>, %240, %cst_134 [1] : vector<8x8xf32> to vector<8xf32>
      %243 = vector.shape_cast %242 : vector<8xf32> to vector<8x1xf32>
      %244 = arith.addf %241, %243 : vector<8x1xf32>
      %245 = arith.truncf %240 : vector<8x8xf32> to vector<8x8xbf16>
      %cst_135 = arith.constant dense<0.000000e+00> : vector<8x8xf32>
      %246 = tpu.matmul %245, %231, %cst_135 {dimension_numbers = #tpu.dot_dimension_numbers<[1], [0], [0], [1], [0, 0, 1, 1], [], []>} : vector<8x8xbf16>, vector<8x8xbf16>, vector<8x8xf32> -> vector<8x8xf32>
      %247 = vector.broadcast %237 : vector<8x1xf32> to vector<8x8xf32>
      %248 = arith.mulf %247, %arg22 : vector<8x8xf32>
      %249 = arith.addf %248, %246 : vector<8x8xf32>
      %c0_136 = arith.constant 0 : index
      %c2_137 = arith.constant 2 : index
      %250 = arith.index_cast %arg16 : i32 to index
      %c0_138 = arith.constant 0 : index
      %c0_139 = arith.constant 0 : index
      %251 = vector.load %arg4[%c0_136, %c2_137, %250, %c0_138, %c0_139] : memref<1x4x2x8x8xbf16, #tpu.memory_space<vmem>>, vector<1x1x1x8x8xbf16>
      %252 = vector.shape_cast %251 : vector<1x1x1x8x8xbf16> to vector<8x8xbf16>
      %c0_140 = arith.constant 0 : index
      %c2_141 = arith.constant 2 : index
      %253 = arith.index_cast %arg16 : i32 to index
      %c0_142 = arith.constant 0 : index
      %c0_143 = arith.constant 0 : index
      %254 = vector.load %arg5[%c0_140, %c2_141, %253, %c0_142, %c0_143] : memref<1x4x2x8x8xbf16, #tpu.memory_space<vmem>>, vector<1x1x1x8x8xbf16>
      %255 = vector.shape_cast %254 : vector<1x1x1x8x8xbf16> to vector<8x8xbf16>
      %cst_144 = arith.constant dense<0.000000e+00> : vector<8x8xf32>
      %256 = tpu.matmul %5, %252, %cst_144 {dimension_numbers = #tpu.dot_dimension_numbers<[1], [0], [0], [1], [0, 0, 1, 1], [], []>} : vector<8x8xbf16>, vector<8x8xbf16>, vector<8x8xf32> -> vector<8x8xf32>
      %cst_145 = arith.constant dense<0xFF800000> : vector<8xf32>
      %257 = vector.multi_reduction <maximumf>, %256, %cst_145 [1] : vector<8x8xf32> to vector<8xf32>
      %258 = vector.shape_cast %257 : vector<8xf32> to vector<8x1xf32>
      %259 = arith.maximumf %arg23, %258 : vector<8x1xf32>
      %260 = arith.subf %arg23, %259 : vector<8x1xf32>
      %261 = math.exp %260 : vector<8x1xf32>
      %262 = vector.broadcast %259 : vector<8x1xf32> to vector<8x8xf32>
      %263 = arith.subf %256, %262 : vector<8x8xf32>
      %264 = math.exp %263 : vector<8x8xf32>
      %265 = arith.mulf %261, %arg24 : vector<8x1xf32>
      %cst_146 = arith.constant dense<0.000000e+00> : vector<8xf32>
      %266 = vector.multi_reduction <add>, %264, %cst_146 [1] : vector<8x8xf32> to vector<8xf32>
      %267 = vector.shape_cast %266 : vector<8xf32> to vector<8x1xf32>
      %268 = arith.addf %265, %267 : vector<8x1xf32>
      %269 = arith.truncf %264 : vector<8x8xf32> to vector<8x8xbf16>
      %cst_147 = arith.constant dense<0.000000e+00> : vector<8x8xf32>
      %270 = tpu.matmul %269, %255, %cst_147 {dimension_numbers = #tpu.dot_dimension_numbers<[1], [0], [0], [1], [0, 0, 1, 1], [], []>} : vector<8x8xbf16>, vector<8x8xbf16>, vector<8x8xf32> -> vector<8x8xf32>
      %271 = vector.broadcast %261 : vector<8x1xf32> to vector<8x8xf32>
      %272 = arith.mulf %271, %arg25 : vector<8x8xf32>
      %273 = arith.addf %272, %270 : vector<8x8xf32>
      %c0_148 = arith.constant 0 : index
      %c3_149 = arith.constant 3 : index
      %274 = arith.index_cast %arg16 : i32 to index
      %c0_150 = arith.constant 0 : index
      %c0_151 = arith.constant 0 : index
      %275 = vector.load %arg4[%c0_148, %c3_149, %274, %c0_150, %c0_151] : memref<1x4x2x8x8xbf16, #tpu.memory_space<vmem>>, vector<1x1x1x8x8xbf16>
      %276 = vector.shape_cast %275 : vector<1x1x1x8x8xbf16> to vector<8x8xbf16>
      %c0_152 = arith.constant 0 : index
      %c3_153 = arith.constant 3 : index
      %277 = arith.index_cast %arg16 : i32 to index
      %c0_154 = arith.constant 0 : index
      %c0_155 = arith.constant 0 : index
      %278 = vector.load %arg5[%c0_152, %c3_153, %277, %c0_154, %c0_155] : memref<1x4x2x8x8xbf16, #tpu.memory_space<vmem>>, vector<1x1x1x8x8xbf16>
      %279 = vector.shape_cast %278 : vector<1x1x1x8x8xbf16> to vector<8x8xbf16>
      %cst_156 = arith.constant dense<0.000000e+00> : vector<8x8xf32>
      %280 = tpu.matmul %7, %276, %cst_156 {dimension_numbers = #tpu.dot_dimension_numbers<[1], [0], [0], [1], [0, 0, 1, 1], [], []>} : vector<8x8xbf16>, vector<8x8xbf16>, vector<8x8xf32> -> vector<8x8xf32>
      %cst_157 = arith.constant dense<0xFF800000> : vector<8xf32>
      %281 = vector.multi_reduction <maximumf>, %280, %cst_157 [1] : vector<8x8xf32> to vector<8xf32>
      %282 = vector.shape_cast %281 : vector<8xf32> to vector<8x1xf32>
      %283 = arith.maximumf %arg26, %282 : vector<8x1xf32>
      %284 = arith.subf %arg26, %283 : vector<8x1xf32>
      %285 = math.exp %284 : vector<8x1xf32>
      %286 = vector.broadcast %283 : vector<8x1xf32> to vector<8x8xf32>
      %287 = arith.subf %280, %286 : vector<8x8xf32>
      %288 = math.exp %287 : vector<8x8xf32>
      %289 = arith.mulf %285, %arg27 : vector<8x1xf32>
      %cst_158 = arith.constant dense<0.000000e+00> : vector<8xf32>
      %290 = vector.multi_reduction <add>, %288, %cst_158 [1] : vector<8x8xf32> to vector<8xf32>
      %291 = vector.shape_cast %290 : vector<8xf32> to vector<8x1xf32>
      %292 = arith.addf %289, %291 : vector<8x1xf32>
      %293 = arith.truncf %288 : vector<8x8xf32> to vector<8x8xbf16>
      %cst_159 = arith.constant dense<0.000000e+00> : vector<8x8xf32>
      %294 = tpu.matmul %293, %279, %cst_159 {dimension_numbers = #tpu.dot_dimension_numbers<[1], [0], [0], [1], [0, 0, 1, 1], [], []>} : vector<8x8xbf16>, vector<8x8xbf16>, vector<8x8xf32> -> vector<8x8xf32>
      %295 = vector.broadcast %285 : vector<8x1xf32> to vector<8x8xf32>
      %296 = arith.mulf %295, %arg28 : vector<8x8xf32>
      %297 = arith.addf %296, %294 : vector<8x8xf32>
      scf.yield %211, %220, %225, %235, %244, %249, %259, %268, %273, %283, %292, %297 : vector<8x1xf32>, vector<8x1xf32>, vector<8x8xf32>, vector<8x1xf32>, vector<8x1xf32>, vector<8x8xf32>, vector<8x1xf32>, vector<8x1xf32>, vector<8x8xf32>, vector<8x1xf32>, vector<8x1xf32>, vector<8x8xf32>
    }
    %14 = tpu.iota {dimensions = array<i32: 1>} : vector<8x8xi32>
    %15 = tpu.iota {dimensions = array<i32: 0>} : vector<8x8xi32>
    %16 = arith.cmpi sle, %14, %15 : vector<8x8xi32>
    %c0_18 = arith.constant 0 : index
    %c0_19 = arith.constant 0 : index
    %17 = arith.index_cast %arg1 : i32 to index
    %c0_20 = arith.constant 0 : index
    %c0_21 = arith.constant 0 : index
    %18 = vector.load %arg4[%c0_18, %c0_19, %17, %c0_20, %c0_21] : memref<1x4x2x8x8xbf16, #tpu.memory_space<vmem>>, vector<1x1x1x8x8xbf16>
    %19 = vector.shape_cast %18 : vector<1x1x1x8x8xbf16> to vector<8x8xbf16>
    %c0_22 = arith.constant 0 : index
    %c0_23 = arith.constant 0 : index
    %20 = arith.index_cast %arg1 : i32 to index
    %c0_24 = arith.constant 0 : index
    %c0_25 = arith.constant 0 : index
    %21 = vector.load %arg5[%c0_22, %c0_23, %20, %c0_24, %c0_25] : memref<1x4x2x8x8xbf16, #tpu.memory_space<vmem>>, vector<1x1x1x8x8xbf16>
    %22 = vector.shape_cast %21 : vector<1x1x1x8x8xbf16> to vector<8x8xbf16>
    %cst_26 = arith.constant dense<0.000000e+00> : vector<8x8xf32>
    %23 = tpu.matmul %1, %19, %cst_26 {dimension_numbers = #tpu.dot_dimension_numbers<[1], [0], [0], [1], [0, 0, 1, 1], [], []>} : vector<8x8xbf16>, vector<8x8xbf16>, vector<8x8xf32> -> vector<8x8xf32>
    %cst_27 = arith.constant -1.000000e+30 : f32
    %24 = vector.broadcast %cst_27 : f32 to vector<8x8xf32>
    %25 = arith.select %16, %23, %24 : vector<8x8xi1>, vector<8x8xf32>
    %cst_28 = arith.constant dense<0xFF800000> : vector<8xf32>
    %26 = vector.multi_reduction <maximumf>, %25, %cst_28 [1] : vector<8x8xf32> to vector<8xf32>
    %27 = vector.shape_cast %26 : vector<8xf32> to vector<8x1xf32>
    %28 = arith.maximumf %13#0, %27 : vector<8x1xf32>
    %29 = arith.subf %13#0, %28 : vector<8x1xf32>
    %30 = math.exp %29 : vector<8x1xf32>
    %31 = vector.broadcast %28 : vector<8x1xf32> to vector<8x8xf32>
    %32 = arith.subf %25, %31 : vector<8x8xf32>
    %33 = math.exp %32 : vector<8x8xf32>
    %34 = arith.mulf %30, %13#1 : vector<8x1xf32>
    %cst_29 = arith.constant dense<0.000000e+00> : vector<8xf32>
    %35 = vector.multi_reduction <add>, %33, %cst_29 [1] : vector<8x8xf32> to vector<8xf32>
    %36 = vector.shape_cast %35 : vector<8xf32> to vector<8x1xf32>
    %37 = arith.addf %34, %36 : vector<8x1xf32>
    %38 = arith.truncf %33 : vector<8x8xf32> to vector<8x8xbf16>
    %cst_30 = arith.constant dense<0.000000e+00> : vector<8x8xf32>
    %39 = tpu.matmul %38, %22, %cst_30 {dimension_numbers = #tpu.dot_dimension_numbers<[1], [0], [0], [1], [0, 0, 1, 1], [], []>} : vector<8x8xbf16>, vector<8x8xbf16>, vector<8x8xf32> -> vector<8x8xf32>
    %40 = vector.broadcast %30 : vector<8x1xf32> to vector<8x8xf32>
    %41 = arith.mulf %40, %13#2 : vector<8x8xf32>
    %42 = arith.addf %41, %39 : vector<8x8xf32>
    %c0_31 = arith.constant 0 : index
    %c1_32 = arith.constant 1 : index
    %43 = arith.index_cast %arg1 : i32 to index
    %c0_33 = arith.constant 0 : index
    %c0_34 = arith.constant 0 : index
    %44 = vector.load %arg4[%c0_31, %c1_32, %43, %c0_33, %c0_34] : memref<1x4x2x8x8xbf16, #tpu.memory_space<vmem>>, vector<1x1x1x8x8xbf16>
    %45 = vector.shape_cast %44 : vector<1x1x1x8x8xbf16> to vector<8x8xbf16>
    %c0_35 = arith.constant 0 : index
    %c1_36 = arith.constant 1 : index
    %46 = arith.index_cast %arg1 : i32 to index
    %c0_37 = arith.constant 0 : index
    %c0_38 = arith.constant 0 : index
    %47 = vector.load %arg5[%c0_35, %c1_36, %46, %c0_37, %c0_38] : memref<1x4x2x8x8xbf16, #tpu.memory_space<vmem>>, vector<1x1x1x8x8xbf16>
    %48 = vector.shape_cast %47 : vector<1x1x1x8x8xbf16> to vector<8x8xbf16>
    %cst_39 = arith.constant dense<0.000000e+00> : vector<8x8xf32>
    %49 = tpu.matmul %3, %45, %cst_39 {dimension_numbers = #tpu.dot_dimension_numbers<[1], [0], [0], [1], [0, 0, 1, 1], [], []>} : vector<8x8xbf16>, vector<8x8xbf16>, vector<8x8xf32> -> vector<8x8xf32>
    %cst_40 = arith.constant -1.000000e+30 : f32
    %50 = vector.broadcast %cst_40 : f32 to vector<8x8xf32>
    %51 = arith.select %16, %49, %50 : vector<8x8xi1>, vector<8x8xf32>
    %cst_41 = arith.constant dense<0xFF800000> : vector<8xf32>
    %52 = vector.multi_reduction <maximumf>, %51, %cst_41 [1] : vector<8x8xf32> to vector<8xf32>
    %53 = vector.shape_cast %52 : vector<8xf32> to vector<8x1xf32>
    %54 = arith.maximumf %13#3, %53 : vector<8x1xf32>
    %55 = arith.subf %13#3, %54 : vector<8x1xf32>
    %56 = math.exp %55 : vector<8x1xf32>
    %57 = vector.broadcast %54 : vector<8x1xf32> to vector<8x8xf32>
    %58 = arith.subf %51, %57 : vector<8x8xf32>
    %59 = math.exp %58 : vector<8x8xf32>
    %60 = arith.mulf %56, %13#4 : vector<8x1xf32>
    %cst_42 = arith.constant dense<0.000000e+00> : vector<8xf32>
    %61 = vector.multi_reduction <add>, %59, %cst_42 [1] : vector<8x8xf32> to vector<8xf32>
    %62 = vector.shape_cast %61 : vector<8xf32> to vector<8x1xf32>
    %63 = arith.addf %60, %62 : vector<8x1xf32>
    %64 = arith.truncf %59 : vector<8x8xf32> to vector<8x8xbf16>
    %cst_43 = arith.constant dense<0.000000e+00> : vector<8x8xf32>
    %65 = tpu.matmul %64, %48, %cst_43 {dimension_numbers = #tpu.dot_dimension_numbers<[1], [0], [0], [1], [0, 0, 1, 1], [], []>} : vector<8x8xbf16>, vector<8x8xbf16>, vector<8x8xf32> -> vector<8x8xf32>
    %66 = vector.broadcast %56 : vector<8x1xf32> to vector<8x8xf32>
    %67 = arith.mulf %66, %13#5 : vector<8x8xf32>
    %68 = arith.addf %67, %65 : vector<8x8xf32>
    %c0_44 = arith.constant 0 : index
    %c2_45 = arith.constant 2 : index
    %69 = arith.index_cast %arg1 : i32 to index
    %c0_46 = arith.constant 0 : index
    %c0_47 = arith.constant 0 : index
    %70 = vector.load %arg4[%c0_44, %c2_45, %69, %c0_46, %c0_47] : memref<1x4x2x8x8xbf16, #tpu.memory_space<vmem>>, vector<1x1x1x8x8xbf16>
    %71 = vector.shape_cast %70 : vector<1x1x1x8x8xbf16> to vector<8x8xbf16>
    %c0_48 = arith.constant 0 : index
    %c2_49 = arith.constant 2 : index
    %72 = arith.index_cast %arg1 : i32 to index
    %c0_50 = arith.constant 0 : index
    %c0_51 = arith.constant 0 : index
    %73 = vector.load %arg5[%c0_48, %c2_49, %72, %c0_50, %c0_51] : memref<1x4x2x8x8xbf16, #tpu.memory_space<vmem>>, vector<1x1x1x8x8xbf16>
    %74 = vector.shape_cast %73 : vector<1x1x1x8x8xbf16> to vector<8x8xbf16>
    %cst_52 = arith.constant dense<0.000000e+00> : vector<8x8xf32>
    %75 = tpu.matmul %5, %71, %cst_52 {dimension_numbers = #tpu.dot_dimension_numbers<[1], [0], [0], [1], [0, 0, 1, 1], [], []>} : vector<8x8xbf16>, vector<8x8xbf16>, vector<8x8xf32> -> vector<8x8xf32>
    %cst_53 = arith.constant -1.000000e+30 : f32
    %76 = vector.broadcast %cst_53 : f32 to vector<8x8xf32>
    %77 = arith.select %16, %75, %76 : vector<8x8xi1>, vector<8x8xf32>
    %cst_54 = arith.constant dense<0xFF800000> : vector<8xf32>
    %78 = vector.multi_reduction <maximumf>, %77, %cst_54 [1] : vector<8x8xf32> to vector<8xf32>
    %79 = vector.shape_cast %78 : vector<8xf32> to vector<8x1xf32>
    %80 = arith.maximumf %13#6, %79 : vector<8x1xf32>
    %81 = arith.subf %13#6, %80 : vector<8x1xf32>
    %82 = math.exp %81 : vector<8x1xf32>
    %83 = vector.broadcast %80 : vector<8x1xf32> to vector<8x8xf32>
    %84 = arith.subf %77, %83 : vector<8x8xf32>
    %85 = math.exp %84 : vector<8x8xf32>
    %86 = arith.mulf %82, %13#7 : vector<8x1xf32>
    %cst_55 = arith.constant dense<0.000000e+00> : vector<8xf32>
    %87 = vector.multi_reduction <add>, %85, %cst_55 [1] : vector<8x8xf32> to vector<8xf32>
    %88 = vector.shape_cast %87 : vector<8xf32> to vector<8x1xf32>
    %89 = arith.addf %86, %88 : vector<8x1xf32>
    %90 = arith.truncf %85 : vector<8x8xf32> to vector<8x8xbf16>
    %cst_56 = arith.constant dense<0.000000e+00> : vector<8x8xf32>
    %91 = tpu.matmul %90, %74, %cst_56 {dimension_numbers = #tpu.dot_dimension_numbers<[1], [0], [0], [1], [0, 0, 1, 1], [], []>} : vector<8x8xbf16>, vector<8x8xbf16>, vector<8x8xf32> -> vector<8x8xf32>
    %92 = vector.broadcast %82 : vector<8x1xf32> to vector<8x8xf32>
    %93 = arith.mulf %92, %13#8 : vector<8x8xf32>
    %94 = arith.addf %93, %91 : vector<8x8xf32>
    %c0_57 = arith.constant 0 : index
    %c3_58 = arith.constant 3 : index
    %95 = arith.index_cast %arg1 : i32 to index
    %c0_59 = arith.constant 0 : index
    %c0_60 = arith.constant 0 : index
    %96 = vector.load %arg4[%c0_57, %c3_58, %95, %c0_59, %c0_60] : memref<1x4x2x8x8xbf16, #tpu.memory_space<vmem>>, vector<1x1x1x8x8xbf16>
    %97 = vector.shape_cast %96 : vector<1x1x1x8x8xbf16> to vector<8x8xbf16>
    %c0_61 = arith.constant 0 : index
    %c3_62 = arith.constant 3 : index
    %98 = arith.index_cast %arg1 : i32 to index
    %c0_63 = arith.constant 0 : index
    %c0_64 = arith.constant 0 : index
    %99 = vector.load %arg5[%c0_61, %c3_62, %98, %c0_63, %c0_64] : memref<1x4x2x8x8xbf16, #tpu.memory_space<vmem>>, vector<1x1x1x8x8xbf16>
    %100 = vector.shape_cast %99 : vector<1x1x1x8x8xbf16> to vector<8x8xbf16>
    %cst_65 = arith.constant dense<0.000000e+00> : vector<8x8xf32>
    %101 = tpu.matmul %7, %97, %cst_65 {dimension_numbers = #tpu.dot_dimension_numbers<[1], [0], [0], [1], [0, 0, 1, 1], [], []>} : vector<8x8xbf16>, vector<8x8xbf16>, vector<8x8xf32> -> vector<8x8xf32>
    %cst_66 = arith.constant -1.000000e+30 : f32
    %102 = vector.broadcast %cst_66 : f32 to vector<8x8xf32>
    %103 = arith.select %16, %101, %102 : vector<8x8xi1>, vector<8x8xf32>
    %cst_67 = arith.constant dense<0xFF800000> : vector<8xf32>
    %104 = vector.multi_reduction <maximumf>, %103, %cst_67 [1] : vector<8x8xf32> to vector<8xf32>
    %105 = vector.shape_cast %104 : vector<8xf32> to vector<8x1xf32>
    %106 = arith.maximumf %13#9, %105 : vector<8x1xf32>
    %107 = arith.subf %13#9, %106 : vector<8x1xf32>
    %108 = math.exp %107 : vector<8x1xf32>
    %109 = vector.broadcast %106 : vector<8x1xf32> to vector<8x8xf32>
    %110 = arith.subf %103, %109 : vector<8x8xf32>
    %111 = math.exp %110 : vector<8x8xf32>
    %112 = arith.mulf %108, %13#10 : vector<8x1xf32>
    %cst_68 = arith.constant dense<0.000000e+00> : vector<8xf32>
    %113 = vector.multi_reduction <add>, %111, %cst_68 [1] : vector<8x8xf32> to vector<8xf32>
    %114 = vector.shape_cast %113 : vector<8xf32> to vector<8x1xf32>
    %115 = arith.addf %112, %114 : vector<8x1xf32>
    %116 = arith.truncf %111 : vector<8x8xf32> to vector<8x8xbf16>
    %cst_69 = arith.constant dense<0.000000e+00> : vector<8x8xf32>
    %117 = tpu.matmul %116, %100, %cst_69 {dimension_numbers = #tpu.dot_dimension_numbers<[1], [0], [0], [1], [0, 0, 1, 1], [], []>} : vector<8x8xbf16>, vector<8x8xbf16>, vector<8x8xf32> -> vector<8x8xf32>
    %118 = vector.broadcast %108 : vector<8x1xf32> to vector<8x8xf32>
    %119 = arith.mulf %118, %13#11 : vector<8x8xf32>
    %120 = arith.addf %119, %117 : vector<8x8xf32>
    %121 = tpu.reciprocal %37 {approx = true} : vector<8x1xf32> -> vector<8x1xf32>
    %122 = vector.broadcast %121 : vector<8x1xf32> to vector<8x8xf32>
    %123 = arith.mulf %42, %122 : vector<8x8xf32>
    %c0_70 = arith.constant 0 : index
    %c0_71 = arith.constant 0 : index
    %124 = vector.load %arg15[%c0_70, %c0_71] : memref<8x32xf32, #tpu.memory_space<vmem>>, vector<8x8xf32>
    tpu.vector_store %arg15[%c0_70, %c0_71], %123 {strides = array<i32>} : memref<8x32xf32, #tpu.memory_space<vmem>>, vector<8x8xf32>,
    %125 = tpu.reciprocal %63 {approx = true} : vector<8x1xf32> -> vector<8x1xf32>
    %126 = vector.broadcast %125 : vector<8x1xf32> to vector<8x8xf32>
    %127 = arith.mulf %68, %126 : vector<8x8xf32>
    %c0_72 = arith.constant 0 : index
    %c8 = arith.constant 8 : index
    %128 = vector.load %arg15[%c0_72, %c8] : memref<8x32xf32, #tpu.memory_space<vmem>>, vector<8x8xf32>
    tpu.vector_store %arg15[%c0_72, %c8], %127 {strides = array<i32>} : memref<8x32xf32, #tpu.memory_space<vmem>>, vector<8x8xf32>,
    %129 = tpu.reciprocal %89 {approx = true} : vector<8x1xf32> -> vector<8x1xf32>
    %130 = vector.broadcast %129 : vector<8x1xf32> to vector<8x8xf32>
    %131 = arith.mulf %94, %130 : vector<8x8xf32>
    %c0_73 = arith.constant 0 : index
    %c16 = arith.constant 16 : index
    %132 = vector.load %arg15[%c0_73, %c16] : memref<8x32xf32, #tpu.memory_space<vmem>>, vector<8x8xf32>
    tpu.vector_store %arg15[%c0_73, %c16], %131 {strides = array<i32>} : memref<8x32xf32, #tpu.memory_space<vmem>>, vector<8x8xf32>,
    %133 = tpu.reciprocal %115 {approx = true} : vector<8x1xf32> -> vector<8x1xf32>
    %134 = vector.broadcast %133 : vector<8x1xf32> to vector<8x8xf32>
    %135 = arith.mulf %120, %134 : vector<8x8xf32>
    %c0_74 = arith.constant 0 : index
    %c24 = arith.constant 24 : index
    %136 = vector.load %arg15[%c0_74, %c24] : memref<8x32xf32, #tpu.memory_space<vmem>>, vector<8x8xf32>
    tpu.vector_store %arg15[%c0_74, %c24], %135 {strides = array<i32>} : memref<8x32xf32, #tpu.memory_space<vmem>>, vector<8x8xf32>,
    %c0_75 = arith.constant 0 : index
    %c0_76 = arith.constant 0 : index
    %137 = vector.load %arg15[%c0_75, %c0_76] : memref<8x32xf32, #tpu.memory_space<vmem>>, vector<8x32xf32>
    %138 = arith.truncf %137 : vector<8x32xf32> to vector<8x32xbf16>
    %c0_77 = arith.constant 0 : index
    %c0_78 = arith.constant 0 : index
    %139 = vector.load %arg6[%c0_77, %c0_78] : memref<32x32xbf16, #tpu.memory_space<vmem>>, vector<32x32xbf16>
    %cst_79 = arith.constant dense<0.000000e+00> : vector<8x32xf32>
    %140 = tpu.matmul %138, %139, %cst_79 {dimension_numbers = #tpu.dot_dimension_numbers<[1], [0], [0], [1], [0, 0, 1, 1], [], []>} : vector<8x32xbf16>, vector<32x32xbf16>, vector<8x32xf32> -> vector<8x32xf32>
    %c0_80 = arith.constant 0 : index
    %c0_81 = arith.constant 0 : index
    %141 = vector.load %arg7[%c0_80, %c0_81] : memref<1x32xf32, #tpu.memory_space<vmem>>, vector<1x32xf32>
    %142 = vector.broadcast %141 : vector<1x32xf32> to vector<8x32xf32>
    %143 = arith.addf %140, %142 : vector<8x32xf32>
    %c0_82 = arith.constant 0 : index
    %c0_83 = arith.constant 0 : index
    %c0_84 = arith.constant 0 : index
    %144 = vector.load %arg2[%c0_82, %c0_83, %c0_84] : memref<1x8x32xf32, #tpu.memory_space<vmem>>, vector<1x8x32xf32>
    %145 = vector.shape_cast %144 : vector<1x8x32xf32> to vector<8x32xf32>
    %146 = arith.addf %145, %143 : vector<8x32xf32>
    %c0_85 = arith.constant 0 : index
    %c0_86 = arith.constant 0 : index
    %147 = vector.load %arg8[%c0_85, %c0_86] : memref<1x32xf32, #tpu.memory_space<vmem>>, vector<1x32xf32>
    %c0_87 = arith.constant 0 : index
    %c0_88 = arith.constant 0 : index
    %148 = vector.load %arg9[%c0_87, %c0_88] : memref<1x32xf32, #tpu.memory_space<vmem>>, vector<1x32xf32>
    %cst_89 = arith.constant dense<0.000000e+00> : vector<8xf32>
    %149 = vector.multi_reduction <add>, %146, %cst_89 [1] : vector<8x32xf32> to vector<8xf32>
    %150 = vector.shape_cast %149 : vector<8xf32> to vector<8x1xf32>
    %cst_90 = arith.constant 3.200000e+01 : f32
    %151 = vector.broadcast %cst_90 : f32 to vector<8x1xf32>
    %152 = arith.divf %150, %151 : vector<8x1xf32>
    %153 = vector.broadcast %152 : vector<8x1xf32> to vector<8x32xf32>
    %154 = arith.subf %146, %153 : vector<8x32xf32>
    %155 = arith.mulf %154, %154 : vector<8x32xf32>
    %cst_91 = arith.constant dense<0.000000e+00> : vector<8xf32>
    %156 = vector.multi_reduction <add>, %155, %cst_91 [1] : vector<8x32xf32> to vector<8xf32>
    %157 = vector.shape_cast %156 : vector<8xf32> to vector<8x1xf32>
    %cst_92 = arith.constant 3.200000e+01 : f32
    %158 = vector.broadcast %cst_92 : f32 to vector<8x1xf32>
    %159 = arith.divf %157, %158 : vector<8x1xf32>
    %160 = vector.broadcast %152 : vector<8x1xf32> to vector<8x32xf32>
    %161 = arith.subf %146, %160 : vector<8x32xf32>
    %cst_93 = arith.constant 9.99999974E-6 : f32
    %162 = vector.broadcast %cst_93 : f32 to vector<8x1xf32>
    %163 = arith.addf %159, %162 : vector<8x1xf32>
    %164 = math.rsqrt %163 : vector<8x1xf32>
    %165 = vector.broadcast %164 : vector<8x1xf32> to vector<8x32xf32>
    %166 = arith.mulf %161, %165 : vector<8x32xf32>
    %167 = vector.broadcast %147 : vector<1x32xf32> to vector<8x32xf32>
    %168 = arith.mulf %166, %167 : vector<8x32xf32>
    %169 = vector.broadcast %148 : vector<1x32xf32> to vector<8x32xf32>
    %170 = arith.addf %168, %169 : vector<8x32xf32>
    %171 = arith.truncf %170 : vector<8x32xf32> to vector<8x32xbf16>
    %cst_94 = arith.constant 0.000000e+00 : f32
    %172 = vector.broadcast %cst_94 : f32 to vector<8x32xf32>
    %c0_95 = arith.constant 0 : index
    %c0_96 = arith.constant 0 : index
    %173 = vector.load %arg10[%c0_95, %c0_96] : memref<32x128xbf16, #tpu.memory_space<vmem>>, vector<32x128xbf16>
    %cst_97 = arith.constant dense<0.000000e+00> : vector<8x128xf32>
    %174 = tpu.matmul %171, %173, %cst_97 {dimension_numbers = #tpu.dot_dimension_numbers<[1], [0], [0], [1], [0, 0, 1, 1], [], []>} : vector<8x32xbf16>, vector<32x128xbf16>, vector<8x128xf32> -> vector<8x128xf32>
    %c0_98 = arith.constant 0 : index
    %c0_99 = arith.constant 0 : index
    %175 = vector.load %arg11[%c0_98, %c0_99] : memref<1x128xf32, #tpu.memory_space<vmem>>, vector<1x128xf32>
    %176 = vector.broadcast %175 : vector<1x128xf32> to vector<8x128xf32>
    %177 = arith.addf %174, %176 : vector<8x128xf32>
    %cst_100 = arith.constant 5.000000e-01 : f32
    %178 = vector.broadcast %cst_100 : f32 to vector<8x128xf32>
    %179 = arith.mulf %178, %177 : vector<8x128xf32>
    %cst_101 = arith.constant 4.471500e-02 : f32
    %180 = vector.broadcast %cst_101 : f32 to vector<8x128xf32>
    %181 = arith.mulf %180, %177 : vector<8x128xf32>
    %182 = arith.mulf %181, %177 : vector<8x128xf32>
    %183 = arith.mulf %182, %177 : vector<8x128xf32>
    %184 = arith.addf %177, %183 : vector<8x128xf32>
    %cst_102 = arith.constant 0.797884583 : f32
    %185 = vector.broadcast %cst_102 : f32 to vector<8x128xf32>
    %186 = arith.mulf %185, %184 : vector<8x128xf32>
    %187 = math.tanh %186 : vector<8x128xf32>
    %cst_103 = arith.constant 1.000000e+00 : f32
    %188 = vector.broadcast %cst_103 : f32 to vector<8x128xf32>
    %189 = arith.addf %188, %187 : vector<8x128xf32>
    %190 = arith.mulf %179, %189 : vector<8x128xf32>
    %191 = arith.truncf %190 : vector<8x128xf32> to vector<8x128xbf16>
    %c0_104 = arith.constant 0 : index
    %c0_105 = arith.constant 0 : index
    %192 = vector.load %arg12[%c0_104, %c0_105] : memref<128x32xbf16, #tpu.memory_space<vmem>>, vector<128x32xbf16>
    %cst_106 = arith.constant dense<0.000000e+00> : vector<8x32xf32>
    %193 = tpu.matmul %191, %192, %cst_106 {dimension_numbers = #tpu.dot_dimension_numbers<[1], [0], [0], [1], [0, 0, 1, 1], [], []>} : vector<8x128xbf16>, vector<128x32xbf16>, vector<8x32xf32> -> vector<8x32xf32>
    %194 = arith.addf %172, %193 : vector<8x32xf32>
    %195 = arith.addf %146, %194 : vector<8x32xf32>
    %c0_107 = arith.constant 0 : index
    %c0_108 = arith.constant 0 : index
    %196 = vector.load %arg13[%c0_107, %c0_108] : memref<1x32xf32, #tpu.memory_space<vmem>>, vector<1x32xf32>
    %197 = vector.broadcast %196 : vector<1x32xf32> to vector<8x32xf32>
    %198 = arith.addf %195, %197 : vector<8x32xf32>
    %c0_109 = arith.constant 0 : index
    %c0_110 = arith.constant 0 : index
    %c0_111 = arith.constant 0 : index
    %199 = vector.load %arg14[%c0_109, %c0_110, %c0_111] : memref<1x8x32xf32, #tpu.memory_space<vmem>>, vector<1x8x32xf32>
    %200 = vector.shape_cast %199 : vector<1x8x32xf32> to vector<8x32xf32>
    %201 = vector.shape_cast %198 : vector<8x32xf32> to vector<1x8x32xf32>
    tpu.vector_store %arg14[%c0_109, %c0_110, %c0_111], %201 {strides = array<i32>} : memref<1x8x32xf32, #tpu.memory_space<vmem>>, vector<1x8x32xf32>,
    return
  }
  func.func @transform_0(%arg0: i32, %arg1: i32) -> (i32, i32, i32) {
    %c0_i32 = arith.constant 0 : i32
    %c0_i32_0 = arith.constant 0 : i32
    return %arg0, %arg1, %c0_i32 : i32, i32, i32
  }
  func.func @transform_1(%arg0: i32, %arg1: i32) -> (i32, i32, i32, i32, i32) {
    %c0_i32 = arith.constant 0 : i32
    %c0_i32_0 = arith.constant 0 : i32
    %c0_i32_1 = arith.constant 0 : i32
    %c0_i32_2 = arith.constant 0 : i32
    return %arg0, %c0_i32, %arg1, %c0_i32_0, %c0_i32_1 : i32, i32, i32, i32, i32
  }
  func.func @transform_2(%arg0: i32, %arg1: i32) -> (i32, i32, i32, i32, i32) {
    %c0_i32 = arith.constant 0 : i32
    %c0_i32_0 = arith.constant 0 : i32
    %c0_i32_1 = arith.constant 0 : i32
    %c0_i32_2 = arith.constant 0 : i32
    %c0_i32_3 = arith.constant 0 : i32
    return %arg0, %c0_i32, %c0_i32_0, %c0_i32_1, %c0_i32_2 : i32, i32, i32, i32, i32
  }
  func.func @transform_3(%arg0: i32, %arg1: i32) -> (i32, i32, i32, i32, i32) {
    %c0_i32 = arith.constant 0 : i32
    %c0_i32_0 = arith.constant 0 : i32
    %c0_i32_1 = arith.constant 0 : i32
    %c0_i32_2 = arith.constant 0 : i32
    %c0_i32_3 = arith.constant 0 : i32
    return %arg0, %c0_i32, %c0_i32_0, %c0_i32_1, %c0_i32_2 : i32, i32, i32, i32, i32
  }
  func.func @transform_4(%arg0: i32, %arg1: i32) -> (i32, i32) {
    %c0_i32 = arith.constant 0 : i32
    %c0_i32_0 = arith.constant 0 : i32
    %c0_i32_1 = arith.constant 0 : i32
    return %c0_i32, %c0_i32_0 : i32, i32
  }
  func.func @transform_5(%arg0: i32, %arg1: i32) -> (i32, i32) {
    %c0_i32 = arith.constant 0 : i32
    %c0_i32_0 = arith.constant 0 : i32
    %c0_i32_1 = arith.constant 0 : i32
    return %c0_i32, %c0_i32_0 : i32, i32
  }
  func.func @transform_6(%arg0: i32, %arg1: i32) -> (i32, i32) {
    %c0_i32 = arith.constant 0 : i32
    %c0_i32_0 = arith.constant 0 : i32
    %c0_i32_1 = arith.constant 0 : i32
    return %c0_i32, %c0_i32_0 : i32, i32
  }
  func.func @transform_7(%arg0: i32, %arg1: i32) -> (i32, i32) {
    %c0_i32 = arith.constant 0 : i32
    %c0_i32_0 = arith.constant 0 : i32
    %c0_i32_1 = arith.constant 0 : i32
    return %c0_i32, %c0_i32_0 : i32, i32
  }
  func.func @transform_8(%arg0: i32, %arg1: i32) -> (i32, i32) {
    %c0_i32 = arith.constant 0 : i32
    %c0_i32_0 = arith.constant 0 : i32
    %c0_i32_1 = arith.constant 0 : i32
    return %c0_i32, %c0_i32_0 : i32, i32
  }
  func.func @transform_9(%arg0: i32, %arg1: i32) -> (i32, i32) {
    %c0_i32 = arith.constant 0 : i32
    %c0_i32_0 = arith.constant 0 : i32
    %c0_i32_1 = arith.constant 0 : i32
    return %c0_i32, %c0_i32_0 : i32, i32
  }
  func.func @transform_10(%arg0: i32, %arg1: i32) -> (i32, i32) {
    %c0_i32 = arith.constant 0 : i32
    %c0_i32_0 = arith.constant 0 : i32
    %c0_i32_1 = arith.constant 0 : i32
    return %c0_i32, %c0_i32_0 : i32, i32
  }
  func.func @transform_11(%arg0: i32, %arg1: i32) -> (i32, i32) {
    %c0_i32 = arith.constant 0 : i32
    %c0_i32_0 = arith.constant 0 : i32
    %c0_i32_1 = arith.constant 0 : i32
    return %c0_i32, %c0_i32_0 : i32, i32
  }
  func.func @transform_12(%arg0: i32, %arg1: i32) -> (i32, i32, i32) {
    %c0_i32 = arith.constant 0 : i32
    %c0_i32_0 = arith.constant 0 : i32
    return %arg0, %arg1, %c0_i32 : i32, i32, i32
  }
}

module attributes {stable_mosaic.version = 11 : i64} {
  func.func @qkv_kernel(%arg0: i32, %arg1: i32, %arg2: memref<1x8x32xf32, #tpu.memory_space<vmem>>, %arg3: memref<1x32xf32, #tpu.memory_space<vmem>>, %arg4: memref<1x32xf32, #tpu.memory_space<vmem>>, %arg5: memref<32x96xbf16, #tpu.memory_space<vmem>>, %arg6: memref<1x96xf32, #tpu.memory_space<vmem>>, %arg7: memref<1x4x1x8x8xbf16, #tpu.memory_space<vmem>>, %arg8: memref<1x4x1x8x8xbf16, #tpu.memory_space<vmem>>, %arg9: memref<1x4x1x8x8xbf16, #tpu.memory_space<vmem>>) attributes {dimension_semantics = [#tpu.dimension_semantics<parallel>, #tpu.dimension_semantics<parallel>], iteration_bounds = array<i64: 2, 2>, scalar_prefetch = 0 : i64, scratch_operands = 0 : i64, tpu.core_type = #tpu.core_type<tc>, window_params = [{transform_indices = @transform_0, window_bounds = array<i64: 1, 8, 32>}, {pipeline_mode = #tpu.pipeline_mode<synchronous>, transform_indices = @transform_1, window_bounds = array<i64: 1, 32>}, {pipeline_mode = #tpu.pipeline_mode<synchronous>, transform_indices = @transform_2, window_bounds = array<i64: 1, 32>}, {pipeline_mode = #tpu.pipeline_mode<synchronous>, transform_indices = @transform_3, window_bounds = array<i64: 32, 96>}, {pipeline_mode = #tpu.pipeline_mode<synchronous>, transform_indices = @transform_4, window_bounds = array<i64: 1, 96>}, {transform_indices = @transform_5, window_bounds = array<i64: 1, 4, 1, 8, 8>}, {transform_indices = @transform_6, window_bounds = array<i64: 1, 4, 1, 8, 8>}, {transform_indices = @transform_7, window_bounds = array<i64: 1, 4, 1, 8, 8>}]} {
    %c0 = arith.constant 0 : index
    %c0_0 = arith.constant 0 : index
    %c0_1 = arith.constant 0 : index
    %0 = vector.load %arg2[%c0, %c0_0, %c0_1] : memref<1x8x32xf32, #tpu.memory_space<vmem>>, vector<1x8x32xf32>
    %1 = vector.shape_cast %0 : vector<1x8x32xf32> to vector<8x32xf32>
    %c0_2 = arith.constant 0 : index
    %c0_3 = arith.constant 0 : index
    %2 = vector.load %arg3[%c0_2, %c0_3] : memref<1x32xf32, #tpu.memory_space<vmem>>, vector<1x32xf32>
    %c0_4 = arith.constant 0 : index
    %c0_5 = arith.constant 0 : index
    %3 = vector.load %arg4[%c0_4, %c0_5] : memref<1x32xf32, #tpu.memory_space<vmem>>, vector<1x32xf32>
    %cst = arith.constant dense<0.000000e+00> : vector<8xf32>
    %4 = vector.multi_reduction <add>, %1, %cst [1] : vector<8x32xf32> to vector<8xf32>
    %5 = vector.shape_cast %4 : vector<8xf32> to vector<8x1xf32>
    %cst_6 = arith.constant 3.200000e+01 : f32
    %6 = vector.broadcast %cst_6 : f32 to vector<8x1xf32>
    %7 = arith.divf %5, %6 : vector<8x1xf32>
    %8 = vector.broadcast %7 : vector<8x1xf32> to vector<8x32xf32>
    %9 = arith.subf %1, %8 : vector<8x32xf32>
    %10 = arith.mulf %9, %9 : vector<8x32xf32>
    %cst_7 = arith.constant dense<0.000000e+00> : vector<8xf32>
    %11 = vector.multi_reduction <add>, %10, %cst_7 [1] : vector<8x32xf32> to vector<8xf32>
    %12 = vector.shape_cast %11 : vector<8xf32> to vector<8x1xf32>
    %cst_8 = arith.constant 3.200000e+01 : f32
    %13 = vector.broadcast %cst_8 : f32 to vector<8x1xf32>
    %14 = arith.divf %12, %13 : vector<8x1xf32>
    %15 = vector.broadcast %7 : vector<8x1xf32> to vector<8x32xf32>
    %16 = arith.subf %1, %15 : vector<8x32xf32>
    %cst_9 = arith.constant 9.99999974E-6 : f32
    %17 = vector.broadcast %cst_9 : f32 to vector<8x1xf32>
    %18 = arith.addf %14, %17 : vector<8x1xf32>
    %19 = math.rsqrt %18 : vector<8x1xf32>
    %20 = vector.broadcast %19 : vector<8x1xf32> to vector<8x32xf32>
    %21 = arith.mulf %16, %20 : vector<8x32xf32>
    %22 = vector.broadcast %2 : vector<1x32xf32> to vector<8x32xf32>
    %23 = arith.mulf %21, %22 : vector<8x32xf32>
    %24 = vector.broadcast %3 : vector<1x32xf32> to vector<8x32xf32>
    %25 = arith.addf %23, %24 : vector<8x32xf32>
    %26 = arith.truncf %25 : vector<8x32xf32> to vector<8x32xbf16>
    %c0_10 = arith.constant 0 : index
    %c0_11 = arith.constant 0 : index
    %27 = vector.load %arg5[%c0_10, %c0_11] : memref<32x96xbf16, #tpu.memory_space<vmem>>, vector<32x96xbf16>
    %cst_12 = arith.constant dense<0.000000e+00> : vector<8x96xf32>
    %28 = tpu.matmul %26, %27, %cst_12 {dimension_numbers = #tpu.dot_dimension_numbers<[1], [0], [0], [1], [0, 0, 1, 1], [], []>} : vector<8x32xbf16>, vector<32x96xbf16>, vector<8x96xf32> -> vector<8x96xf32>
    %c0_13 = arith.constant 0 : index
    %c0_14 = arith.constant 0 : index
    %29 = vector.load %arg6[%c0_13, %c0_14] : memref<1x96xf32, #tpu.memory_space<vmem>>, vector<1x96xf32>
    %30 = vector.broadcast %29 : vector<1x96xf32> to vector<8x96xf32>
    %31 = arith.addf %28, %30 : vector<8x96xf32>
    %32 = vector.extract_strided_slice %31 {offsets = [0, 0], sizes = [8, 32], strides = [1, 1]} : vector<8x96xf32> to vector<8x32xf32>
    %cst_15 = arith.constant 0.353553385 : f32
    %33 = vector.broadcast %cst_15 : f32 to vector<8x32xf32>
    %34 = arith.mulf %32, %33 : vector<8x32xf32>
    %35 = arith.truncf %34 : vector<8x32xf32> to vector<8x32xbf16>
    %36 = vector.extract_strided_slice %31 {offsets = [0, 64], sizes = [8, 32], strides = [1, 1]} : vector<8x96xf32> to vector<8x32xf32>
    %37 = arith.truncf %36 : vector<8x32xf32> to vector<8x32xbf16>
    %38 = vector.extract_strided_slice %31 {offsets = [0, 32], sizes = [8, 32], strides = [1, 1]} : vector<8x96xf32> to vector<8x32xf32>
    %39 = tpu.transpose %38, [1, 0] : vector<8x32xf32> -> vector<32x8xf32>
    %40 = arith.truncf %39 : vector<32x8xf32> to vector<32x8xbf16>
    %41 = vector.extract_strided_slice %35 {offsets = [0, 0], sizes = [8, 8], strides = [1, 1]} : vector<8x32xbf16> to vector<8x8xbf16>
    %c0_16 = arith.constant 0 : index
    %c0_17 = arith.constant 0 : index
    %c0_18 = arith.constant 0 : index
    %c0_19 = arith.constant 0 : index
    %c0_20 = arith.constant 0 : index
    %42 = vector.load %arg7[%c0_16, %c0_17, %c0_18, %c0_19, %c0_20] : memref<1x4x1x8x8xbf16, #tpu.memory_space<vmem>>, vector<1x1x1x8x8xbf16>
    %43 = vector.shape_cast %42 : vector<1x1x1x8x8xbf16> to vector<8x8xbf16>
    %44 = vector.shape_cast %41 : vector<8x8xbf16> to vector<1x1x1x8x8xbf16>
    tpu.vector_store %arg7[%c0_16, %c0_17, %c0_18, %c0_19, %c0_20], %44 {strides = array<i32>} : memref<1x4x1x8x8xbf16, #tpu.memory_space<vmem>>, vector<1x1x1x8x8xbf16>,
    %45 = vector.extract_strided_slice %37 {offsets = [0, 0], sizes = [8, 8], strides = [1, 1]} : vector<8x32xbf16> to vector<8x8xbf16>
    %c0_21 = arith.constant 0 : index
    %c0_22 = arith.constant 0 : index
    %c0_23 = arith.constant 0 : index
    %c0_24 = arith.constant 0 : index
    %c0_25 = arith.constant 0 : index
    %46 = vector.load %arg9[%c0_21, %c0_22, %c0_23, %c0_24, %c0_25] : memref<1x4x1x8x8xbf16, #tpu.memory_space<vmem>>, vector<1x1x1x8x8xbf16>
    %47 = vector.shape_cast %46 : vector<1x1x1x8x8xbf16> to vector<8x8xbf16>
    %48 = vector.shape_cast %45 : vector<8x8xbf16> to vector<1x1x1x8x8xbf16>
    tpu.vector_store %arg9[%c0_21, %c0_22, %c0_23, %c0_24, %c0_25], %48 {strides = array<i32>} : memref<1x4x1x8x8xbf16, #tpu.memory_space<vmem>>, vector<1x1x1x8x8xbf16>,
    %49 = vector.extract_strided_slice %40 {offsets = [0, 0], sizes = [8, 8], strides = [1, 1]} : vector<32x8xbf16> to vector<8x8xbf16>
    %c0_26 = arith.constant 0 : index
    %c0_27 = arith.constant 0 : index
    %c0_28 = arith.constant 0 : index
    %c0_29 = arith.constant 0 : index
    %c0_30 = arith.constant 0 : index
    %50 = vector.load %arg8[%c0_26, %c0_27, %c0_28, %c0_29, %c0_30] : memref<1x4x1x8x8xbf16, #tpu.memory_space<vmem>>, vector<1x1x1x8x8xbf16>
    %51 = vector.shape_cast %50 : vector<1x1x1x8x8xbf16> to vector<8x8xbf16>
    %52 = vector.shape_cast %49 : vector<8x8xbf16> to vector<1x1x1x8x8xbf16>
    tpu.vector_store %arg8[%c0_26, %c0_27, %c0_28, %c0_29, %c0_30], %52 {strides = array<i32>} : memref<1x4x1x8x8xbf16, #tpu.memory_space<vmem>>, vector<1x1x1x8x8xbf16>,
    %53 = vector.extract_strided_slice %35 {offsets = [0, 8], sizes = [8, 8], strides = [1, 1]} : vector<8x32xbf16> to vector<8x8xbf16>
    %c0_31 = arith.constant 0 : index
    %c1 = arith.constant 1 : index
    %c0_32 = arith.constant 0 : index
    %c0_33 = arith.constant 0 : index
    %c0_34 = arith.constant 0 : index
    %54 = vector.load %arg7[%c0_31, %c1, %c0_32, %c0_33, %c0_34] : memref<1x4x1x8x8xbf16, #tpu.memory_space<vmem>>, vector<1x1x1x8x8xbf16>
    %55 = vector.shape_cast %54 : vector<1x1x1x8x8xbf16> to vector<8x8xbf16>
    %56 = vector.shape_cast %53 : vector<8x8xbf16> to vector<1x1x1x8x8xbf16>
    tpu.vector_store %arg7[%c0_31, %c1, %c0_32, %c0_33, %c0_34], %56 {strides = array<i32>} : memref<1x4x1x8x8xbf16, #tpu.memory_space<vmem>>, vector<1x1x1x8x8xbf16>,
    %57 = vector.extract_strided_slice %37 {offsets = [0, 8], sizes = [8, 8], strides = [1, 1]} : vector<8x32xbf16> to vector<8x8xbf16>
    %c0_35 = arith.constant 0 : index
    %c1_36 = arith.constant 1 : index
    %c0_37 = arith.constant 0 : index
    %c0_38 = arith.constant 0 : index
    %c0_39 = arith.constant 0 : index
    %58 = vector.load %arg9[%c0_35, %c1_36, %c0_37, %c0_38, %c0_39] : memref<1x4x1x8x8xbf16, #tpu.memory_space<vmem>>, vector<1x1x1x8x8xbf16>
    %59 = vector.shape_cast %58 : vector<1x1x1x8x8xbf16> to vector<8x8xbf16>
    %60 = vector.shape_cast %57 : vector<8x8xbf16> to vector<1x1x1x8x8xbf16>
    tpu.vector_store %arg9[%c0_35, %c1_36, %c0_37, %c0_38, %c0_39], %60 {strides = array<i32>} : memref<1x4x1x8x8xbf16, #tpu.memory_space<vmem>>, vector<1x1x1x8x8xbf16>,
    %61 = vector.extract_strided_slice %40 {offsets = [8, 0], sizes = [8, 8], strides = [1, 1]} : vector<32x8xbf16> to vector<8x8xbf16>
    %c0_40 = arith.constant 0 : index
    %c1_41 = arith.constant 1 : index
    %c0_42 = arith.constant 0 : index
    %c0_43 = arith.constant 0 : index
    %c0_44 = arith.constant 0 : index
    %62 = vector.load %arg8[%c0_40, %c1_41, %c0_42, %c0_43, %c0_44] : memref<1x4x1x8x8xbf16, #tpu.memory_space<vmem>>, vector<1x1x1x8x8xbf16>
    %63 = vector.shape_cast %62 : vector<1x1x1x8x8xbf16> to vector<8x8xbf16>
    %64 = vector.shape_cast %61 : vector<8x8xbf16> to vector<1x1x1x8x8xbf16>
    tpu.vector_store %arg8[%c0_40, %c1_41, %c0_42, %c0_43, %c0_44], %64 {strides = array<i32>} : memref<1x4x1x8x8xbf16, #tpu.memory_space<vmem>>, vector<1x1x1x8x8xbf16>,
    %65 = vector.extract_strided_slice %35 {offsets = [0, 16], sizes = [8, 8], strides = [1, 1]} : vector<8x32xbf16> to vector<8x8xbf16>
    %c0_45 = arith.constant 0 : index
    %c2 = arith.constant 2 : index
    %c0_46 = arith.constant 0 : index
    %c0_47 = arith.constant 0 : index
    %c0_48 = arith.constant 0 : index
    %66 = vector.load %arg7[%c0_45, %c2, %c0_46, %c0_47, %c0_48] : memref<1x4x1x8x8xbf16, #tpu.memory_space<vmem>>, vector<1x1x1x8x8xbf16>
    %67 = vector.shape_cast %66 : vector<1x1x1x8x8xbf16> to vector<8x8xbf16>
    %68 = vector.shape_cast %65 : vector<8x8xbf16> to vector<1x1x1x8x8xbf16>
    tpu.vector_store %arg7[%c0_45, %c2, %c0_46, %c0_47, %c0_48], %68 {strides = array<i32>} : memref<1x4x1x8x8xbf16, #tpu.memory_space<vmem>>, vector<1x1x1x8x8xbf16>,
    %69 = vector.extract_strided_slice %37 {offsets = [0, 16], sizes = [8, 8], strides = [1, 1]} : vector<8x32xbf16> to vector<8x8xbf16>
    %c0_49 = arith.constant 0 : index
    %c2_50 = arith.constant 2 : index
    %c0_51 = arith.constant 0 : index
    %c0_52 = arith.constant 0 : index
    %c0_53 = arith.constant 0 : index
    %70 = vector.load %arg9[%c0_49, %c2_50, %c0_51, %c0_52, %c0_53] : memref<1x4x1x8x8xbf16, #tpu.memory_space<vmem>>, vector<1x1x1x8x8xbf16>
    %71 = vector.shape_cast %70 : vector<1x1x1x8x8xbf16> to vector<8x8xbf16>
    %72 = vector.shape_cast %69 : vector<8x8xbf16> to vector<1x1x1x8x8xbf16>
    tpu.vector_store %arg9[%c0_49, %c2_50, %c0_51, %c0_52, %c0_53], %72 {strides = array<i32>} : memref<1x4x1x8x8xbf16, #tpu.memory_space<vmem>>, vector<1x1x1x8x8xbf16>,
    %73 = vector.extract_strided_slice %40 {offsets = [16, 0], sizes = [8, 8], strides = [1, 1]} : vector<32x8xbf16> to vector<8x8xbf16>
    %c0_54 = arith.constant 0 : index
    %c2_55 = arith.constant 2 : index
    %c0_56 = arith.constant 0 : index
    %c0_57 = arith.constant 0 : index
    %c0_58 = arith.constant 0 : index
    %74 = vector.load %arg8[%c0_54, %c2_55, %c0_56, %c0_57, %c0_58] : memref<1x4x1x8x8xbf16, #tpu.memory_space<vmem>>, vector<1x1x1x8x8xbf16>
    %75 = vector.shape_cast %74 : vector<1x1x1x8x8xbf16> to vector<8x8xbf16>
    %76 = vector.shape_cast %73 : vector<8x8xbf16> to vector<1x1x1x8x8xbf16>
    tpu.vector_store %arg8[%c0_54, %c2_55, %c0_56, %c0_57, %c0_58], %76 {strides = array<i32>} : memref<1x4x1x8x8xbf16, #tpu.memory_space<vmem>>, vector<1x1x1x8x8xbf16>,
    %77 = vector.extract_strided_slice %35 {offsets = [0, 24], sizes = [8, 8], strides = [1, 1]} : vector<8x32xbf16> to vector<8x8xbf16>
    %c0_59 = arith.constant 0 : index
    %c3 = arith.constant 3 : index
    %c0_60 = arith.constant 0 : index
    %c0_61 = arith.constant 0 : index
    %c0_62 = arith.constant 0 : index
    %78 = vector.load %arg7[%c0_59, %c3, %c0_60, %c0_61, %c0_62] : memref<1x4x1x8x8xbf16, #tpu.memory_space<vmem>>, vector<1x1x1x8x8xbf16>
    %79 = vector.shape_cast %78 : vector<1x1x1x8x8xbf16> to vector<8x8xbf16>
    %80 = vector.shape_cast %77 : vector<8x8xbf16> to vector<1x1x1x8x8xbf16>
    tpu.vector_store %arg7[%c0_59, %c3, %c0_60, %c0_61, %c0_62], %80 {strides = array<i32>} : memref<1x4x1x8x8xbf16, #tpu.memory_space<vmem>>, vector<1x1x1x8x8xbf16>,
    %81 = vector.extract_strided_slice %37 {offsets = [0, 24], sizes = [8, 8], strides = [1, 1]} : vector<8x32xbf16> to vector<8x8xbf16>
    %c0_63 = arith.constant 0 : index
    %c3_64 = arith.constant 3 : index
    %c0_65 = arith.constant 0 : index
    %c0_66 = arith.constant 0 : index
    %c0_67 = arith.constant 0 : index
    %82 = vector.load %arg9[%c0_63, %c3_64, %c0_65, %c0_66, %c0_67] : memref<1x4x1x8x8xbf16, #tpu.memory_space<vmem>>, vector<1x1x1x8x8xbf16>
    %83 = vector.shape_cast %82 : vector<1x1x1x8x8xbf16> to vector<8x8xbf16>
    %84 = vector.shape_cast %81 : vector<8x8xbf16> to vector<1x1x1x8x8xbf16>
    tpu.vector_store %arg9[%c0_63, %c3_64, %c0_65, %c0_66, %c0_67], %84 {strides = array<i32>} : memref<1x4x1x8x8xbf16, #tpu.memory_space<vmem>>, vector<1x1x1x8x8xbf16>,
    %85 = vector.extract_strided_slice %40 {offsets = [24, 0], sizes = [8, 8], strides = [1, 1]} : vector<32x8xbf16> to vector<8x8xbf16>
    %c0_68 = arith.constant 0 : index
    %c3_69 = arith.constant 3 : index
    %c0_70 = arith.constant 0 : index
    %c0_71 = arith.constant 0 : index
    %c0_72 = arith.constant 0 : index
    %86 = vector.load %arg8[%c0_68, %c3_69, %c0_70, %c0_71, %c0_72] : memref<1x4x1x8x8xbf16, #tpu.memory_space<vmem>>, vector<1x1x1x8x8xbf16>
    %87 = vector.shape_cast %86 : vector<1x1x1x8x8xbf16> to vector<8x8xbf16>
    %88 = vector.shape_cast %85 : vector<8x8xbf16> to vector<1x1x1x8x8xbf16>
    tpu.vector_store %arg8[%c0_68, %c3_69, %c0_70, %c0_71, %c0_72], %88 {strides = array<i32>} : memref<1x4x1x8x8xbf16, #tpu.memory_space<vmem>>, vector<1x1x1x8x8xbf16>,
    return
  }
  func.func @transform_0(%arg0: i32, %arg1: i32) -> (i32, i32, i32) {
    %c0_i32 = arith.constant 0 : i32
    %c0_i32_0 = arith.constant 0 : i32
    return %arg0, %arg1, %c0_i32 : i32, i32, i32
  }
  func.func @transform_1(%arg0: i32, %arg1: i32) -> (i32, i32) {
    %c0_i32 = arith.constant 0 : i32
    %c0_i32_0 = arith.constant 0 : i32
    %c0_i32_1 = arith.constant 0 : i32
    return %c0_i32, %c0_i32_0 : i32, i32
  }
  func.func @transform_2(%arg0: i32, %arg1: i32) -> (i32, i32) {
    %c0_i32 = arith.constant 0 : i32
    %c0_i32_0 = arith.constant 0 : i32
    %c0_i32_1 = arith.constant 0 : i32
    return %c0_i32, %c0_i32_0 : i32, i32
  }
  func.func @transform_3(%arg0: i32, %arg1: i32) -> (i32, i32) {
    %c0_i32 = arith.constant 0 : i32
    %c0_i32_0 = arith.constant 0 : i32
    %c0_i32_1 = arith.constant 0 : i32
    return %c0_i32, %c0_i32_0 : i32, i32
  }
  func.func @transform_4(%arg0: i32, %arg1: i32) -> (i32, i32) {
    %c0_i32 = arith.constant 0 : i32
    %c0_i32_0 = arith.constant 0 : i32
    %c0_i32_1 = arith.constant 0 : i32
    return %c0_i32, %c0_i32_0 : i32, i32
  }
  func.func @transform_5(%arg0: i32, %arg1: i32) -> (i32, i32, i32, i32, i32) {
    %c0_i32 = arith.constant 0 : i32
    %c0_i32_0 = arith.constant 0 : i32
    %c0_i32_1 = arith.constant 0 : i32
    %c0_i32_2 = arith.constant 0 : i32
    return %arg0, %c0_i32, %arg1, %c0_i32_0, %c0_i32_1 : i32, i32, i32, i32, i32
  }
  func.func @transform_6(%arg0: i32, %arg1: i32) -> (i32, i32, i32, i32, i32) {
    %c0_i32 = arith.constant 0 : i32
    %c0_i32_0 = arith.constant 0 : i32
    %c0_i32_1 = arith.constant 0 : i32
    %c0_i32_2 = arith.constant 0 : i32
    return %arg0, %c0_i32, %arg1, %c0_i32_0, %c0_i32_1 : i32, i32, i32, i32, i32
  }
  func.func @transform_7(%arg0: i32, %arg1: i32) -> (i32, i32, i32, i32, i32) {
    %c0_i32 = arith.constant 0 : i32
    %c0_i32_0 = arith.constant 0 : i32
    %c0_i32_1 = arith.constant 0 : i32
    %c0_i32_2 = arith.constant 0 : i32
    return %arg0, %c0_i32, %arg1, %c0_i32_0, %c0_i32_1 : i32, i32, i32, i32, i32
  }
}

module attributes {stable_mosaic.version = 11 : i64} {
  func.func @lnf_head_kernel(%arg0: i32, %arg1: i32, %arg2: i32, %arg3: memref<1x16x32xf32, #tpu.memory_space<vmem>>, %arg4: memref<1x32xf32, #tpu.memory_space<vmem>>, %arg5: memref<1x32xf32, #tpu.memory_space<vmem>>, %arg6: memref<32x128xbf16, #tpu.memory_space<vmem>>, %arg7: memref<1x16x128xf32, #tpu.memory_space<vmem>>) attributes {dimension_semantics = [#tpu.dimension_semantics<parallel>, #tpu.dimension_semantics<parallel>, #tpu.dimension_semantics<parallel>], iteration_bounds = array<i64: 2, 1, 1>, scalar_prefetch = 0 : i64, scratch_operands = 0 : i64, tpu.core_type = #tpu.core_type<tc>, window_params = [{transform_indices = @transform_0, window_bounds = array<i64: 1, 16, 32>}, {pipeline_mode = #tpu.pipeline_mode<synchronous>, transform_indices = @transform_1, window_bounds = array<i64: 1, 32>}, {pipeline_mode = #tpu.pipeline_mode<synchronous>, transform_indices = @transform_2, window_bounds = array<i64: 1, 32>}, {transform_indices = @transform_3, window_bounds = array<i64: 32, 128>}, {transform_indices = @transform_4, window_bounds = array<i64: 1, 16, 128>}]} {
    %c0 = arith.constant 0 : index
    %c0_0 = arith.constant 0 : index
    %c0_1 = arith.constant 0 : index
    %0 = vector.load %arg3[%c0, %c0_0, %c0_1] : memref<1x16x32xf32, #tpu.memory_space<vmem>>, vector<1x16x32xf32>
    %1 = vector.shape_cast %0 : vector<1x16x32xf32> to vector<16x32xf32>
    %c0_2 = arith.constant 0 : index
    %c0_3 = arith.constant 0 : index
    %2 = vector.load %arg4[%c0_2, %c0_3] : memref<1x32xf32, #tpu.memory_space<vmem>>, vector<1x32xf32>
    %c0_4 = arith.constant 0 : index
    %c0_5 = arith.constant 0 : index
    %3 = vector.load %arg5[%c0_4, %c0_5] : memref<1x32xf32, #tpu.memory_space<vmem>>, vector<1x32xf32>
    %cst = arith.constant dense<0.000000e+00> : vector<16xf32>
    %4 = vector.multi_reduction <add>, %1, %cst [1] : vector<16x32xf32> to vector<16xf32>
    %5 = vector.shape_cast %4 : vector<16xf32> to vector<16x1xf32>
    %cst_6 = arith.constant 3.200000e+01 : f32
    %6 = vector.broadcast %cst_6 : f32 to vector<16x1xf32>
    %7 = arith.divf %5, %6 : vector<16x1xf32>
    %8 = vector.broadcast %7 : vector<16x1xf32> to vector<16x32xf32>
    %9 = arith.subf %1, %8 : vector<16x32xf32>
    %10 = arith.mulf %9, %9 : vector<16x32xf32>
    %cst_7 = arith.constant dense<0.000000e+00> : vector<16xf32>
    %11 = vector.multi_reduction <add>, %10, %cst_7 [1] : vector<16x32xf32> to vector<16xf32>
    %12 = vector.shape_cast %11 : vector<16xf32> to vector<16x1xf32>
    %cst_8 = arith.constant 3.200000e+01 : f32
    %13 = vector.broadcast %cst_8 : f32 to vector<16x1xf32>
    %14 = arith.divf %12, %13 : vector<16x1xf32>
    %15 = vector.broadcast %7 : vector<16x1xf32> to vector<16x32xf32>
    %16 = arith.subf %1, %15 : vector<16x32xf32>
    %cst_9 = arith.constant 9.99999974E-6 : f32
    %17 = vector.broadcast %cst_9 : f32 to vector<16x1xf32>
    %18 = arith.addf %14, %17 : vector<16x1xf32>
    %19 = math.rsqrt %18 : vector<16x1xf32>
    %20 = vector.broadcast %19 : vector<16x1xf32> to vector<16x32xf32>
    %21 = arith.mulf %16, %20 : vector<16x32xf32>
    %22 = vector.broadcast %2 : vector<1x32xf32> to vector<16x32xf32>
    %23 = arith.mulf %21, %22 : vector<16x32xf32>
    %24 = vector.broadcast %3 : vector<1x32xf32> to vector<16x32xf32>
    %25 = arith.addf %23, %24 : vector<16x32xf32>
    %26 = arith.truncf %25 : vector<16x32xf32> to vector<16x32xbf16>
    %c0_10 = arith.constant 0 : index
    %c0_11 = arith.constant 0 : index
    %27 = vector.load %arg6[%c0_10, %c0_11] : memref<32x128xbf16, #tpu.memory_space<vmem>>, vector<32x128xbf16>
    %cst_12 = arith.constant dense<0.000000e+00> : vector<16x128xf32>
    %28 = tpu.matmul %26, %27, %cst_12 {dimension_numbers = #tpu.dot_dimension_numbers<[1], [0], [0], [1], [0, 0, 1, 1], [], []>} : vector<16x32xbf16>, vector<32x128xbf16>, vector<16x128xf32> -> vector<16x128xf32>
    %c0_13 = arith.constant 0 : index
    %c0_14 = arith.constant 0 : index
    %c0_15 = arith.constant 0 : index
    %29 = vector.load %arg7[%c0_13, %c0_14, %c0_15] : memref<1x16x128xf32, #tpu.memory_space<vmem>>, vector<1x16x128xf32>
    %30 = vector.shape_cast %29 : vector<1x16x128xf32> to vector<16x128xf32>
    %31 = vector.shape_cast %28 : vector<16x128xf32> to vector<1x16x128xf32>
    tpu.vector_store %arg7[%c0_13, %c0_14, %c0_15], %31 {strides = array<i32>} : memref<1x16x128xf32, #tpu.memory_space<vmem>>, vector<1x16x128xf32>,
    return
  }
  func.func @transform_0(%arg0: i32, %arg1: i32, %arg2: i32) -> (i32, i32, i32) {
    %c0_i32 = arith.constant 0 : i32
    %c0_i32_0 = arith.constant 0 : i32
    return %arg0, %arg1, %c0_i32 : i32, i32, i32
  }
  func.func @transform_1(%arg0: i32, %arg1: i32, %arg2: i32) -> (i32, i32) {
    %c0_i32 = arith.constant 0 : i32
    %c0_i32_0 = arith.constant 0 : i32
    %c0_i32_1 = arith.constant 0 : i32
    return %c0_i32, %c0_i32_0 : i32, i32
  }
  func.func @transform_2(%arg0: i32, %arg1: i32, %arg2: i32) -> (i32, i32) {
    %c0_i32 = arith.constant 0 : i32
    %c0_i32_0 = arith.constant 0 : i32
    %c0_i32_1 = arith.constant 0 : i32
    return %c0_i32, %c0_i32_0 : i32, i32
  }
  func.func @transform_3(%arg0: i32, %arg1: i32, %arg2: i32) -> (i32, i32) {
    %c0_i32 = arith.constant 0 : i32
    %c0_i32_0 = arith.constant 0 : i32
    return %c0_i32, %arg2 : i32, i32
  }
  func.func @transform_4(%arg0: i32, %arg1: i32, %arg2: i32) -> (i32, i32, i32) {
    %c0_i32 = arith.constant 0 : i32
    return %arg0, %arg1, %arg2 : i32, i32, i32
  }
}

</mosaic_0001>

<llo_original>
// kernel: tpu_custom_call.1
$region0: #{tpu_custom_call.1}
  #allocation0 [shape = 'u32[]', space=smem, size = 0x4, offset = 0x4, fixed_abs, tag = 'smem constant byte address 0x4 - core index']
  #allocation1 [shape = 'u32[144,128]{1,0:T(1,128)}', space=vmem, size = 0x12000, scoped, tag = 'internal scratch']
  %s0 = inlined_call_operand.hbm [shape: f32[8,128], index: 0, kind: input, shape index: {}]
  %s1 = inlined_call_operand.hbm [shape: f32[8,128], index: 1, kind: output, shape index: {}]
  %s2 = sld [smem:[#allocation0]]
  $region18: #{tpu_custom_call.1} parent=0
    _
  %s4 = ssub.s32 1, %s2
  %s5 = scalar_select 0, %s4, %s2
  $region1: #{tpu_custom_call.1} parent=0
    #allocation2 [shape = 'u8[4096]{0}', space=vmem, size = 0x1000, scoped, tag = 'input window, operand 0, single buffered']
    #allocation3 [shape = 's32[1]{0}', space=sflag, size = 0x4, scoped, tag = 'scoped memory for tpu_custom_call.1']
    #allocation4 [shape = 's32[1]{0}', space=sflag, size = 0x4, scoped, tag = 'scoped memory for tpu_custom_call.1']
    #allocation5 [shape = 'u8[4096]{0}', space=vmem, size = 0x1000, scoped, tag = 'output window, operand 0, single buffered']
    %6 = vsyncpa [#allocation3], 0
    %7 = vsyncpa [#allocation4], 0
    // Predicated region
    $region2: #{tpu_custom_call.1} parent=1 // pred_check
      _
    $region3: #{tpu_custom_call.1} parent=1 // pred_check_branch
      %9 = sbr.rel (0) target = $region5
    $region4: #{tpu_custom_call.1} parent=1 // pred_region
      %s11 = ssub.s32 128, 128
      %12 = vsyncadd [#allocation3], %s11
      %s14 = sshll.u32 [#allocation2], 4
      %s15 = int_to_ptr.vmem [resolvable:$true] %s14
      %17 = dma.hbm_to_vmem [thread:$0]  %s0, 128, %s15, [#allocation3]
    $region5: #{tpu_custom_call.1} parent=1 // pred_fallthru
      _
    // Predicated region
    $region6: #{tpu_custom_call.1} parent=1 // pred_check
      _
    $region7: #{tpu_custom_call.1} parent=1 // pred_check_branch
      %19 = sbr.rel (0) target = $region9
    $region8: #{tpu_custom_call.1} parent=1 // pred_region
      %20 = dma.done [#allocation3], 128
    $region9: #{tpu_custom_call.1} parent=1 // pred_fallthru
      _
    %v21 = vld [vmem:[#allocation2] sm:$0xff]
    %v22 = vadd.f32 %v21, 1.0
    %23 = vst [vmem:[#allocation5] sm:$0xff] %v22
    // Predicated region
    $region10: #{tpu_custom_call.1} parent=1 // pred_check
      _
    $region11: #{tpu_custom_call.1} parent=1 // pred_check_branch
      %25 = sbr.rel (0) target = $region13
    $region12: #{tpu_custom_call.1} parent=1 // pred_region
      %s27 = ssub.s32 128, 128
      %28 = vsyncadd [#allocation4], %s27
      %s30 = sshll.u32 [#allocation5], 4
      %s31 = int_to_ptr.vmem [resolvable:$true] %s30
      %33 = dma.vmem_to_hbm [thread:$0]  %s31, 128, %s1, [#allocation4]
    $region13: #{tpu_custom_call.1} parent=1 // pred_fallthru
      _
    // Predicated region
    $region14: #{tpu_custom_call.1} parent=1 // pred_check
      _
    $region15: #{tpu_custom_call.1} parent=1 // pred_check_branch
      %35 = sbr.rel (0) target = $region17
    $region16: #{tpu_custom_call.1} parent=1 // pred_region
      %36 = dma.done [#allocation4], 128
    $region17: #{tpu_custom_call.1} parent=1 // pred_fallthru
      _
    %37 = vsyncpa [#allocation3], 1
    %38 = vsyncpa [#allocation4], 1

// kernel: transformer_forward.9
$region0: #{transformer_forward.9}
  #allocation0 [shape = 'u32[]', space=smem, size = 0x4, offset = 0x4, fixed_abs, tag = 'smem constant byte address 0x4 - core index']
  #allocation1 [shape = 'u32[144,128]{1,0:T(1,128)}', space=vmem, size = 0x12000, scoped, tag = 'internal scratch']
  %s0 = inlined_call_operand.hbm [shape: f32[2,16,32], index: 0, kind: input, shape index: {}]
  %s1 = inlined_call_operand.hbm [shape: f32[1,32], index: 1, kind: input, shape index: {}]
  %s2 = inlined_call_operand.hbm [shape: f32[1,32], index: 2, kind: input, shape index: {}]
  %s3 = inlined_call_operand.hbm [shape: bf16[32,128], index: 3, kind: input, shape index: {}]
  %s4 = inlined_call_operand.hbm [shape: f32[2,16,128], index: 4, kind: output, shape index: {}]
  %s5 = sld [smem:[#allocation0]]
  $region65: #{transformer_forward.9} parent=0
    _
  %s7 = ssub.s32 1, %s5
  %s8 = scalar_select 0, %s7, %s5
  $region1: #{transformer_forward.9} parent=0
    #allocation2 [shape = 'u8[16384]{0}', space=vmem, size = 0x4000, scoped, tag = 'input window, operand 0']
    #allocation3 [shape = 's32[2]{0}', space=sflag, size = 0x8, scoped, tag = 'scoped memory for transformer_forward.9']
    #allocation4 [shape = 's32[2]{0}', space=sflag, size = 0x8, scoped, tag = 'scoped memory for transformer_forward.9']
    #allocation5 [shape = 'u8[512]{0}', space=vmem, size = 0x400, scoped, tag = 'input window, operand 1, single buffered']
    #allocation6 [shape = 's32[1]{0}', space=sflag, size = 0x4, scoped, tag = 'scoped memory for transformer_forward.9']
    #allocation7 [shape = 'u8[512]{0}', space=vmem, size = 0x400, scoped, tag = 'input window, operand 2, single buffered']
    #allocation8 [shape = 'u8[8192]{0}', space=vmem, size = 0x2000, scoped, tag = 'input window, operand 3, single buffered']
    #allocation9 [shape = 's32[1]{0}', space=sflag, size = 0x4, scoped, tag = 'scoped memory for transformer_forward.9']
    #allocation10 [shape = 'u8[16384]{0}', space=vmem, size = 0x4000, scoped, tag = 'output window, operand 0']
    %9 = vsyncpa [#allocation3], 0
    %s10 = scalar_lea.sflag [#allocation3], 1
    %11 = vsyncpa %s10, 0
    %12 = vsyncpa [#allocation6], 0
    %13 = vsyncpa [#allocation9], 0
    %14 = vsyncpa [#allocation4], 0
    %s15 = scalar_lea.sflag [#allocation4], 1
    %16 = vsyncpa %s15, 0
    loop: start=0, step=1, limit=4
    $region2: #{transformer_forward.9} parent=1 // loop_pre_header
      _
    $region3: #{transformer_forward.9} parent=1 // loop_header
      %s18 = sphi 0, %s22
      %p19 = scmp.ge.s32.totalorder %s18, 4
      %s25 = sphi 0, %s44
      %s26 = sphi 0, %s40
      %s27 = sphi 0, %s36
      %s28 = sphi 0, %s25
      %s29 = sphi 0, %s26
      %s30 = sphi 0, %s27
      %s31 = sphi 0, %s28
      %s32 = sphi 0, %s29
      %s33 = sphi 0, %s30
      %s49 = sphi 0, %s51
      %s52 = sphi 0, %s49
      %s53 = sphi 0, %s52
      %s69 = sphi 0, %s53
      %s73 = sphi 0, %s73
      %s75 = sphi 0, %s73
      %s76 = sphi 0, %s75
      %s90 = sphi 0, %s76
      %s94 = sphi 0, %s94
      %s96 = sphi 0, %s94
      %s97 = sphi 0, %s96
      %s111 = sphi 0, %s97
      %s117 = sphi 0, %s119
      %s120 = sphi 0, %s117
      %s121 = sphi 0, %s120
      %s137 = sphi 0, %s121
      %s147 = sphi 0, %s149
      %s150 = sphi 0, %s147
      %s151 = sphi 0, %s150
      %s167 = sphi 0, %s151
    $region4: #{transformer_forward.9} parent=1 // loop_header_branch
      %21 = sbr.rel (%p19) target = $region8
    $region5: #{transformer_forward.9} parent=1 // loop_body
      %s23 = ssub.s32 %s18, 1
      %s24 = ssub.s32 %s18, 2
      %s34 = sadd.s32 1, %s27
      %p35 = scmp.ge.s32.totalorder %s34, 1
      %s36 = scalar_select %p35, 0, %s34
      %s37 = sadd.s32 1, %s26
      %s38 = scalar_select %p35, %s37, %s26
      %p39 = scmp.ge.s32.totalorder %s38, 1
      %s40 = scalar_select %p39, 0, %s38
      %s41 = sadd.s32 1, %s25
      %s42 = scalar_select %p39, %s41, %s25
      %p43 = scmp.ge.s32.totalorder %s42, 2
      %s44 = scalar_select %p43, 0, %s42
      %s45 = ssub.s32 %s25, %s44
      %s46 = ssub.s32 %s26, %s40
      %s47 = sor.u32 %s45, %s46
      %p48 = scmp.eq.s32.totalorder %s47, 0
      %s50 = sadd.s32 %s49, 1
      %s51 = scalar_select %p48, %s49, %s50
      %p54 = pneg %p48
      %p55 = scmp.eq.s32.totalorder %s18, 1
      %p56 = por %p54, %p55
      %p57 = scmp.ne.s32.totalorder %s49, %s52
      %p58 = scmp.eq.s32.totalorder %s18, 0
      %p59 = por %p57, %p58
      %p60 = scmp.ne.s32.totalorder %s49, %s52
      %p61 = scmp.eq.s32.totalorder %s23, 1
      %p62 = por %p60, %p61
      %p63 = scmp.ne.s32.totalorder %s52, %s53
      %p64 = scmp.eq.s32.totalorder %s23, 0
      %p65 = por %p63, %p64
      %p66 = scmp.ne.s32.totalorder %s52, %s53
      %p67 = scmp.eq.s32.totalorder %s24, 1
      %p68 = por %p66, %p67
      %p70 = scmp.ne.s32.totalorder %s53, %s69
      %p71 = scmp.eq.s32.totalorder %s24, 0
      %p72 = por %p70, %p71
      %s74 = sadd.s32 %s73, 1
      %p77 = scmp.eq.s32.totalorder %s18, 1
      %p78 = scmp.ne.s32.totalorder %s73, %s75
      %p79 = scmp.eq.s32.totalorder %s18, 0
      %p80 = por %p78, %p79
      %p81 = scmp.ne.s32.totalorder %s73, %s75
      %p82 = scmp.eq.s32.totalorder %s23, 1
      %p83 = por %p81, %p82
      %p84 = scmp.ne.s32.totalorder %s75, %s76
      %p85 = scmp.eq.s32.totalorder %s23, 0
      %p86 = por %p84, %p85
      %p87 = scmp.ne.s32.totalorder %s75, %s76
      %p88 = scmp.eq.s32.totalorder %s24, 1
      %p89 = por %p87, %p88
      %p91 = scmp.ne.s32.totalorder %s76, %s90
      %p92 = scmp.eq.s32.totalorder %s24, 0
      %p93 = por %p91, %p92
      %s95 = sadd.s32 %s94, 1
      %p98 = scmp.eq.s32.totalorder %s18, 1
      %p99 = scmp.ne.s32.totalorder %s94, %s96
      %p100 = scmp.eq.s32.totalorder %s18, 0
      %p101 = por %p99, %p100
      %p102 = scmp.ne.s32.totalorder %s94, %s96
      %p103 = scmp.eq.s32.totalorder %s23, 1
      %p104 = por %p102, %p103
      %p105 = scmp.ne.s32.totalorder %s96, %s97
      %p106 = scmp.eq.s32.totalorder %s23, 0
      %p107 = por %p105, %p106
      %p108 = scmp.ne.s32.totalorder %s96, %s97
      %p109 = scmp.eq.s32.totalorder %s24, 1
      %p110 = por %p108, %p109
      %p112 = scmp.ne.s32.totalorder %s97, %s111
      %p113 = scmp.eq.s32.totalorder %s24, 0
      %p114 = por %p112, %p113
      %s115 = ssub.s32 %s27, %s36
      %p116 = scmp.eq.s32.totalorder %s115, 0
      %s118 = sadd.s32 %s117, 1
      %s119 = scalar_select %p116, %s117, %s118
      %p122 = pneg %p116
      %p123 = scmp.eq.s32.totalorder %s18, 1
      %p124 = por %p122, %p123
      %p125 = scmp.ne.s32.totalorder %s117, %s120
      %p126 = scmp.eq.s32.totalorder %s18, 0
      %p127 = por %p125, %p126
      %p128 = scmp.ne.s32.totalorder %s117, %s120
      %p129 = scmp.eq.s32.totalorder %s23, 1
      %p130 = por %p128, %p129
      %p131 = scmp.ne.s32.totalorder %s120, %s121
      %p132 = scmp.eq.s32.totalorder %s23, 0
      %p133 = por %p131, %p132
      %p134 = scmp.ne.s32.totalorder %s120, %s121
      %p135 = scmp.eq.s32.totalorder %s24, 1
      %p136 = por %p134, %p135
      %p138 = scmp.ne.s32.totalorder %s121, %s137
      %p139 = scmp.eq.s32.totalorder %s24, 0
      %p140 = por %p138, %p139
      %s141 = ssub.s32 %s25, %s44
      %s142 = ssub.s32 %s26, %s40
      %s143 = sor.u32 %s141, %s142
      %s144 = ssub.s32 %s27, %s36
      %s145 = sor.u32 %s143, %s144
      %p146 = scmp.eq.s32.totalorder %s145, 0
      %s148 = sadd.s32 %s147, 1
      %s149 = scalar_select %p146, %s147, %s148
      %p152 = pneg %p146
      %p153 = scmp.eq.s32.totalorder %s18, 1
      %p154 = por %p152, %p153
      %p155 = scmp.ne.s32.totalorder %s147, %s150
      %p156 = scmp.eq.s32.totalorder %s18, 0
      %p157 = por %p155, %p156
      %p158 = scmp.ne.s32.totalorder %s147, %s150
      %p159 = scmp.eq.s32.totalorder %s23, 1
      %p160 = por %p158, %p159
      %p161 = scmp.ne.s32.totalorder %s150, %s151
      %p162 = scmp.eq.s32.totalorder %s23, 0
      %p163 = por %p161, %p162
      %p164 = scmp.ne.s32.totalorder %s150, %s151
      %p165 = scmp.eq.s32.totalorder %s24, 1
      %p166 = por %p164, %p165
      %p168 = scmp.ne.s32.totalorder %s151, %s167
      %p169 = scmp.eq.s32.totalorder %s24, 0
      %p170 = por %p168, %p169
      %p171 = scmp.le.s32.totalorder 1, %s18
      %p172 = scmp.lt.s32.totalorder %s18, 3
      %p173 = pnand %p171, %p172
      %p174 = pneg %p173
      // Predicated region
      $region9: #{transformer_forward.9} parent=5 // pred_check
        _
      $region10: #{transformer_forward.9} parent=5 // pred_check_branch
        %176 = sbr.rel (%p173) target = $region12
      $region11: #{transformer_forward.9} parent=5 // pred_region
        %s177 = ssub.s32 %s18, 1
        // Predicated region
        $region13: #{transformer_forward.9} parent=11 // pred_check
          %p178 = pneg %p86
        $region14: #{transformer_forward.9} parent=11 // pred_check_branch
          %180 = sbr.rel (%p178) target = $region16
        $region15: #{transformer_forward.9} parent=11 // pred_region
          %s182 = ssub.s32 16, 16
          %183 = vsyncadd [#allocation6], %s182
          %s185 = sshll.u32 [#allocation5], 4
          %s186 = int_to_ptr.vmem [resolvable:$true] %s185
          %188 = dma.hbm_to_vmem [thread:$0]  %s1, 16, %s186, [#allocation6]
        $region16: #{transformer_forward.9} parent=11 // pred_fallthru
          _
        // Predicated region
        $region17: #{transformer_forward.9} parent=11 // pred_check
          %p189 = pneg %p107
        $region18: #{transformer_forward.9} parent=11 // pred_check_branch
          %191 = sbr.rel (%p189) target = $region20
        $region19: #{transformer_forward.9} parent=11 // pred_region
          %s193 = ssub.s32 16, 16
          %194 = vsyncadd [#allocation6], %s193
          %s196 = sshll.u32 [#allocation7], 4
          %s197 = int_to_ptr.vmem [resolvable:$true] %s196
          %199 = dma.hbm_to_vmem [thread:$0]  %s2, 16, %s197, [#allocation6]
        $region20: #{transformer_forward.9} parent=11 // pred_fallthru
          _
        // Predicated region
        $region21: #{transformer_forward.9} parent=11 // pred_check
          %p200 = pneg %p133
        $region22: #{transformer_forward.9} parent=11 // pred_check_branch
          %202 = sbr.rel (%p200) target = $region24
        $region23: #{transformer_forward.9} parent=11 // pred_region
          %s204 = ssub.s32 256, 256
          %205 = vsyncadd [#allocation9], %s204
          %s206 = smul.addr %s30, 64
          %s207 = scalar_lea.hbm %s3, %s206
          %s208 = sshll.u32 [#allocation8], 4
          %s209 = int_to_ptr.vmem [resolvable:$true] %s208
          %214 = dma.hbm_to_vmem [thread:$0]  %s207, 256, %s209, [#allocation9], 64, 64, 4
        $region24: #{transformer_forward.9} parent=11 // pred_fallthru
          _
      $region12: #{transformer_forward.9} parent=5 // pred_fallthru
        _
      %p215 = scmp.lt.s32.totalorder %s18, 2
      // Predicated region
      $region25: #{transformer_forward.9} parent=5 // pred_check
        %p216 = pneg %p215
      $region26: #{transformer_forward.9} parent=5 // pred_check_branch
        %218 = sbr.rel (%p216) target = $region28
      $region27: #{transformer_forward.9} parent=5 // pred_region
        // Predicated region
        $region29: #{transformer_forward.9} parent=27 // pred_check
          %p219 = pneg %p59
        $region30: #{transformer_forward.9} parent=27 // pred_check_branch
          %221 = sbr.rel (%p219) target = $region32
        $region31: #{transformer_forward.9} parent=27 // pred_region
          %s222 = sand.u32 %s49, 1
          %s223 = scalar_lea.sflag [#allocation3], %s222
          %s224 = sand.u32 %s49, 1
          %s225 = smul.addr %s224, 16
          %s226 = scalar_lea.vmem [#allocation2], %s225
          %s227 = smul.u32 2, %s26
          %s229 = ssub.s32 256, 256
          %230 = vsyncadd %s223, %s229
          %s231 = smul.addr %s25, 2
          %s232 = sadd.s32 %s227, %s231
          %s233 = smul.addr %s232, 128
          %s234 = scalar_lea.hbm %s0, %s233
          %s235 = sshll.u32 %s226, 4
          %s236 = int_to_ptr.vmem [resolvable:$true] %s235
          %241 = dma.hbm_to_vmem [thread:$0]  %s234, 256, %s236, %s223, 128, 128, 8
        $region32: #{transformer_forward.9} parent=27 // pred_fallthru
          _
      $region28: #{transformer_forward.9} parent=5 // pred_fallthru
        _
      %p242 = scmp.le.s32.totalorder 1, %s18
      %p243 = scmp.lt.s32.totalorder %s18, 3
      %p244 = pnand %p242, %p243
      %p245 = pneg %p244
      // Predicated region
      $region33: #{transformer_forward.9} parent=5 // pred_check
        _
      $region34: #{transformer_forward.9} parent=5 // pred_check_branch
        %247 = sbr.rel (%p244) target = $region36
      $region35: #{transformer_forward.9} parent=5 // pred_region
        %s248 = ssub.s32 %s18, 1
        %s249 = sand.u32 %s52, 1
        %s250 = scalar_lea.sflag [#allocation3], %s249
        %s251 = sand.u32 %s52, 1
        %s252 = smul.addr %s251, 16
        %s253 = scalar_lea.vmem [#allocation2], %s252
        // Predicated region
        $region37: #{transformer_forward.9} parent=35 // pred_check
          %p254 = pneg %p65
        $region38: #{transformer_forward.9} parent=35 // pred_check_branch
          %256 = sbr.rel (%p254) target = $region40
        $region39: #{transformer_forward.9} parent=35 // pred_region
          %257 = dma.done %s250, 256
        $region40: #{transformer_forward.9} parent=35 // pred_fallthru
          _
        // Predicated region
        $region41: #{transformer_forward.9} parent=35 // pred_check
          %p258 = pneg %p86
        $region42: #{transformer_forward.9} parent=35 // pred_check_branch
          %260 = sbr.rel (%p258) target = $region44
        $region43: #{transformer_forward.9} parent=35 // pred_region
          %261 = dma.done [#allocation6], 16
        $region44: #{transformer_forward.9} parent=35 // pred_fallthru
          _
        // Predicated region
        $region45: #{transformer_forward.9} parent=35 // pred_check
          %p262 = pneg %p107
        $region46: #{transformer_forward.9} parent=35 // pred_check_branch
          %264 = sbr.rel (%p262) target = $region48
        $region47: #{transformer_forward.9} parent=35 // pred_region
          %265 = dma.done [#allocation6], 16
        $region48: #{transformer_forward.9} parent=35 // pred_fallthru
          _
        // Predicated region
        $region49: #{transformer_forward.9} parent=35 // pred_check
          %p266 = pneg %p133
        $region50: #{transformer_forward.9} parent=35 // pred_check_branch
          %268 = sbr.rel (%p266) target = $region52
        $region51: #{transformer_forward.9} parent=35 // pred_region
          %269 = dma.done [#allocation9], 256
        $region52: #{transformer_forward.9} parent=35 // pred_fallthru
          _
        %s270 = sand.u32 %s52, 1
        %s271 = scalar_lea.sflag [#allocation3], %s270
        %s272 = sand.u32 %s52, 1
        %s273 = smul.addr %s272, 16
        %s274 = scalar_lea.vmem [#allocation2], %s273
        %p275 = pneg %p65
        %p276 = pneg %p62
        %p277 = pneg %p86
        %p278 = pneg %p83
        %p279 = pneg %p107
        %p280 = pneg %p104
        %p281 = pneg %p133
        %p282 = pneg %p130
        %p283 = pneg %p163
        %p284 = pneg %p160
        %s285 = sand.u32 %s150, 1
        %s286 = scalar_lea.sflag [#allocation4], %s285
        %s287 = sand.u32 %s150, 1
        %s288 = smul.addr %s287, 16
        %s289 = scalar_lea.vmem [#allocation10], %s288
        %s290 = smul.u32 2, %s29
        %s291 = smul.u32 2, %s29
        %v293 = vld [vmem:[%s253] sm:$0xff]
        %v294 = vld [vmem:[%s253 + $0x8] sm:$0xff]
        %v295 = vld [vmem:[#allocation5] sm:$0x1]
        %v296 = vld [vmem:[#allocation7] sm:$0x1]
        %vm297 = vcmask 261120
        %v298 = vsel %vm297, %v293, 0.0
        %299 = vadd.xlane.f32.xlu0 %v298
        %v300 = vpop.xlane.xlu0 %299
        %v301 = vsel %vm297, %v294, 0.0
        %302 = vadd.xlane.f32.xlu0 %v301
        %v303 = vpop.xlane.xlu0 %302
        %v304 = vrcp.pop 32.0
        %v305 = vmul.f32 %v300, %v304
        %v306 = vmul.f32 %v303, %v304
        %v307 = vsub.f32 %v293, %v305
        %v308 = vsub.f32 %v294, %v306
        %v309 = vmul.f32 %v307, %v307
        %v310 = vmul.f32 %v308, %v308
        %v311 = vsel %vm297, %v309, 0.0
        %312 = vadd.xlane.f32.xlu0 %v311
        %v313 = vpop.xlane.xlu0 %312
        %v314 = vsel %vm297, %v310, 0.0
        %315 = vadd.xlane.f32.xlu0 %v314
        %v316 = vpop.xlane.xlu0 %315
        %v317 = vmul.f32 %v313, %v304
        %v318 = vmul.f32 %v316, %v304
        %v319 = vadd.f32 %v317, 1e-05
        %v320 = vadd.f32 %v318, 1e-05
        %v321 = vrsqrt.pop %v319
        %v322 = vrsqrt.pop %v320
        %v323 = vmul.f32 %v307, %v321
        %v324 = vmul.f32 %v308, %v322
        %v326 = vlaneseq
        %v327 = vshrl.u32 %v326, 7
        %v328 = vsub.s32 0, %v327
        %v329 = vrot.slane %v295, %v328
        %v331 = vmul.f32 %v323, %v329
        %v332 = vmul.f32 %v324, %v329
        %v334 = vlaneseq
        %v335 = vshrl.u32 %v334, 7
        %v336 = vsub.s32 0, %v335
        %v337 = vrot.slane %v296, %v336
        %v339 = vadd.f32 %v331, %v337
        %v340 = vadd.f32 %v332, %v337
        %v341 = vpack.c.bf16 %v340, %v339
        %v342 = vld [vmem:[#allocation8] sm:$0xf]
        %v343 = vld [vmem:[#allocation8 + $0x4] sm:$0xf]
        %v344 = vld [vmem:[#allocation8 + $0x8] sm:$0xf]
        %v345 = vld [vmem:[#allocation8 + $0xc] sm:$0xf]
        %v350 = vunpack.c.l.b16 %v342
        %v351 = vunpack.c.l.b16 %v343
        %v352 = vunpack.c.l.b16 %v344
        %v353 = vunpack.c.l.b16 %v345
        %v354 = vpack.c.b16 %v351, %v350
        %v355 = vpack.c.b16 %v353, %v352
        %v359 = vsel %vm297, %v341, 0
        %361 = vmatprep.subr.bf16.mxu0 0
        %362 = vmatpush1.bf16.msra.mxu0 %v354
        %363 = vmatprep.subr.bf16.mxu0 0
        %364 = vmatpush1.bf16.msra.mxu0 %v355
        %365 = vmatprep.subr.bf16.mxu0 0
        %366 = vmatpush1.bf16.msra.mxu0 0
        %367 = vmatprep.subr.bf16.mxu0 0
        %368 = vmatpush1.bf16.msra.mxu0 0
        %369 = vmatprep.subr.bf16.mxu0 0
        %370 = vmatpush1.bf16.msra.mxu0 0
        %371 = vmatprep.subr.bf16.mxu0 0
        %372 = vmatpush1.bf16.msra.mxu0 0
        %373 = vmatprep.subr.bf16.mxu0 0
        %374 = vmatpush1.bf16.msra.mxu0 0
        %375 = vmatprep.subr.bf16.mxu0 0
        %376 = vmatpush1.bf16.msra.mxu0 0
        %377 = vmatprep.subr.bf16.mxu0 0
        %378 = vmatpush1.bf16.msra.mxu0 0
        %379 = vmatprep.subr.bf16.mxu0 0
        %380 = vmatpush1.bf16.msra.mxu0 0
        %381 = vmatprep.subr.bf16.mxu0 0
        %382 = vmatpush1.bf16.msra.mxu0 0
        %383 = vmatprep.subr.bf16.mxu0 0
        %384 = vmatpush1.bf16.msra.mxu0 0
        %385 = vmatprep.subr.bf16.mxu0 0
        %386 = vmatpush1.bf16.msra.mxu0 0
        %387 = vmatprep.subr.bf16.mxu0 0
        %388 = vmatpush1.bf16.msra.mxu0 0
        %389 = vmatprep.subr.bf16.mxu0 0
        %390 = vmatpush1.bf16.msra.mxu0 0
        %391 = vmatprep.subr.bf16.mxu0 0
        %392 = vmatpush1.bf16.msra.mxu0 0
        %393 = vmatprep.mubr.bf16.mxu0 0
        %394 = vmatmul.mubr.bf16.gmra.mrb[0].mxu0 %v359
        %v395 = vpop.f32.mrb[0].mxu0
        %v396 = vadd.f32 0.0, %v395
        %v397 = vpop.f32.mrb[0].mxu0
        %v398 = vpop.f32.mrb[0].mxu0
        %v399 = vadd.f32 0.0, %v398
        %v400 = vpop.f32.mrb[0].mxu0
        %401 = vdwg.mxu0
        %402 = vst [vmem:[%s289] sm:$0xff] %v396
        %403 = vst [vmem:[%s289 + $0x8] sm:$0xff] %v399
        %s404 = sand.u32 %s150, 1
        %s405 = scalar_lea.sflag [#allocation4], %s404
        %s406 = sand.u32 %s150, 1
        %s407 = smul.addr %s406, 16
        %s408 = scalar_lea.vmem [#allocation10], %s407
        // Predicated region
        $region53: #{transformer_forward.9} parent=35 // pred_check
          %p409 = pneg %p160
        $region54: #{transformer_forward.9} parent=35 // pred_check_branch
          %411 = sbr.rel (%p409) target = $region56
        $region55: #{transformer_forward.9} parent=35 // pred_region
          %s412 = smul.u32 2, %s29
          %s414 = ssub.s32 256, 256
          %415 = vsyncadd %s405, %s414
          %s416 = sadd.s32 %s30, %s412
          %s417 = smul.addr %s28, 2
          %s418 = sadd.s32 %s416, %s417
          %s419 = smul.addr %s418, 128
          %s420 = scalar_lea.hbm %s4, %s419
          %s421 = sshll.u32 %s408, 4
          %s422 = int_to_ptr.vmem [resolvable:$true] %s421
          %427 = dma.vmem_to_hbm [thread:$0]  %s422, 256, %s420, %s405, 128, 128, 8
        $region56: #{transformer_forward.9} parent=35 // pred_fallthru
          _
      $region36: #{transformer_forward.9} parent=5 // pred_fallthru
        _
      %p428 = scmp.le.s32.totalorder 2, %s18
      // Predicated region
      $region57: #{transformer_forward.9} parent=5 // pred_check
        %p429 = pneg %p428
      $region58: #{transformer_forward.9} parent=5 // pred_check_branch
        %431 = sbr.rel (%p429) target = $region60
      $region59: #{transformer_forward.9} parent=5 // pred_region
        %s432 = ssub.s32 %s18, 2
        // Predicated region
        $region61: #{transformer_forward.9} parent=59 // pred_check
          %p433 = pneg %p166
        $region62: #{transformer_forward.9} parent=59 // pred_check_branch
          %435 = sbr.rel (%p433) target = $region64
        $region63: #{transformer_forward.9} parent=59 // pred_region
          %s436 = sand.u32 %s151, 1
          %s437 = scalar_lea.sflag [#allocation4], %s436
          %s438 = sand.u32 %s151, 1
          %s439 = smul.addr %s438, 16
          %s440 = scalar_lea.vmem [#allocation10], %s439
          %441 = dma.done %s437, 256
        $region64: #{transformer_forward.9} parent=59 // pred_fallthru
          _
      $region60: #{transformer_forward.9} parent=5 // pred_fallthru
        _
    $region6: #{transformer_forward.9} parent=1 // loop_footer
      %s22 = sadd.s32 1, %s18
    $region7: #{transformer_forward.9} parent=1 // loop_footer_branch
      %17 = sbr.rel target = $region3
    $region8: #{transformer_forward.9} parent=1 // loop_exit
      _
    %442 = vsyncpa [#allocation3], 1
    %s443 = scalar_lea.sflag [#allocation3], 1
    %444 = vsyncpa %s443, 1
    %445 = vsyncpa [#allocation6], 1
    %446 = vsyncpa [#allocation9], 1
    %447 = vsyncpa [#allocation4], 1
    %s448 = scalar_lea.sflag [#allocation4], 1
    %449 = vsyncpa %s448, 1

// kernel: transformer_forward.5
$region0: #{transformer_forward.5}
  #allocation0 [shape = 'u32[]', space=smem, size = 0x4, offset = 0x4, fixed_abs, tag = 'smem constant byte address 0x4 - core index']
  #allocation1 [shape = 'u32[144,128]{1,0:T(1,128)}', space=vmem, size = 0x12000, scoped, tag = 'internal scratch']
  %s0 = inlined_call_operand.hbm [shape: f32[2,16,32], index: 0, kind: input, shape index: {}]
  %s1 = inlined_call_operand.hbm [shape: f32[1,32], index: 1, kind: input, shape index: {}]
  %s2 = inlined_call_operand.hbm [shape: f32[1,32], index: 2, kind: input, shape index: {}]
  %s3 = inlined_call_operand.hbm [shape: bf16[32,96], index: 3, kind: input, shape index: {}]
  %s4 = inlined_call_operand.hbm [shape: f32[1,96], index: 4, kind: input, shape index: {}]
  %s5 = inlined_call_operand.hbm [shape: bf16[2,4,2,8,8], index: 5, kind: output, shape index: {0}]
  %s6 = inlined_call_operand.hbm [shape: bf16[2,4,2,8,8], index: 6, kind: output, shape index: {1}]
  %s7 = inlined_call_operand.hbm [shape: bf16[2,4,2,8,8], index: 7, kind: output, shape index: {2}]
  %8 = xla_tuple %s5, %s6, %s7
  %s9 = sld [smem:[#allocation0]]
  $region89: #{transformer_forward.5} parent=0
    _
  %s11 = ssub.s32 1, %s9
  %s12 = scalar_select 0, %s11, %s9
  $region1: #{transformer_forward.5} parent=0
    #allocation2 [shape = 'u8[8192]{0}', space=vmem, size = 0x2000, scoped, tag = 'input window, operand 0']
    #allocation3 [shape = 's32[2]{0}', space=sflag, size = 0x8, scoped, tag = 'scoped memory for transformer_forward.5']
    #allocation4 [shape = 's32[2]{0}', space=sflag, size = 0x8, scoped, tag = 'scoped memory for transformer_forward.5']
    #allocation5 [shape = 'u8[512]{0}', space=vmem, size = 0x400, scoped, tag = 'input window, operand 1, single buffered']
    #allocation6 [shape = 's32[1]{0}', space=sflag, size = 0x4, scoped, tag = 'scoped memory for transformer_forward.5']
    #allocation7 [shape = 'u8[512]{0}', space=vmem, size = 0x400, scoped, tag = 'input window, operand 2, single buffered']
    #allocation8 [shape = 'u8[8192]{0}', space=vmem, size = 0x2000, scoped, tag = 'input window, operand 3, single buffered']
    #allocation9 [shape = 's32[1]{0}', space=sflag, size = 0x4, scoped, tag = 'scoped memory for transformer_forward.5']
    #allocation10 [shape = 'u8[512]{0}', space=vmem, size = 0x400, scoped, tag = 'input window, operand 4, single buffered']
    #allocation11 [shape = 'u8[16384]{0}', space=vmem, size = 0x4000, scoped, tag = 'output window, operand 0']
    #allocation12 [shape = 'u8[16384]{0}', space=vmem, size = 0x4000, scoped, tag = 'output window, operand 1']
    #allocation13 [shape = 's32[2]{0}', space=sflag, size = 0x8, scoped, tag = 'scoped memory for transformer_forward.5']
    #allocation14 [shape = 'u8[16384]{0}', space=vmem, size = 0x4000, scoped, tag = 'output window, operand 2']
    %13 = vsyncpa [#allocation3], 0
    %s14 = scalar_lea.sflag [#allocation3], 1
    %15 = vsyncpa %s14, 0
    %16 = vsyncpa [#allocation6], 0
    %17 = vsyncpa [#allocation9], 0
    %18 = vsyncpa [#allocation4], 0
    %s19 = scalar_lea.sflag [#allocation4], 1
    %20 = vsyncpa %s19, 0
    %21 = vsyncpa [#allocation13], 0
    %s22 = scalar_lea.sflag [#allocation13], 1
    %23 = vsyncpa %s22, 0
    loop: start=0, step=1, limit=6
    $region2: #{transformer_forward.5} parent=1 // loop_pre_header
      _
    $region3: #{transformer_forward.5} parent=1 // loop_header
      %s25 = sphi 0, %s29
      %p26 = scmp.ge.s32.totalorder %s25, 6
      %s32 = sphi 0, %s44
      %s33 = sphi 0, %s40
      %s34 = sphi 0, %s32
      %s35 = sphi 0, %s33
      %s36 = sphi 0, %s34
      %s37 = sphi 0, %s35
      %s49 = sphi 0, %s51
      %s52 = sphi 0, %s49
      %s53 = sphi 0, %s52
      %s69 = sphi 0, %s53
      %s73 = sphi 0, %s73
      %s75 = sphi 0, %s73
      %s76 = sphi 0, %s75
      %s90 = sphi 0, %s76
      %s94 = sphi 0, %s94
      %s96 = sphi 0, %s94
      %s97 = sphi 0, %s96
      %s111 = sphi 0, %s97
      %s115 = sphi 0, %s115
      %s117 = sphi 0, %s115
      %s118 = sphi 0, %s117
      %s132 = sphi 0, %s118
      %s136 = sphi 0, %s136
      %s138 = sphi 0, %s136
      %s139 = sphi 0, %s138
      %s153 = sphi 0, %s139
      %s161 = sphi 0, %s163
      %s164 = sphi 0, %s161
      %s165 = sphi 0, %s164
      %s181 = sphi 0, %s165
      %s189 = sphi 0, %s191
      %s192 = sphi 0, %s189
      %s193 = sphi 0, %s192
      %s209 = sphi 0, %s193
      %s217 = sphi 0, %s219
      %s220 = sphi 0, %s217
      %s221 = sphi 0, %s220
      %s237 = sphi 0, %s221
    $region4: #{transformer_forward.5} parent=1 // loop_header_branch
      %28 = sbr.rel (%p26) target = $region8
    $region5: #{transformer_forward.5} parent=1 // loop_body
      %s30 = ssub.s32 %s25, 1
      %s31 = ssub.s32 %s25, 2
      %s38 = sadd.s32 1, %s33
      %p39 = scmp.ge.s32.totalorder %s38, 2
      %s40 = scalar_select %p39, 0, %s38
      %s41 = sadd.s32 1, %s32
      %s42 = scalar_select %p39, %s41, %s32
      %p43 = scmp.ge.s32.totalorder %s42, 2
      %s44 = scalar_select %p43, 0, %s42
      %s45 = ssub.s32 %s32, %s44
      %s46 = ssub.s32 %s33, %s40
      %s47 = sor.u32 %s45, %s46
      %p48 = scmp.eq.s32.totalorder %s47, 0
      %s50 = sadd.s32 %s49, 1
      %s51 = scalar_select %p48, %s49, %s50
      %p54 = pneg %p48
      %p55 = scmp.eq.s32.totalorder %s25, 3
      %p56 = por %p54, %p55
      %p57 = scmp.ne.s32.totalorder %s49, %s52
      %p58 = scmp.eq.s32.totalorder %s25, 0
      %p59 = por %p57, %p58
      %p60 = scmp.ne.s32.totalorder %s49, %s52
      %p61 = scmp.eq.s32.totalorder %s30, 3
      %p62 = por %p60, %p61
      %p63 = scmp.ne.s32.totalorder %s52, %s53
      %p64 = scmp.eq.s32.totalorder %s30, 0
      %p65 = por %p63, %p64
      %p66 = scmp.ne.s32.totalorder %s52, %s53
      %p67 = scmp.eq.s32.totalorder %s31, 3
      %p68 = por %p66, %p67
      %p70 = scmp.ne.s32.totalorder %s53, %s69
      %p71 = scmp.eq.s32.totalorder %s31, 0
      %p72 = por %p70, %p71
      %s74 = sadd.s32 %s73, 1
      %p77 = scmp.eq.s32.totalorder %s25, 3
      %p78 = scmp.ne.s32.totalorder %s73, %s75
      %p79 = scmp.eq.s32.totalorder %s25, 0
      %p80 = por %p78, %p79
      %p81 = scmp.ne.s32.totalorder %s73, %s75
      %p82 = scmp.eq.s32.totalorder %s30, 3
      %p83 = por %p81, %p82
      %p84 = scmp.ne.s32.totalorder %s75, %s76
      %p85 = scmp.eq.s32.totalorder %s30, 0
      %p86 = por %p84, %p85
      %p87 = scmp.ne.s32.totalorder %s75, %s76
      %p88 = scmp.eq.s32.totalorder %s31, 3
      %p89 = por %p87, %p88
      %p91 = scmp.ne.s32.totalorder %s76, %s90
      %p92 = scmp.eq.s32.totalorder %s31, 0
      %p93 = por %p91, %p92
      %s95 = sadd.s32 %s94, 1
      %p98 = scmp.eq.s32.totalorder %s25, 3
      %p99 = scmp.ne.s32.totalorder %s94, %s96
      %p100 = scmp.eq.s32.totalorder %s25, 0
      %p101 = por %p99, %p100
      %p102 = scmp.ne.s32.totalorder %s94, %s96
      %p103 = scmp.eq.s32.totalorder %s30, 3
      %p104 = por %p102, %p103
      %p105 = scmp.ne.s32.totalorder %s96, %s97
      %p106 = scmp.eq.s32.totalorder %s30, 0
      %p107 = por %p105, %p106
      %p108 = scmp.ne.s32.totalorder %s96, %s97
      %p109 = scmp.eq.s32.totalorder %s31, 3
      %p110 = por %p108, %p109
      %p112 = scmp.ne.s32.totalorder %s97, %s111
      %p113 = scmp.eq.s32.totalorder %s31, 0
      %p114 = por %p112, %p113
      %s116 = sadd.s32 %s115, 1
      %p119 = scmp.eq.s32.totalorder %s25, 3
      %p120 = scmp.ne.s32.totalorder %s115, %s117
      %p121 = scmp.eq.s32.totalorder %s25, 0
      %p122 = por %p120, %p121
      %p123 = scmp.ne.s32.totalorder %s115, %s117
      %p124 = scmp.eq.s32.totalorder %s30, 3
      %p125 = por %p123, %p124
      %p126 = scmp.ne.s32.totalorder %s117, %s118
      %p127 = scmp.eq.s32.totalorder %s30, 0
      %p128 = por %p126, %p127
      %p129 = scmp.ne.s32.totalorder %s117, %s118
      %p130 = scmp.eq.s32.totalorder %s31, 3
      %p131 = por %p129, %p130
      %p133 = scmp.ne.s32.totalorder %s118, %s132
      %p134 = scmp.eq.s32.totalorder %s31, 0
      %p135 = por %p133, %p134
      %s137 = sadd.s32 %s136, 1
      %p140 = scmp.eq.s32.totalorder %s25, 3
      %p141 = scmp.ne.s32.totalorder %s136, %s138
      %p142 = scmp.eq.s32.totalorder %s25, 0
      %p143 = por %p141, %p142
      %p144 = scmp.ne.s32.totalorder %s136, %s138
      %p145 = scmp.eq.s32.totalorder %s30, 3
      %p146 = por %p144, %p145
      %p147 = scmp.ne.s32.totalorder %s138, %s139
      %p148 = scmp.eq.s32.totalorder %s30, 0
      %p149 = por %p147, %p148
      %p150 = scmp.ne.s32.totalorder %s138, %s139
      %p151 = scmp.eq.s32.totalorder %s31, 3
      %p152 = por %p150, %p151
      %p154 = scmp.ne.s32.totalorder %s139, %s153
      %p155 = scmp.eq.s32.totalorder %s31, 0
      %p156 = por %p154, %p155
      %s157 = ssub.s32 %s32, %s44
      %s158 = ssub.s32 %s33, %s40
      %s159 = sor.u32 %s157, %s158
      %p160 = scmp.eq.s32.totalorder %s159, 0
      %s162 = sadd.s32 %s161, 1
      %s163 = scalar_select %p160, %s161, %s162
      %p166 = pneg %p160
      %p167 = scmp.eq.s32.totalorder %s25, 3
      %p168 = por %p166, %p167
      %p169 = scmp.ne.s32.totalorder %s161, %s164
      %p170 = scmp.eq.s32.totalorder %s25, 0
      %p171 = por %p169, %p170
      %p172 = scmp.ne.s32.totalorder %s161, %s164
      %p173 = scmp.eq.s32.totalorder %s30, 3
      %p174 = por %p172, %p173
      %p175 = scmp.ne.s32.totalorder %s164, %s165
      %p176 = scmp.eq.s32.totalorder %s30, 0
      %p177 = por %p175, %p176
      %p178 = scmp.ne.s32.totalorder %s164, %s165
      %p179 = scmp.eq.s32.totalorder %s31, 3
      %p180 = por %p178, %p179
      %p182 = scmp.ne.s32.totalorder %s165, %s181
      %p183 = scmp.eq.s32.totalorder %s31, 0
      %p184 = por %p182, %p183
      %s185 = ssub.s32 %s32, %s44
      %s186 = ssub.s32 %s33, %s40
      %s187 = sor.u32 %s185, %s186
      %p188 = scmp.eq.s32.totalorder %s187, 0
      %s190 = sadd.s32 %s189, 1
      %s191 = scalar_select %p188, %s189, %s190
      %p194 = pneg %p188
      %p195 = scmp.eq.s32.totalorder %s25, 3
      %p196 = por %p194, %p195
      %p197 = scmp.ne.s32.totalorder %s189, %s192
      %p198 = scmp.eq.s32.totalorder %s25, 0
      %p199 = por %p197, %p198
      %p200 = scmp.ne.s32.totalorder %s189, %s192
      %p201 = scmp.eq.s32.totalorder %s30, 3
      %p202 = por %p200, %p201
      %p203 = scmp.ne.s32.totalorder %s192, %s193
      %p204 = scmp.eq.s32.totalorder %s30, 0
      %p205 = por %p203, %p204
      %p206 = scmp.ne.s32.totalorder %s192, %s193
      %p207 = scmp.eq.s32.totalorder %s31, 3
      %p208 = por %p206, %p207
      %p210 = scmp.ne.s32.totalorder %s193, %s209
      %p211 = scmp.eq.s32.totalorder %s31, 0
      %p212 = por %p210, %p211
      %s213 = ssub.s32 %s32, %s44
      %s214 = ssub.s32 %s33, %s40
      %s215 = sor.u32 %s213, %s214
      %p216 = scmp.eq.s32.totalorder %s215, 0
      %s218 = sadd.s32 %s217, 1
      %s219 = scalar_select %p216, %s217, %s218
      %p222 = pneg %p216
      %p223 = scmp.eq.s32.totalorder %s25, 3
      %p224 = por %p222, %p223
      %p225 = scmp.ne.s32.totalorder %s217, %s220
      %p226 = scmp.eq.s32.totalorder %s25, 0
      %p227 = por %p225, %p226
      %p228 = scmp.ne.s32.totalorder %s217, %s220
      %p229 = scmp.eq.s32.totalorder %s30, 3
      %p230 = por %p228, %p229
      %p231 = scmp.ne.s32.totalorder %s220, %s221
      %p232 = scmp.eq.s32.totalorder %s30, 0
      %p233 = por %p231, %p232
      %p234 = scmp.ne.s32.totalorder %s220, %s221
      %p235 = scmp.eq.s32.totalorder %s31, 3
      %p236 = por %p234, %p235
      %p238 = scmp.ne.s32.totalorder %s221, %s237
      %p239 = scmp.eq.s32.totalorder %s31, 0
      %p240 = por %p238, %p239
      %p241 = scmp.le.s32.totalorder 1, %s25
      %p242 = scmp.lt.s32.totalorder %s25, 5
      %p243 = pnand %p241, %p242
      %p244 = pneg %p243
      // Predicated region
      $region9: #{transformer_forward.5} parent=5 // pred_check
        _
      $region10: #{transformer_forward.5} parent=5 // pred_check_branch
        %246 = sbr.rel (%p243) target = $region12
      $region11: #{transformer_forward.5} parent=5 // pred_region
        %s247 = ssub.s32 %s25, 1
        // Predicated region
        $region13: #{transformer_forward.5} parent=11 // pred_check
          %p248 = pneg %p86
        $region14: #{transformer_forward.5} parent=11 // pred_check_branch
          %250 = sbr.rel (%p248) target = $region16
        $region15: #{transformer_forward.5} parent=11 // pred_region
          %s252 = ssub.s32 16, 16
          %253 = vsyncadd [#allocation6], %s252
          %s255 = sshll.u32 [#allocation5], 4
          %s256 = int_to_ptr.vmem [resolvable:$true] %s255
          %258 = dma.hbm_to_vmem [thread:$0]  %s1, 16, %s256, [#allocation6]
        $region16: #{transformer_forward.5} parent=11 // pred_fallthru
          _
        // Predicated region
        $region17: #{transformer_forward.5} parent=11 // pred_check
          %p259 = pneg %p107
        $region18: #{transformer_forward.5} parent=11 // pred_check_branch
          %261 = sbr.rel (%p259) target = $region20
        $region19: #{transformer_forward.5} parent=11 // pred_region
          %s263 = ssub.s32 16, 16
          %264 = vsyncadd [#allocation6], %s263
          %s266 = sshll.u32 [#allocation7], 4
          %s267 = int_to_ptr.vmem [resolvable:$true] %s266
          %269 = dma.hbm_to_vmem [thread:$0]  %s2, 16, %s267, [#allocation6]
        $region20: #{transformer_forward.5} parent=11 // pred_fallthru
          _
        // Predicated region
        $region21: #{transformer_forward.5} parent=11 // pred_check
          %p270 = pneg %p128
        $region22: #{transformer_forward.5} parent=11 // pred_check_branch
          %272 = sbr.rel (%p270) target = $region24
        $region23: #{transformer_forward.5} parent=11 // pred_region
          %s274 = ssub.s32 256, 256
          %275 = vsyncadd [#allocation9], %s274
          %s276 = sshll.u32 [#allocation8], 4
          %s277 = int_to_ptr.vmem [resolvable:$true] %s276
          %282 = dma.hbm_to_vmem [thread:$0]  %s3, 256, %s277, [#allocation9], 64, 64, 4
        $region24: #{transformer_forward.5} parent=11 // pred_fallthru
          _
        // Predicated region
        $region25: #{transformer_forward.5} parent=11 // pred_check
          %p283 = pneg %p149
        $region26: #{transformer_forward.5} parent=11 // pred_check_branch
          %285 = sbr.rel (%p283) target = $region28
        $region27: #{transformer_forward.5} parent=11 // pred_region
          %s287 = ssub.s32 16, 16
          %288 = vsyncadd [#allocation9], %s287
          %s290 = sshll.u32 [#allocation10], 4
          %s291 = int_to_ptr.vmem [resolvable:$true] %s290
          %293 = dma.hbm_to_vmem [thread:$0]  %s4, 16, %s291, [#allocation9]
        $region28: #{transformer_forward.5} parent=11 // pred_fallthru
          _
      $region12: #{transformer_forward.5} parent=5 // pred_fallthru
        _
      %p294 = scmp.lt.s32.totalorder %s25, 4
      // Predicated region
      $region29: #{transformer_forward.5} parent=5 // pred_check
        %p295 = pneg %p294
      $region30: #{transformer_forward.5} parent=5 // pred_check_branch
        %297 = sbr.rel (%p295) target = $region32
      $region31: #{transformer_forward.5} parent=5 // pred_region
        // Predicated region
        $region33: #{transformer_forward.5} parent=31 // pred_check
          %p298 = pneg %p59
        $region34: #{transformer_forward.5} parent=31 // pred_check_branch
          %300 = sbr.rel (%p298) target = $region36
        $region35: #{transformer_forward.5} parent=31 // pred_region
          %s301 = sand.u32 %s49, 1
          %s302 = scalar_lea.sflag [#allocation3], %s301
          %s303 = sand.u32 %s49, 1
          %s304 = smul.addr %s303, 8
          %s305 = scalar_lea.vmem [#allocation2], %s304
          %s307 = ssub.s32 128, 128
          %308 = vsyncadd %s302, %s307
          %s309 = smul.addr %s32, 2
          %s310 = sadd.s32 %s33, %s309
          %s311 = smul.addr %s310, 128
          %s312 = scalar_lea.hbm %s0, %s311
          %s314 = sshll.u32 %s305, 4
          %s315 = int_to_ptr.vmem [resolvable:$true] %s314
          %317 = dma.hbm_to_vmem [thread:$0]  %s312, 128, %s315, %s302
        $region36: #{transformer_forward.5} parent=31 // pred_fallthru
          _
      $region32: #{transformer_forward.5} parent=5 // pred_fallthru
        _
      %p318 = scmp.le.s32.totalorder 1, %s25
      %p319 = scmp.lt.s32.totalorder %s25, 5
      %p320 = pnand %p318, %p319
      %p321 = pneg %p320
      // Predicated region
      $region37: #{transformer_forward.5} parent=5 // pred_check
        _
      $region38: #{transformer_forward.5} parent=5 // pred_check_branch
        %323 = sbr.rel (%p320) target = $region40
      $region39: #{transformer_forward.5} parent=5 // pred_region
        %s324 = ssub.s32 %s25, 1
        %s325 = sand.u32 %s52, 1
        %s326 = scalar_lea.sflag [#allocation3], %s325
        %s327 = sand.u32 %s52, 1
        %s328 = smul.addr %s327, 8
        %s329 = scalar_lea.vmem [#allocation2], %s328
        // Predicated region
        $region41: #{transformer_forward.5} parent=39 // pred_check
          %p330 = pneg %p65
        $region42: #{transformer_forward.5} parent=39 // pred_check_branch
          %332 = sbr.rel (%p330) target = $region44
        $region43: #{transformer_forward.5} parent=39 // pred_region
          %333 = dma.done %s326, 128
        $region44: #{transformer_forward.5} parent=39 // pred_fallthru
          _
        // Predicated region
        $region45: #{transformer_forward.5} parent=39 // pred_check
          %p334 = pneg %p86
        $region46: #{transformer_forward.5} parent=39 // pred_check_branch
          %336 = sbr.rel (%p334) target = $region48
        $region47: #{transformer_forward.5} parent=39 // pred_region
          %337 = dma.done [#allocation6], 16
        $region48: #{transformer_forward.5} parent=39 // pred_fallthru
          _
        // Predicated region
        $region49: #{transformer_forward.5} parent=39 // pred_check
          %p338 = pneg %p107
        $region50: #{transformer_forward.5} parent=39 // pred_check_branch
          %340 = sbr.rel (%p338) target = $region52
        $region51: #{transformer_forward.5} parent=39 // pred_region
          %341 = dma.done [#allocation6], 16
        $region52: #{transformer_forward.5} parent=39 // pred_fallthru
          _
        // Predicated region
        $region53: #{transformer_forward.5} parent=39 // pred_check
          %p342 = pneg %p128
        $region54: #{transformer_forward.5} parent=39 // pred_check_branch
          %344 = sbr.rel (%p342) target = $region56
        $region55: #{transformer_forward.5} parent=39 // pred_region
          %345 = dma.done [#allocation9], 256
        $region56: #{transformer_forward.5} parent=39 // pred_fallthru
          _
        // Predicated region
        $region57: #{transformer_forward.5} parent=39 // pred_check
          %p346 = pneg %p149
        $region58: #{transformer_forward.5} parent=39 // pred_check_branch
          %348 = sbr.rel (%p346) target = $region60
        $region59: #{transformer_forward.5} parent=39 // pred_region
          %349 = dma.done [#allocation9], 16
        $region60: #{transformer_forward.5} parent=39 // pred_fallthru
          _
        %s350 = sand.u32 %s52, 1
        %s351 = scalar_lea.sflag [#allocation3], %s350
        %s352 = sand.u32 %s52, 1
        %s353 = smul.addr %s352, 8
        %s354 = scalar_lea.vmem [#allocation2], %s353
        %p355 = pneg %p65
        %p356 = pneg %p62
        %p357 = pneg %p86
        %p358 = pneg %p83
        %p359 = pneg %p107
        %p360 = pneg %p104
        %p361 = pneg %p128
        %p362 = pneg %p125
        %p363 = pneg %p149
        %p364 = pneg %p146
        %p365 = pneg %p177
        %p366 = pneg %p174
        %s367 = sand.u32 %s164, 1
        %s368 = scalar_lea.sflag [#allocation4], %s367
        %s369 = sand.u32 %s164, 1
        %s370 = smul.addr %s369, 16
        %s371 = scalar_lea.vmem [#allocation11], %s370
        %p372 = pneg %p205
        %p373 = pneg %p202
        %s374 = sand.u32 %s30, 1
        %s375 = scalar_lea.sflag [#allocation13], %s374
        %s376 = sand.u32 %s192, 1
        %s377 = smul.addr %s376, 16
        %s378 = scalar_lea.vmem [#allocation12], %s377
        %p379 = pneg %p233
        %p380 = pneg %p230
        %s381 = sand.u32 %s30, 1
        %s382 = scalar_lea.sflag [#allocation13], %s381
        %s383 = sand.u32 %s220, 1
        %s384 = smul.addr %s383, 16
        %s385 = scalar_lea.vmem [#allocation14], %s384
        %v387 = vld [vmem:[%s329] sm:$0xff]
        %v388 = vld [vmem:[#allocation5] sm:$0x1]
        %v389 = vld [vmem:[#allocation7] sm:$0x1]
        %vm390 = vcmask 261120
        %v391 = vsel %vm390, %v387, 0.0
        %392 = vadd.xlane.f32.xlu0 %v391
        %v393 = vpop.xlane.xlu0 %392
        %v394 = vrcp.pop 32.0
        %v395 = vmul.f32 %v393, %v394
        %v396 = vsub.f32 %v387, %v395
        %v397 = vmul.f32 %v396, %v396
        %v398 = vsel %vm390, %v397, 0.0
        %399 = vadd.xlane.f32.xlu0 %v398
        %v400 = vpop.xlane.xlu0 %399
        %v401 = vmul.f32 %v400, %v394
        %v402 = vadd.f32 %v401, 1e-05
        %v403 = vrsqrt.pop %v402
        %v404 = vmul.f32 %v396, %v403
        %v406 = vlaneseq
        %v407 = vshrl.u32 %v406, 7
        %v408 = vsub.s32 0, %v407
        %v409 = vrot.slane %v388, %v408
        %v411 = vmul.f32 %v404, %v409
        %v413 = vlaneseq
        %v414 = vshrl.u32 %v413, 7
        %v415 = vsub.s32 0, %v414
        %v416 = vrot.slane %v389, %v415
        %v418 = vadd.f32 %v411, %v416
        %v419 = vpack.c.bf16 %v418, %v418
        %v420 = vld [vmem:[#allocation8] sm:$0xf]
        %v421 = vld [vmem:[#allocation8 + $0x4] sm:$0xf]
        %v422 = vld [vmem:[#allocation8 + $0x8] sm:$0xf]
        %v423 = vld [vmem:[#allocation8 + $0xc] sm:$0xf]
        %v424 = vld [vmem:[#allocation10] sm:$0x1]
        %v426 = vlaneseq
        %v427 = vshrl.u32 %v426, 7
        %v428 = vsub.s32 0, %v427
        %v429 = vrot.slane %v424, %v428
        %v435 = vunpack.c.l.b16 %v420
        %v436 = vunpack.c.l.b16 %v421
        %v437 = vunpack.c.l.b16 %v422
        %v438 = vunpack.c.l.b16 %v423
        %v439 = vpack.c.b16 %v436, %v435
        %v440 = vpack.c.b16 %v438, %v437
        %v444 = vsel %vm390, %v419, 0
        %446 = vmatprep.subr.bf16.mxu0 0
        %447 = vmatpush1.bf16.msra.mxu0 %v439
        %448 = vmatprep.subr.bf16.mxu0 0
        %449 = vmatpush1.bf16.msra.mxu0 %v440
        %450 = vmatprep.subr.bf16.mxu0 0
        %451 = vmatpush1.bf16.msra.mxu0 0
        %452 = vmatprep.subr.bf16.mxu0 0
        %453 = vmatpush1.bf16.msra.mxu0 0
        %454 = vmatprep.subr.bf16.mxu0 0
        %455 = vmatpush1.bf16.msra.mxu0 0
        %456 = vmatprep.subr.bf16.mxu0 0
        %457 = vmatpush1.bf16.msra.mxu0 0
        %458 = vmatprep.subr.bf16.mxu0 0
        %459 = vmatpush1.bf16.msra.mxu0 0
        %460 = vmatprep.subr.bf16.mxu0 0
        %461 = vmatpush1.bf16.msra.mxu0 0
        %462 = vmatprep.subr.bf16.mxu0 0
        %463 = vmatpush1.bf16.msra.mxu0 0
        %464 = vmatprep.subr.bf16.mxu0 0
        %465 = vmatpush1.bf16.msra.mxu0 0
        %466 = vmatprep.subr.bf16.mxu0 0
        %467 = vmatpush1.bf16.msra.mxu0 0
        %468 = vmatprep.subr.bf16.mxu0 0
        %469 = vmatpush1.bf16.msra.mxu0 0
        %470 = vmatprep.subr.bf16.mxu0 0
        %471 = vmatpush1.bf16.msra.mxu0 0
        %472 = vmatprep.subr.bf16.mxu0 0
        %473 = vmatpush1.bf16.msra.mxu0 0
        %474 = vmatprep.subr.bf16.mxu0 0
        %475 = vmatpush1.bf16.msra.mxu0 0
        %476 = vmatprep.subr.bf16.mxu0 0
        %477 = vmatpush1.bf16.msra.mxu0 0
        %478 = vmatprep.mubr.bf16.mxu0 0
        %479 = vmatmul.mubr.bf16.gmra.mrb[0].mxu0 %v444
        %v480 = vpop.f32.mrb[0].mxu0
        %v481 = vadd.f32 %v429, %v480
        %v482 = vpop.f32.mrb[0].mxu0
        %v483 = vpop.f32.mrb[0].mxu0
        %v484 = vpop.f32.mrb[0].mxu0
        %485 = vdwg.mxu0
        %v486 = vmul.f32 %v481, 0.35355338
        %v487 = vpack.c.bf16 %v486, %v486
        %v488 = vpack.c.bf16 %v481, %v481
        %490 = vrot.lane.b32.xlu0 %v481, 96
        %v491 = vpop.permute.xlu0 %490
        %493 = vxpose.xlu0.b32.start [1/16] %v491, 128
        %494 = vxpose.xlu0.b32.cont [2/16] 0.0, 128
        %495 = vxpose.xlu0.b32.cont [3/16] 0.0, 128
        %496 = vxpose.xlu0.b32.cont [4/16] 0.0, 128
        %497 = vxpose.xlu0.b32.cont [5/16] 0.0, 128
        %498 = vxpose.xlu0.b32.cont [6/16] 0.0, 128
        %499 = vxpose.xlu0.b32.cont [7/16] 0.0, 128
        %500 = vxpose.xlu0.b32.cont [8/16] 0.0, 128
        %501 = vxpose.xlu0.b32.cont [9/16] 0.0, 128
        %502 = vxpose.xlu0.b32.cont [10/16] 0.0, 128
        %503 = vxpose.xlu0.b32.cont [11/16] 0.0, 128
        %504 = vxpose.xlu0.b32.cont [12/16] 0.0, 128
        %505 = vxpose.xlu0.b32.cont [13/16] 0.0, 128
        %506 = vxpose.xlu0.b32.cont [14/16] 0.0, 128
        %507 = vxpose.xlu0.b32.cont [15/16] 0.0, 128
        %508 = vxpose.xlu0.b32.end [16/16] 0.0, 128
        %v509 = vpop.trf.xlu0
        %v510 = vpop.trf.xlu0
        %v511 = vpop.trf.xlu0
        %v512 = vpop.trf.xlu0
        %v513 = vpop.trf.xlu0
        %v514 = vpop.trf.xlu0
        %v515 = vpop.trf.xlu0
        %v516 = vpop.trf.xlu0
        %v517 = vpop.trf.xlu0
        %v518 = vpop.trf.xlu0
        %v519 = vpop.trf.xlu0
        %v520 = vpop.trf.xlu0
        %v521 = vpop.trf.xlu0
        %v522 = vpop.trf.xlu0
        %v523 = vpop.trf.xlu0
        %v524 = vpop.trf.xlu0
        %v525 = vpack.c.bf16 %v510, %v509
        %v526 = vpack.c.bf16 %v512, %v511
        %vm527 = vcmask 60416
        %528 = vst.msk [vmem:[%s371] sm:$0xf] %vm527, %v487
        %v530 = vunpack.c.l.b16 %v488
        %v531 = vpack.c.b16 %v530, %v530
        %532 = vrot.lane.b32.xlu0 %v531, 64
        %v533 = vpop.permute.xlu0 %532
        %535 = vst.msk [vmem:[%s385] sm:$0xf] %vm527, %v533
        %536 = vst.msk [vmem:[%s378] sm:$0xf] %vm527, %v525
        %v538 = vunpack.c.l.b16 %v487
        %v539 = vpack.c.b16 %v538, %v538
        %540 = vrot.lane.b32.xlu0 %v539, 120
        %v541 = vpop.permute.xlu0 %540
        %s543 = scalar_lea.vmem %s371, 4 [#allocation11]
        %544 = vst.msk [vmem:[%s543] sm:$0xf] %vm527, %v541
        %545 = vrot.lane.b32.xlu0 %v531, 56
        %v546 = vpop.permute.xlu0 %545
        %s548 = scalar_lea.vmem %s385, 4 [#allocation14]
        %549 = vst.msk [vmem:[%s548] sm:$0xf] %vm527, %v546
        %v551 = vunpack.c.h.b16 %v525
        %v552 = vpack.c.b16 %v551, %v551
        %s554 = scalar_lea.vmem %s378, 4 [#allocation12]
        %555 = vst.msk [vmem:[%s554] sm:$0xf] %vm527, %v552
        %556 = vrot.lane.b32.xlu0 %v539, 112
        %v557 = vpop.permute.xlu0 %556
        %s559 = scalar_lea.vmem %s371, 8 [#allocation11]
        %560 = vst.msk [vmem:[%s559] sm:$0xf] %vm527, %v557
        %561 = vrot.lane.b32.xlu0 %v531, 48
        %v562 = vpop.permute.xlu0 %561
        %s564 = scalar_lea.vmem %s385, 8 [#allocation14]
        %565 = vst.msk [vmem:[%s564] sm:$0xf] %vm527, %v562
        %s566 = scalar_lea.vmem %s378, 8 [#allocation12]
        %567 = vst.msk [vmem:[%s566] sm:$0xf] %vm527, %v526
        %568 = vrot.lane.b32.xlu0 %v539, 104
        %v569 = vpop.permute.xlu0 %568
        %s571 = scalar_lea.vmem %s371, 12 [#allocation11]
        %572 = vst.msk [vmem:[%s571] sm:$0xf] %vm527, %v569
        %573 = vrot.lane.b32.xlu0 %v531, 40
        %v574 = vpop.permute.xlu0 %573
        %s576 = scalar_lea.vmem %s385, 12 [#allocation14]
        %577 = vst.msk [vmem:[%s576] sm:$0xf] %vm527, %v574
        %v579 = vunpack.c.h.b16 %v526
        %v580 = vpack.c.b16 %v579, %v579
        %s582 = scalar_lea.vmem %s378, 12 [#allocation12]
        %583 = vst.msk [vmem:[%s582] sm:$0xf] %vm527, %v580
        %s584 = sand.u32 %s164, 1
        %s585 = scalar_lea.sflag [#allocation4], %s584
        %s586 = sand.u32 %s164, 1
        %s587 = smul.addr %s586, 16
        %s588 = scalar_lea.vmem [#allocation11], %s587
        %s589 = sand.u32 %s30, 1
        %s590 = scalar_lea.sflag [#allocation13], %s589
        %s591 = sand.u32 %s192, 1
        %s592 = smul.addr %s591, 16
        %s593 = scalar_lea.vmem [#allocation12], %s592
        %s594 = sand.u32 %s30, 1
        %s595 = scalar_lea.sflag [#allocation13], %s594
        %s596 = sand.u32 %s220, 1
        %s597 = smul.addr %s596, 16
        %s598 = scalar_lea.vmem [#allocation14], %s597
        // Predicated region
        $region61: #{transformer_forward.5} parent=39 // pred_check
          %p599 = pneg %p174
        $region62: #{transformer_forward.5} parent=39 // pred_check_branch
          %601 = sbr.rel (%p599) target = $region64
        $region63: #{transformer_forward.5} parent=39 // pred_region
          %s603 = ssub.s32 256, 256
          %604 = vsyncadd %s585, %s603
          %s605 = smul.addr %s34, 8
          %s606 = sadd.s32 %s35, %s605
          %s607 = smul.addr %s606, 64
          %s608 = scalar_lea.hbm %s5, %s607
          %s609 = sshll.u32 %s588, 4
          %s610 = int_to_ptr.vmem [resolvable:$true] %s609
          %615 = dma.vmem_to_hbm [thread:$0]  %s610, 256, %s608, %s585, 64, 128, 4
        $region64: #{transformer_forward.5} parent=39 // pred_fallthru
          _
        // Predicated region
        $region65: #{transformer_forward.5} parent=39 // pred_check
          %p616 = pneg %p202
        $region66: #{transformer_forward.5} parent=39 // pred_check_branch
          %618 = sbr.rel (%p616) target = $region68
        $region67: #{transformer_forward.5} parent=39 // pred_region
          %s620 = ssub.s32 256, 256
          %621 = vsyncadd %s590, %s620
          %s622 = smul.addr %s34, 8
          %s623 = sadd.s32 %s35, %s622
          %s624 = smul.addr %s623, 64
          %s625 = scalar_lea.hbm %s6, %s624
          %s626 = sshll.u32 %s593, 4
          %s627 = int_to_ptr.vmem [resolvable:$true] %s626
          %632 = dma.vmem_to_hbm [thread:$0]  %s627, 256, %s625, %s590, 64, 128, 4
        $region68: #{transformer_forward.5} parent=39 // pred_fallthru
          _
        // Predicated region
        $region69: #{transformer_forward.5} parent=39 // pred_check
          %p633 = pneg %p230
        $region70: #{transformer_forward.5} parent=39 // pred_check_branch
          %635 = sbr.rel (%p633) target = $region72
        $region71: #{transformer_forward.5} parent=39 // pred_region
          %s637 = ssub.s32 256, 256
          %638 = vsyncadd %s595, %s637
          %s639 = smul.addr %s34, 8
          %s640 = sadd.s32 %s35, %s639
          %s641 = smul.addr %s640, 64
          %s642 = scalar_lea.hbm %s7, %s641
          %s643 = sshll.u32 %s598, 4
          %s644 = int_to_ptr.vmem [resolvable:$true] %s643
          %649 = dma.vmem_to_hbm [thread:$0]  %s644, 256, %s642, %s595, 64, 128, 4
        $region72: #{transformer_forward.5} parent=39 // pred_fallthru
          _
      $region40: #{transformer_forward.5} parent=5 // pred_fallthru
        _
      %p650 = scmp.le.s32.totalorder 2, %s25
      // Predicated region
      $region73: #{transformer_forward.5} parent=5 // pred_check
        %p651 = pneg %p650
      $region74: #{transformer_forward.5} parent=5 // pred_check_branch
        %653 = sbr.rel (%p651) target = $region76
      $region75: #{transformer_forward.5} parent=5 // pred_region
        %s654 = ssub.s32 %s25, 2
        // Predicated region
        $region77: #{transformer_forward.5} parent=75 // pred_check
          %p655 = pneg %p180
        $region78: #{transformer_forward.5} parent=75 // pred_check_branch
          %657 = sbr.rel (%p655) target = $region80
        $region79: #{transformer_forward.5} parent=75 // pred_region
          %s658 = sand.u32 %s165, 1
          %s659 = scalar_lea.sflag [#allocation4], %s658
          %s660 = sand.u32 %s165, 1
          %s661 = smul.addr %s660, 16
          %s662 = scalar_lea.vmem [#allocation11], %s661
          %663 = dma.done %s659, 256
        $region80: #{transformer_forward.5} parent=75 // pred_fallthru
          _
        // Predicated region
        $region81: #{transformer_forward.5} parent=75 // pred_check
          %p664 = pneg %p208
        $region82: #{transformer_forward.5} parent=75 // pred_check_branch
          %666 = sbr.rel (%p664) target = $region84
        $region83: #{transformer_forward.5} parent=75 // pred_region
          %s667 = sand.u32 %s31, 1
          %s668 = scalar_lea.sflag [#allocation13], %s667
          %s669 = sand.u32 %s193, 1
          %s670 = smul.addr %s669, 16
          %s671 = scalar_lea.vmem [#allocation12], %s670
          %672 = dma.done %s668, 256
        $region84: #{transformer_forward.5} parent=75 // pred_fallthru
          _
        // Predicated region
        $region85: #{transformer_forward.5} parent=75 // pred_check
          %p673 = pneg %p236
        $region86: #{transformer_forward.5} parent=75 // pred_check_branch
          %675 = sbr.rel (%p673) target = $region88
        $region87: #{transformer_forward.5} parent=75 // pred_region
          %s676 = sand.u32 %s31, 1
          %s677 = scalar_lea.sflag [#allocation13], %s676
          %s678 = sand.u32 %s221, 1
          %s679 = smul.addr %s678, 16
          %s680 = scalar_lea.vmem [#allocation14], %s679
          %681 = dma.done %s677, 256
        $region88: #{transformer_forward.5} parent=75 // pred_fallthru
          _
      $region76: #{transformer_forward.5} parent=5 // pred_fallthru
        _
    $region6: #{transformer_forward.5} parent=1 // loop_footer
      %s29 = sadd.s32 1, %s25
    $region7: #{transformer_forward.5} parent=1 // loop_footer_branch
      %24 = sbr.rel target = $region3
    $region8: #{transformer_forward.5} parent=1 // loop_exit
      _
    %682 = vsyncpa [#allocation3], 1
    %s683 = scalar_lea.sflag [#allocation3], 1
    %684 = vsyncpa %s683, 1
    %685 = vsyncpa [#allocation6], 1
    %686 = vsyncpa [#allocation9], 1
    %687 = vsyncpa [#allocation4], 1
    %s688 = scalar_lea.sflag [#allocation4], 1
    %689 = vsyncpa %s688, 1
    %690 = vsyncpa [#allocation13], 1
    %s691 = scalar_lea.sflag [#allocation13], 1
    %692 = vsyncpa %s691, 1

// kernel: transformer_forward.6
$region0: #{transformer_forward.6}
  #allocation0 [shape = 'u32[]', space=smem, size = 0x4, offset = 0x4, fixed_abs, tag = 'smem constant byte address 0x4 - core index']
  #allocation1 [shape = 'u32[144,128]{1,0:T(1,128)}', space=vmem, size = 0x12000, scoped, tag = 'internal scratch']
  #allocation2 [shape = 'f32[8,32]{1,0:T(8,128)}', space=vmem, size = 0x1000, scoped, tag = 'scratch operand']
  %s0 = inlined_call_operand.hbm [shape: f32[2,16,32], index: 0, kind: input, shape index: {}]
  %s1 = inlined_call_operand.hbm [shape: bf16[2,4,2,8,8], index: 1, kind: input, shape index: {}]
  %s2 = inlined_call_operand.hbm [shape: bf16[2,4,2,8,8], index: 2, kind: input, shape index: {}]
  %s3 = inlined_call_operand.hbm [shape: bf16[2,4,2,8,8], index: 3, kind: input, shape index: {}]
  %s4 = inlined_call_operand.hbm [shape: bf16[32,32], index: 4, kind: input, shape index: {}]
  %s5 = inlined_call_operand.hbm [shape: f32[1,32], index: 5, kind: input, shape index: {}]
  %s6 = inlined_call_operand.hbm [shape: f32[1,32], index: 6, kind: input, shape index: {}]
  %s7 = inlined_call_operand.hbm [shape: f32[1,32], index: 7, kind: input, shape index: {}]
  %s8 = inlined_call_operand.hbm [shape: bf16[32,128], index: 8, kind: input, shape index: {}]
  %s9 = inlined_call_operand.hbm [shape: f32[1,128], index: 9, kind: input, shape index: {}]
  %s10 = inlined_call_operand.hbm [shape: bf16[128,32], index: 10, kind: input, shape index: {}]
  %s11 = inlined_call_operand.hbm [shape: f32[1,32], index: 11, kind: input, shape index: {}]
  %s12 = inlined_call_operand.hbm [shape: f32[2,16,32], index: 12, kind: output, shape index: {}]
  %s13 = sld [smem:[#allocation0]]
  $region136: #{transformer_forward.6} parent=0
    _
  %s15 = ssub.s32 1, %s13
  %s16 = scalar_select 0, %s15, %s13
  $region1: #{transformer_forward.6} parent=0
    #allocation3 [shape = 'u8[8192]{0}', space=vmem, size = 0x2000, scoped, tag = 'input window, operand 0']
    #allocation4 [shape = 's32[2]{0}', space=sflag, size = 0x8, scoped, tag = 'scoped memory for transformer_forward.6']
    #allocation5 [shape = 's32[2]{0}', space=sflag, size = 0x8, scoped, tag = 'scoped memory for transformer_forward.6']
    #allocation6 [shape = 'u8[16384]{0}', space=vmem, size = 0x4000, scoped, tag = 'input window, operand 1']
    #allocation7 [shape = 's32[2]{0}', space=sflag, size = 0x8, scoped, tag = 'scoped memory for transformer_forward.6']
    #allocation8 [shape = 'u8[32768]{0}', space=vmem, size = 0x8000, scoped, tag = 'input window, operand 2']
    #allocation9 [shape = 'u8[32768]{0}', space=vmem, size = 0x8000, scoped, tag = 'input window, operand 3']
    #allocation10 [shape = 's32[2]{0}', space=sflag, size = 0x8, scoped, tag = 'scoped memory for transformer_forward.6']
    #allocation11 [shape = 'u8[8192]{0}', space=vmem, size = 0x2000, scoped, tag = 'input window, operand 4, single buffered']
    #allocation12 [shape = 'u8[512]{0}', space=vmem, size = 0x400, scoped, tag = 'input window, operand 5, single buffered']
    #allocation13 [shape = 's32[1]{0}', space=sflag, size = 0x4, scoped, tag = 'scoped memory for transformer_forward.6']
    #allocation14 [shape = 'u8[512]{0}', space=vmem, size = 0x400, scoped, tag = 'input window, operand 6, single buffered']
    #allocation15 [shape = 'u8[512]{0}', space=vmem, size = 0x400, scoped, tag = 'input window, operand 7, single buffered']
    #allocation16 [shape = 's32[1]{0}', space=sflag, size = 0x4, scoped, tag = 'scoped memory for transformer_forward.6']
    #allocation17 [shape = 'u8[8192]{0}', space=vmem, size = 0x2000, scoped, tag = 'input window, operand 8, single buffered']
    #allocation18 [shape = 'u8[512]{0}', space=vmem, size = 0x400, scoped, tag = 'input window, operand 9, single buffered']
    #allocation19 [shape = 's32[1]{0}', space=sflag, size = 0x4, scoped, tag = 'scoped memory for transformer_forward.6']
    #allocation20 [shape = 'u8[32768]{0}', space=vmem, size = 0x8000, scoped, tag = 'input window, operand 10, single buffered']
    #allocation21 [shape = 'u8[512]{0}', space=vmem, size = 0x400, scoped, tag = 'input window, operand 11, single buffered']
    #allocation22 [shape = 's32[1]{0}', space=sflag, size = 0x4, scoped, tag = 'scoped memory for transformer_forward.6']
    #allocation23 [shape = 'u8[8192]{0}', space=vmem, size = 0x2000, scoped, tag = 'output window, operand 0']
    %17 = vsyncpa [#allocation4], 0
    %s18 = scalar_lea.sflag [#allocation4], 1
    %19 = vsyncpa %s18, 0
    %20 = vsyncpa [#allocation7], 0
    %s21 = scalar_lea.sflag [#allocation7], 1
    %22 = vsyncpa %s21, 0
    %23 = vsyncpa [#allocation10], 0
    %s24 = scalar_lea.sflag [#allocation10], 1
    %25 = vsyncpa %s24, 0
    %26 = vsyncpa [#allocation13], 0
    %27 = vsyncpa [#allocation16], 0
    %28 = vsyncpa [#allocation19], 0
    %29 = vsyncpa [#allocation22], 0
    %30 = vsyncpa [#allocation5], 0
    %s31 = scalar_lea.sflag [#allocation5], 1
    %32 = vsyncpa %s31, 0
    loop: start=0, step=1, limit=6
    $region2: #{transformer_forward.6} parent=1 // loop_pre_header
      _
    $region3: #{transformer_forward.6} parent=1 // loop_header
      %s34 = sphi 0, %s38
      %p35 = scmp.ge.s32.totalorder %s34, 6
      %s41 = sphi 0, %s53
      %s42 = sphi 0, %s49
      %s43 = sphi 0, %s41
      %s44 = sphi 0, %s42
      %s45 = sphi 0, %s43
      %s46 = sphi 0, %s44
      %s58 = sphi 0, %s60
      %s61 = sphi 0, %s58
      %s62 = sphi 0, %s61
      %s78 = sphi 0, %s62
      %s86 = sphi 0, %s88
      %s89 = sphi 0, %s86
      %s90 = sphi 0, %s89
      %s106 = sphi 0, %s90
      %s112 = sphi 0, %s114
      %s115 = sphi 0, %s112
      %s116 = sphi 0, %s115
      %s132 = sphi 0, %s116
      %s138 = sphi 0, %s140
      %s141 = sphi 0, %s138
      %s142 = sphi 0, %s141
      %s158 = sphi 0, %s142
      %s162 = sphi 0, %s162
      %s164 = sphi 0, %s162
      %s165 = sphi 0, %s164
      %s179 = sphi 0, %s165
      %s183 = sphi 0, %s183
      %s185 = sphi 0, %s183
      %s186 = sphi 0, %s185
      %s200 = sphi 0, %s186
      %s204 = sphi 0, %s204
      %s206 = sphi 0, %s204
      %s207 = sphi 0, %s206
      %s221 = sphi 0, %s207
      %s225 = sphi 0, %s225
      %s227 = sphi 0, %s225
      %s228 = sphi 0, %s227
      %s242 = sphi 0, %s228
      %s246 = sphi 0, %s246
      %s248 = sphi 0, %s246
      %s249 = sphi 0, %s248
      %s263 = sphi 0, %s249
      %s267 = sphi 0, %s267
      %s269 = sphi 0, %s267
      %s270 = sphi 0, %s269
      %s284 = sphi 0, %s270
      %s288 = sphi 0, %s288
      %s290 = sphi 0, %s288
      %s291 = sphi 0, %s290
      %s305 = sphi 0, %s291
      %s309 = sphi 0, %s309
      %s311 = sphi 0, %s309
      %s312 = sphi 0, %s311
      %s326 = sphi 0, %s312
      %s334 = sphi 0, %s336
      %s337 = sphi 0, %s334
      %s338 = sphi 0, %s337
      %s354 = sphi 0, %s338
    $region4: #{transformer_forward.6} parent=1 // loop_header_branch
      %37 = sbr.rel (%p35) target = $region8
    $region5: #{transformer_forward.6} parent=1 // loop_body
      %s39 = ssub.s32 %s34, 1
      %s40 = ssub.s32 %s34, 2
      %s47 = sadd.s32 1, %s42
      %p48 = scmp.ge.s32.totalorder %s47, 2
      %s49 = scalar_select %p48, 0, %s47
      %s50 = sadd.s32 1, %s41
      %s51 = scalar_select %p48, %s50, %s41
      %p52 = scmp.ge.s32.totalorder %s51, 2
      %s53 = scalar_select %p52, 0, %s51
      %s54 = ssub.s32 %s41, %s53
      %s55 = ssub.s32 %s42, %s49
      %s56 = sor.u32 %s54, %s55
      %p57 = scmp.eq.s32.totalorder %s56, 0
      %s59 = sadd.s32 %s58, 1
      %s60 = scalar_select %p57, %s58, %s59
      %p63 = pneg %p57
      %p64 = scmp.eq.s32.totalorder %s34, 3
      %p65 = por %p63, %p64
      %p66 = scmp.ne.s32.totalorder %s58, %s61
      %p67 = scmp.eq.s32.totalorder %s34, 0
      %p68 = por %p66, %p67
      %p69 = scmp.ne.s32.totalorder %s58, %s61
      %p70 = scmp.eq.s32.totalorder %s39, 3
      %p71 = por %p69, %p70
      %p72 = scmp.ne.s32.totalorder %s61, %s62
      %p73 = scmp.eq.s32.totalorder %s39, 0
      %p74 = por %p72, %p73
      %p75 = scmp.ne.s32.totalorder %s61, %s62
      %p76 = scmp.eq.s32.totalorder %s40, 3
      %p77 = por %p75, %p76
      %p79 = scmp.ne.s32.totalorder %s62, %s78
      %p80 = scmp.eq.s32.totalorder %s40, 0
      %p81 = por %p79, %p80
      %s82 = ssub.s32 %s41, %s53
      %s83 = ssub.s32 %s42, %s49
      %s84 = sor.u32 %s82, %s83
      %p85 = scmp.eq.s32.totalorder %s84, 0
      %s87 = sadd.s32 %s86, 1
      %s88 = scalar_select %p85, %s86, %s87
      %p91 = pneg %p85
      %p92 = scmp.eq.s32.totalorder %s34, 3
      %p93 = por %p91, %p92
      %p94 = scmp.ne.s32.totalorder %s86, %s89
      %p95 = scmp.eq.s32.totalorder %s34, 0
      %p96 = por %p94, %p95
      %p97 = scmp.ne.s32.totalorder %s86, %s89
      %p98 = scmp.eq.s32.totalorder %s39, 3
      %p99 = por %p97, %p98
      %p100 = scmp.ne.s32.totalorder %s89, %s90
      %p101 = scmp.eq.s32.totalorder %s39, 0
      %p102 = por %p100, %p101
      %p103 = scmp.ne.s32.totalorder %s89, %s90
      %p104 = scmp.eq.s32.totalorder %s40, 3
      %p105 = por %p103, %p104
      %p107 = scmp.ne.s32.totalorder %s90, %s106
      %p108 = scmp.eq.s32.totalorder %s40, 0
      %p109 = por %p107, %p108
      %s110 = ssub.s32 %s41, %s53
      %p111 = scmp.eq.s32.totalorder %s110, 0
      %s113 = sadd.s32 %s112, 1
      %s114 = scalar_select %p111, %s112, %s113
      %p117 = pneg %p111
      %p118 = scmp.eq.s32.totalorder %s34, 3
      %p119 = por %p117, %p118
      %p120 = scmp.ne.s32.totalorder %s112, %s115
      %p121 = scmp.eq.s32.totalorder %s34, 0
      %p122 = por %p120, %p121
      %p123 = scmp.ne.s32.totalorder %s112, %s115
      %p124 = scmp.eq.s32.totalorder %s39, 3
      %p125 = por %p123, %p124
      %p126 = scmp.ne.s32.totalorder %s115, %s116
      %p127 = scmp.eq.s32.totalorder %s39, 0
      %p128 = por %p126, %p127
      %p129 = scmp.ne.s32.totalorder %s115, %s116
      %p130 = scmp.eq.s32.totalorder %s40, 3
      %p131 = por %p129, %p130
      %p133 = scmp.ne.s32.totalorder %s116, %s132
      %p134 = scmp.eq.s32.totalorder %s40, 0
      %p135 = por %p133, %p134
      %s136 = ssub.s32 %s41, %s53
      %p137 = scmp.eq.s32.totalorder %s136, 0
      %s139 = sadd.s32 %s138, 1
      %s140 = scalar_select %p137, %s138, %s139
      %p143 = pneg %p137
      %p144 = scmp.eq.s32.totalorder %s34, 3
      %p145 = por %p143, %p144
      %p146 = scmp.ne.s32.totalorder %s138, %s141
      %p147 = scmp.eq.s32.totalorder %s34, 0
      %p148 = por %p146, %p147
      %p149 = scmp.ne.s32.totalorder %s138, %s141
      %p150 = scmp.eq.s32.totalorder %s39, 3
      %p151 = por %p149, %p150
      %p152 = scmp.ne.s32.totalorder %s141, %s142
      %p153 = scmp.eq.s32.totalorder %s39, 0
      %p154 = por %p152, %p153
      %p155 = scmp.ne.s32.totalorder %s141, %s142
      %p156 = scmp.eq.s32.totalorder %s40, 3
      %p157 = por %p155, %p156
      %p159 = scmp.ne.s32.totalorder %s142, %s158
      %p160 = scmp.eq.s32.totalorder %s40, 0
      %p161 = por %p159, %p160
      %s163 = sadd.s32 %s162, 1
      %p166 = scmp.eq.s32.totalorder %s34, 3
      %p167 = scmp.ne.s32.totalorder %s162, %s164
      %p168 = scmp.eq.s32.totalorder %s34, 0
      %p169 = por %p167, %p168
      %p170 = scmp.ne.s32.totalorder %s162, %s164
      %p171 = scmp.eq.s32.totalorder %s39, 3
      %p172 = por %p170, %p171
      %p173 = scmp.ne.s32.totalorder %s164, %s165
      %p174 = scmp.eq.s32.totalorder %s39, 0
      %p175 = por %p173, %p174
      %p176 = scmp.ne.s32.totalorder %s164, %s165
      %p177 = scmp.eq.s32.totalorder %s40, 3
      %p178 = por %p176, %p177
      %p180 = scmp.ne.s32.totalorder %s165, %s179
      %p181 = scmp.eq.s32.totalorder %s40, 0
      %p182 = por %p180, %p181
      %s184 = sadd.s32 %s183, 1
      %p187 = scmp.eq.s32.totalorder %s34, 3
      %p188 = scmp.ne.s32.totalorder %s183, %s185
      %p189 = scmp.eq.s32.totalorder %s34, 0
      %p190 = por %p188, %p189
      %p191 = scmp.ne.s32.totalorder %s183, %s185
      %p192 = scmp.eq.s32.totalorder %s39, 3
      %p193 = por %p191, %p192
      %p194 = scmp.ne.s32.totalorder %s185, %s186
      %p195 = scmp.eq.s32.totalorder %s39, 0
      %p196 = por %p194, %p195
      %p197 = scmp.ne.s32.totalorder %s185, %s186
      %p198 = scmp.eq.s32.totalorder %s40, 3
      %p199 = por %p197, %p198
      %p201 = scmp.ne.s32.totalorder %s186, %s200
      %p202 = scmp.eq.s32.totalorder %s40, 0
      %p203 = por %p201, %p202
      %s205 = sadd.s32 %s204, 1
      %p208 = scmp.eq.s32.totalorder %s34, 3
      %p209 = scmp.ne.s32.totalorder %s204, %s206
      %p210 = scmp.eq.s32.totalorder %s34, 0
      %p211 = por %p209, %p210
      %p212 = scmp.ne.s32.totalorder %s204, %s206
      %p213 = scmp.eq.s32.totalorder %s39, 3
      %p214 = por %p212, %p213
      %p215 = scmp.ne.s32.totalorder %s206, %s207
      %p216 = scmp.eq.s32.totalorder %s39, 0
      %p217 = por %p215, %p216
      %p218 = scmp.ne.s32.totalorder %s206, %s207
      %p219 = scmp.eq.s32.totalorder %s40, 3
      %p220 = por %p218, %p219
      %p222 = scmp.ne.s32.totalorder %s207, %s221
      %p223 = scmp.eq.s32.totalorder %s40, 0
      %p224 = por %p222, %p223
      %s226 = sadd.s32 %s225, 1
      %p229 = scmp.eq.s32.totalorder %s34, 3
      %p230 = scmp.ne.s32.totalorder %s225, %s227
      %p231 = scmp.eq.s32.totalorder %s34, 0
      %p232 = por %p230, %p231
      %p233 = scmp.ne.s32.totalorder %s225, %s227
      %p234 = scmp.eq.s32.totalorder %s39, 3
      %p235 = por %p233, %p234
      %p236 = scmp.ne.s32.totalorder %s227, %s228
      %p237 = scmp.eq.s32.totalorder %s39, 0
      %p238 = por %p236, %p237
      %p239 = scmp.ne.s32.totalorder %s227, %s228
      %p240 = scmp.eq.s32.totalorder %s40, 3
      %p241 = por %p239, %p240
      %p243 = scmp.ne.s32.totalorder %s228, %s242
      %p244 = scmp.eq.s32.totalorder %s40, 0
      %p245 = por %p243, %p244
      %s247 = sadd.s32 %s246, 1
      %p250 = scmp.eq.s32.totalorder %s34, 3
      %p251 = scmp.ne.s32.totalorder %s246, %s248
      %p252 = scmp.eq.s32.totalorder %s34, 0
      %p253 = por %p251, %p252
      %p254 = scmp.ne.s32.totalorder %s246, %s248
      %p255 = scmp.eq.s32.totalorder %s39, 3
      %p256 = por %p254, %p255
      %p257 = scmp.ne.s32.totalorder %s248, %s249
      %p258 = scmp.eq.s32.totalorder %s39, 0
      %p259 = por %p257, %p258
      %p260 = scmp.ne.s32.totalorder %s248, %s249
      %p261 = scmp.eq.s32.totalorder %s40, 3
      %p262 = por %p260, %p261
      %p264 = scmp.ne.s32.totalorder %s249, %s263
      %p265 = scmp.eq.s32.totalorder %s40, 0
      %p266 = por %p264, %p265
      %s268 = sadd.s32 %s267, 1
      %p271 = scmp.eq.s32.totalorder %s34, 3
      %p272 = scmp.ne.s32.totalorder %s267, %s269
      %p273 = scmp.eq.s32.totalorder %s34, 0
      %p274 = por %p272, %p273
      %p275 = scmp.ne.s32.totalorder %s267, %s269
      %p276 = scmp.eq.s32.totalorder %s39, 3
      %p277 = por %p275, %p276
      %p278 = scmp.ne.s32.totalorder %s269, %s270
      %p279 = scmp.eq.s32.totalorder %s39, 0
      %p280 = por %p278, %p279
      %p281 = scmp.ne.s32.totalorder %s269, %s270
      %p282 = scmp.eq.s32.totalorder %s40, 3
      %p283 = por %p281, %p282
      %p285 = scmp.ne.s32.totalorder %s270, %s284
      %p286 = scmp.eq.s32.totalorder %s40, 0
      %p287 = por %p285, %p286
      %s289 = sadd.s32 %s288, 1
      %p292 = scmp.eq.s32.totalorder %s34, 3
      %p293 = scmp.ne.s32.totalorder %s288, %s290
      %p294 = scmp.eq.s32.totalorder %s34, 0
      %p295 = por %p293, %p294
      %p296 = scmp.ne.s32.totalorder %s288, %s290
      %p297 = scmp.eq.s32.totalorder %s39, 3
      %p298 = por %p296, %p297
      %p299 = scmp.ne.s32.totalorder %s290, %s291
      %p300 = scmp.eq.s32.totalorder %s39, 0
      %p301 = por %p299, %p300
      %p302 = scmp.ne.s32.totalorder %s290, %s291
      %p303 = scmp.eq.s32.totalorder %s40, 3
      %p304 = por %p302, %p303
      %p306 = scmp.ne.s32.totalorder %s291, %s305
      %p307 = scmp.eq.s32.totalorder %s40, 0
      %p308 = por %p306, %p307
      %s310 = sadd.s32 %s309, 1
      %p313 = scmp.eq.s32.totalorder %s34, 3
      %p314 = scmp.ne.s32.totalorder %s309, %s311
      %p315 = scmp.eq.s32.totalorder %s34, 0
      %p316 = por %p314, %p315
      %p317 = scmp.ne.s32.totalorder %s309, %s311
      %p318 = scmp.eq.s32.totalorder %s39, 3
      %p319 = por %p317, %p318
      %p320 = scmp.ne.s32.totalorder %s311, %s312
      %p321 = scmp.eq.s32.totalorder %s39, 0
      %p322 = por %p320, %p321
      %p323 = scmp.ne.s32.totalorder %s311, %s312
      %p324 = scmp.eq.s32.totalorder %s40, 3
      %p325 = por %p323, %p324
      %p327 = scmp.ne.s32.totalorder %s312, %s326
      %p328 = scmp.eq.s32.totalorder %s40, 0
      %p329 = por %p327, %p328
      %s330 = ssub.s32 %s41, %s53
      %s331 = ssub.s32 %s42, %s49
      %s332 = sor.u32 %s330, %s331
      %p333 = scmp.eq.s32.totalorder %s332, 0
      %s335 = sadd.s32 %s334, 1
      %s336 = scalar_select %p333, %s334, %s335
      %p339 = pneg %p333
      %p340 = scmp.eq.s32.totalorder %s34, 3
      %p341 = por %p339, %p340
      %p342 = scmp.ne.s32.totalorder %s334, %s337
      %p343 = scmp.eq.s32.totalorder %s34, 0
      %p344 = por %p342, %p343
      %p345 = scmp.ne.s32.totalorder %s334, %s337
      %p346 = scmp.eq.s32.totalorder %s39, 3
      %p347 = por %p345, %p346
      %p348 = scmp.ne.s32.totalorder %s337, %s338
      %p349 = scmp.eq.s32.totalorder %s39, 0
      %p350 = por %p348, %p349
      %p351 = scmp.ne.s32.totalorder %s337, %s338
      %p352 = scmp.eq.s32.totalorder %s40, 3
      %p353 = por %p351, %p352
      %p355 = scmp.ne.s32.totalorder %s338, %s354
      %p356 = scmp.eq.s32.totalorder %s40, 0
      %p357 = por %p355, %p356
      %p358 = scmp.le.s32.totalorder 1, %s34
      %p359 = scmp.lt.s32.totalorder %s34, 5
      %p360 = pnand %p358, %p359
      %p361 = pneg %p360
      // Predicated region
      $region9: #{transformer_forward.6} parent=5 // pred_check
        _
      $region10: #{transformer_forward.6} parent=5 // pred_check_branch
        %363 = sbr.rel (%p360) target = $region12
      $region11: #{transformer_forward.6} parent=5 // pred_region
        %s364 = ssub.s32 %s34, 1
        // Predicated region
        $region13: #{transformer_forward.6} parent=11 // pred_check
          %p365 = pneg %p175
        $region14: #{transformer_forward.6} parent=11 // pred_check_branch
          %367 = sbr.rel (%p365) target = $region16
        $region15: #{transformer_forward.6} parent=11 // pred_region
          %s369 = ssub.s32 256, 256
          %370 = vsyncadd [#allocation10], %s369
          %s371 = sshll.u32 [#allocation11], 4
          %s372 = int_to_ptr.vmem [resolvable:$true] %s371
          %377 = dma.hbm_to_vmem [thread:$0]  %s4, 256, %s372, [#allocation10], 64, 64, 4
        $region16: #{transformer_forward.6} parent=11 // pred_fallthru
          _
        // Predicated region
        $region17: #{transformer_forward.6} parent=11 // pred_check
          %p378 = pneg %p196
        $region18: #{transformer_forward.6} parent=11 // pred_check_branch
          %380 = sbr.rel (%p378) target = $region20
        $region19: #{transformer_forward.6} parent=11 // pred_region
          %s382 = ssub.s32 16, 16
          %383 = vsyncadd [#allocation13], %s382
          %s385 = sshll.u32 [#allocation12], 4
          %s386 = int_to_ptr.vmem [resolvable:$true] %s385
          %388 = dma.hbm_to_vmem [thread:$0]  %s5, 16, %s386, [#allocation13]
        $region20: #{transformer_forward.6} parent=11 // pred_fallthru
          _
        // Predicated region
        $region21: #{transformer_forward.6} parent=11 // pred_check
          %p389 = pneg %p217
        $region22: #{transformer_forward.6} parent=11 // pred_check_branch
          %391 = sbr.rel (%p389) target = $region24
        $region23: #{transformer_forward.6} parent=11 // pred_region
          %s393 = ssub.s32 16, 16
          %394 = vsyncadd [#allocation13], %s393
          %s396 = sshll.u32 [#allocation14], 4
          %s397 = int_to_ptr.vmem [resolvable:$true] %s396
          %399 = dma.hbm_to_vmem [thread:$0]  %s6, 16, %s397, [#allocation13]
        $region24: #{transformer_forward.6} parent=11 // pred_fallthru
          _
        // Predicated region
        $region25: #{transformer_forward.6} parent=11 // pred_check
          %p400 = pneg %p238
        $region26: #{transformer_forward.6} parent=11 // pred_check_branch
          %402 = sbr.rel (%p400) target = $region28
        $region27: #{transformer_forward.6} parent=11 // pred_region
          %s404 = ssub.s32 16, 16
          %405 = vsyncadd [#allocation16], %s404
          %s407 = sshll.u32 [#allocation15], 4
          %s408 = int_to_ptr.vmem [resolvable:$true] %s407
          %410 = dma.hbm_to_vmem [thread:$0]  %s7, 16, %s408, [#allocation16]
        $region28: #{transformer_forward.6} parent=11 // pred_fallthru
          _
        // Predicated region
        $region29: #{transformer_forward.6} parent=11 // pred_check
          %p411 = pneg %p259
        $region30: #{transformer_forward.6} parent=11 // pred_check_branch
          %413 = sbr.rel (%p411) target = $region32
        $region31: #{transformer_forward.6} parent=11 // pred_region
          %s415 = ssub.s32 256, 256
          %416 = vsyncadd [#allocation16], %s415
          %s417 = sshll.u32 [#allocation17], 4
          %s418 = int_to_ptr.vmem [resolvable:$true] %s417
          %423 = dma.hbm_to_vmem [thread:$0]  %s8, 256, %s418, [#allocation16], 64, 64, 4
        $region32: #{transformer_forward.6} parent=11 // pred_fallthru
          _
        // Predicated region
        $region33: #{transformer_forward.6} parent=11 // pred_check
          %p424 = pneg %p280
        $region34: #{transformer_forward.6} parent=11 // pred_check_branch
          %426 = sbr.rel (%p424) target = $region36
        $region35: #{transformer_forward.6} parent=11 // pred_region
          %s428 = ssub.s32 16, 16
          %429 = vsyncadd [#allocation19], %s428
          %s431 = sshll.u32 [#allocation18], 4
          %s432 = int_to_ptr.vmem [resolvable:$true] %s431
          %434 = dma.hbm_to_vmem [thread:$0]  %s9, 16, %s432, [#allocation19]
        $region36: #{transformer_forward.6} parent=11 // pred_fallthru
          _
        // Predicated region
        $region37: #{transformer_forward.6} parent=11 // pred_check
          %p435 = pneg %p301
        $region38: #{transformer_forward.6} parent=11 // pred_check_branch
          %437 = sbr.rel (%p435) target = $region40
        $region39: #{transformer_forward.6} parent=11 // pred_region
          %s439 = ssub.s32 1024, 1024
          %440 = vsyncadd [#allocation19], %s439
          %s441 = sshll.u32 [#allocation20], 4
          %s442 = int_to_ptr.vmem [resolvable:$true] %s441
          %447 = dma.hbm_to_vmem [thread:$0]  %s10, 1024, %s442, [#allocation19], 64, 64, 4
        $region40: #{transformer_forward.6} parent=11 // pred_fallthru
          _
        // Predicated region
        $region41: #{transformer_forward.6} parent=11 // pred_check
          %p448 = pneg %p322
        $region42: #{transformer_forward.6} parent=11 // pred_check_branch
          %450 = sbr.rel (%p448) target = $region44
        $region43: #{transformer_forward.6} parent=11 // pred_region
          %s452 = ssub.s32 16, 16
          %453 = vsyncadd [#allocation22], %s452
          %s455 = sshll.u32 [#allocation21], 4
          %s456 = int_to_ptr.vmem [resolvable:$true] %s455
          %458 = dma.hbm_to_vmem [thread:$0]  %s11, 16, %s456, [#allocation22]
        $region44: #{transformer_forward.6} parent=11 // pred_fallthru
          _
      $region12: #{transformer_forward.6} parent=5 // pred_fallthru
        _
      %p459 = scmp.lt.s32.totalorder %s34, 4
      // Predicated region
      $region45: #{transformer_forward.6} parent=5 // pred_check
        %p460 = pneg %p459
      $region46: #{transformer_forward.6} parent=5 // pred_check_branch
        %462 = sbr.rel (%p460) target = $region48
      $region47: #{transformer_forward.6} parent=5 // pred_region
        // Predicated region
        $region49: #{transformer_forward.6} parent=47 // pred_check
          %p463 = pneg %p68
        $region50: #{transformer_forward.6} parent=47 // pred_check_branch
          %465 = sbr.rel (%p463) target = $region52
        $region51: #{transformer_forward.6} parent=47 // pred_region
          %s466 = sand.u32 %s58, 1
          %s467 = scalar_lea.sflag [#allocation4], %s466
          %s468 = sand.u32 %s58, 1
          %s469 = smul.addr %s468, 8
          %s470 = scalar_lea.vmem [#allocation3], %s469
          %s472 = ssub.s32 128, 128
          %473 = vsyncadd %s467, %s472
          %s474 = smul.addr %s41, 2
          %s475 = sadd.s32 %s42, %s474
          %s476 = smul.addr %s475, 128
          %s477 = scalar_lea.hbm %s0, %s476
          %s479 = sshll.u32 %s470, 4
          %s480 = int_to_ptr.vmem [resolvable:$true] %s479
          %482 = dma.hbm_to_vmem [thread:$0]  %s477, 128, %s480, %s467
        $region52: #{transformer_forward.6} parent=47 // pred_fallthru
          _
        // Predicated region
        $region53: #{transformer_forward.6} parent=47 // pred_check
          %p483 = pneg %p96
        $region54: #{transformer_forward.6} parent=47 // pred_check_branch
          %485 = sbr.rel (%p483) target = $region56
        $region55: #{transformer_forward.6} parent=47 // pred_region
          %s486 = sand.u32 %s34, 1
          %s487 = scalar_lea.sflag [#allocation7], %s486
          %s488 = sand.u32 %s86, 1
          %s489 = smul.addr %s488, 16
          %s490 = scalar_lea.vmem [#allocation6], %s489
          %s492 = ssub.s32 256, 256
          %493 = vsyncadd %s487, %s492
          %s494 = smul.addr %s41, 8
          %s495 = sadd.s32 %s42, %s494
          %s496 = smul.addr %s495, 64
          %s497 = scalar_lea.hbm %s1, %s496
          %s498 = sshll.u32 %s490, 4
          %s499 = int_to_ptr.vmem [resolvable:$true] %s498
          %504 = dma.hbm_to_vmem [thread:$0]  %s497, 256, %s499, %s487, 128, 64, 4
        $region56: #{transformer_forward.6} parent=47 // pred_fallthru
          _
        // Predicated region
        $region57: #{transformer_forward.6} parent=47 // pred_check
          %p505 = pneg %p122
        $region58: #{transformer_forward.6} parent=47 // pred_check_branch
          %507 = sbr.rel (%p505) target = $region60
        $region59: #{transformer_forward.6} parent=47 // pred_region
          %s508 = sand.u32 %s34, 1
          %s509 = scalar_lea.sflag [#allocation7], %s508
          %s510 = sand.u32 %s112, 1
          %s511 = smul.addr %s510, 32
          %s512 = scalar_lea.vmem [#allocation8], %s511
          %s514 = ssub.s32 512, 512
          %515 = vsyncadd %s509, %s514
          %s516 = smul.addr %s41, 8
          %s517 = smul.addr %s516, 64
          %s518 = scalar_lea.hbm %s2, %s517
          %s519 = sshll.u32 %s512, 4
          %s520 = int_to_ptr.vmem [resolvable:$true] %s519
          %525 = dma.hbm_to_vmem [thread:$0]  %s518, 512, %s520, %s509, 64, 64, 4
        $region60: #{transformer_forward.6} parent=47 // pred_fallthru
          _
        // Predicated region
        $region61: #{transformer_forward.6} parent=47 // pred_check
          %p526 = pneg %p148
        $region62: #{transformer_forward.6} parent=47 // pred_check_branch
          %528 = sbr.rel (%p526) target = $region64
        $region63: #{transformer_forward.6} parent=47 // pred_region
          %s529 = sand.u32 %s34, 1
          %s530 = scalar_lea.sflag [#allocation10], %s529
          %s531 = sand.u32 %s138, 1
          %s532 = smul.addr %s531, 32
          %s533 = scalar_lea.vmem [#allocation9], %s532
          %s535 = ssub.s32 512, 512
          %536 = vsyncadd %s530, %s535
          %s537 = smul.addr %s41, 8
          %s538 = smul.addr %s537, 64
          %s539 = scalar_lea.hbm %s3, %s538
          %s540 = sshll.u32 %s533, 4
          %s541 = int_to_ptr.vmem [resolvable:$true] %s540
          %546 = dma.hbm_to_vmem [thread:$0]  %s539, 512, %s541, %s530, 64, 64, 4
        $region64: #{transformer_forward.6} parent=47 // pred_fallthru
          _
      $region48: #{transformer_forward.6} parent=5 // pred_fallthru
        _
      %p547 = scmp.le.s32.totalorder 1, %s34
      %p548 = scmp.lt.s32.totalorder %s34, 5
      %p549 = pnand %p547, %p548
      %p550 = pneg %p549
      // Predicated region
      $region65: #{transformer_forward.6} parent=5 // pred_check
        _
      $region66: #{transformer_forward.6} parent=5 // pred_check_branch
        %552 = sbr.rel (%p549) target = $region68
      $region67: #{transformer_forward.6} parent=5 // pred_region
        %s553 = ssub.s32 %s34, 1
        %s554 = sand.u32 %s61, 1
        %s555 = scalar_lea.sflag [#allocation4], %s554
        %s556 = sand.u32 %s61, 1
        %s557 = smul.addr %s556, 8
        %s558 = scalar_lea.vmem [#allocation3], %s557
        // Predicated region
        $region69: #{transformer_forward.6} parent=67 // pred_check
          %p559 = pneg %p74
        $region70: #{transformer_forward.6} parent=67 // pred_check_branch
          %561 = sbr.rel (%p559) target = $region72
        $region71: #{transformer_forward.6} parent=67 // pred_region
          %562 = dma.done %s555, 128
        $region72: #{transformer_forward.6} parent=67 // pred_fallthru
          _
        %s563 = sand.u32 %s39, 1
        %s564 = scalar_lea.sflag [#allocation7], %s563
        %s565 = sand.u32 %s89, 1
        %s566 = smul.addr %s565, 16
        %s567 = scalar_lea.vmem [#allocation6], %s566
        // Predicated region
        $region73: #{transformer_forward.6} parent=67 // pred_check
          %p568 = pneg %p102
        $region74: #{transformer_forward.6} parent=67 // pred_check_branch
          %570 = sbr.rel (%p568) target = $region76
        $region75: #{transformer_forward.6} parent=67 // pred_region
          %571 = dma.done %s564, 256
        $region76: #{transformer_forward.6} parent=67 // pred_fallthru
          _
        %s572 = sand.u32 %s39, 1
        %s573 = scalar_lea.sflag [#allocation7], %s572
        %s574 = sand.u32 %s115, 1
        %s575 = smul.addr %s574, 32
        %s576 = scalar_lea.vmem [#allocation8], %s575
        // Predicated region
        $region77: #{transformer_forward.6} parent=67 // pred_check
          %p577 = pneg %p128
        $region78: #{transformer_forward.6} parent=67 // pred_check_branch
          %579 = sbr.rel (%p577) target = $region80
        $region79: #{transformer_forward.6} parent=67 // pred_region
          %580 = dma.done %s573, 512
        $region80: #{transformer_forward.6} parent=67 // pred_fallthru
          _
        %s581 = sand.u32 %s39, 1
        %s582 = scalar_lea.sflag [#allocation10], %s581
        %s583 = sand.u32 %s141, 1
        %s584 = smul.addr %s583, 32
        %s585 = scalar_lea.vmem [#allocation9], %s584
        // Predicated region
        $region81: #{transformer_forward.6} parent=67 // pred_check
          %p586 = pneg %p154
        $region82: #{transformer_forward.6} parent=67 // pred_check_branch
          %588 = sbr.rel (%p586) target = $region84
        $region83: #{transformer_forward.6} parent=67 // pred_region
          %589 = dma.done %s582, 512
        $region84: #{transformer_forward.6} parent=67 // pred_fallthru
          _
        // Predicated region
        $region85: #{transformer_forward.6} parent=67 // pred_check
          %p590 = pneg %p175
        $region86: #{transformer_forward.6} parent=67 // pred_check_branch
          %592 = sbr.rel (%p590) target = $region88
        $region87: #{transformer_forward.6} parent=67 // pred_region
          %593 = dma.done [#allocation10], 256
        $region88: #{transformer_forward.6} parent=67 // pred_fallthru
          _
        // Predicated region
        $region89: #{transformer_forward.6} parent=67 // pred_check
          %p594 = pneg %p196
        $region90: #{transformer_forward.6} parent=67 // pred_check_branch
          %596 = sbr.rel (%p594) target = $region92
        $region91: #{transformer_forward.6} parent=67 // pred_region
          %597 = dma.done [#allocation13], 16
        $region92: #{transformer_forward.6} parent=67 // pred_fallthru
          _
        // Predicated region
        $region93: #{transformer_forward.6} parent=67 // pred_check
          %p598 = pneg %p217
        $region94: #{transformer_forward.6} parent=67 // pred_check_branch
          %600 = sbr.rel (%p598) target = $region96
        $region95: #{transformer_forward.6} parent=67 // pred_region
          %601 = dma.done [#allocation13], 16
        $region96: #{transformer_forward.6} parent=67 // pred_fallthru
          _
        // Predicated region
        $region97: #{transformer_forward.6} parent=67 // pred_check
          %p602 = pneg %p238
        $region98: #{transformer_forward.6} parent=67 // pred_check_branch
          %604 = sbr.rel (%p602) target = $region100
        $region99: #{transformer_forward.6} parent=67 // pred_region
          %605 = dma.done [#allocation16], 16
        $region100: #{transformer_forward.6} parent=67 // pred_fallthru
          _
        // Predicated region
        $region101: #{transformer_forward.6} parent=67 // pred_check
          %p606 = pneg %p259
        $region102: #{transformer_forward.6} parent=67 // pred_check_branch
          %608 = sbr.rel (%p606) target = $region104
        $region103: #{transformer_forward.6} parent=67 // pred_region
          %609 = dma.done [#allocation16], 256
        $region104: #{transformer_forward.6} parent=67 // pred_fallthru
          _
        // Predicated region
        $region105: #{transformer_forward.6} parent=67 // pred_check
          %p610 = pneg %p280
        $region106: #{transformer_forward.6} parent=67 // pred_check_branch
          %612 = sbr.rel (%p610) target = $region108
        $region107: #{transformer_forward.6} parent=67 // pred_region
          %613 = dma.done [#allocation19], 16
        $region108: #{transformer_forward.6} parent=67 // pred_fallthru
          _
        // Predicated region
        $region109: #{transformer_forward.6} parent=67 // pred_check
          %p614 = pneg %p301
        $region110: #{transformer_forward.6} parent=67 // pred_check_branch
          %616 = sbr.rel (%p614) target = $region112
        $region111: #{transformer_forward.6} parent=67 // pred_region
          %617 = dma.done [#allocation19], 1024
        $region112: #{transformer_forward.6} parent=67 // pred_fallthru
          _
        // Predicated region
        $region113: #{transformer_forward.6} parent=67 // pred_check
          %p618 = pneg %p322
        $region114: #{transformer_forward.6} parent=67 // pred_check_branch
          %620 = sbr.rel (%p618) target = $region116
        $region115: #{transformer_forward.6} parent=67 // pred_region
          %621 = dma.done [#allocation22], 16
        $region116: #{transformer_forward.6} parent=67 // pred_fallthru
          _
        %s622 = sand.u32 %s61, 1
        %s623 = scalar_lea.sflag [#allocation4], %s622
        %s624 = sand.u32 %s61, 1
        %s625 = smul.addr %s624, 8
        %s626 = scalar_lea.vmem [#allocation3], %s625
        %p627 = pneg %p74
        %p628 = pneg %p71
        %s629 = sand.u32 %s39, 1
        %s630 = scalar_lea.sflag [#allocation7], %s629
        %s631 = sand.u32 %s89, 1
        %s632 = smul.addr %s631, 16
        %s633 = scalar_lea.vmem [#allocation6], %s632
        %p634 = pneg %p102
        %p635 = pneg %p99
        %s636 = sand.u32 %s39, 1
        %s637 = scalar_lea.sflag [#allocation7], %s636
        %s638 = sand.u32 %s115, 1
        %s639 = smul.addr %s638, 32
        %s640 = scalar_lea.vmem [#allocation8], %s639
        %p641 = pneg %p128
        %p642 = pneg %p125
        %s643 = sand.u32 %s39, 1
        %s644 = scalar_lea.sflag [#allocation10], %s643
        %s645 = sand.u32 %s141, 1
        %s646 = smul.addr %s645, 32
        %s647 = scalar_lea.vmem [#allocation9], %s646
        %p648 = pneg %p154
        %p649 = pneg %p151
        %p650 = pneg %p175
        %p651 = pneg %p172
        %p652 = pneg %p196
        %p653 = pneg %p193
        %p654 = pneg %p217
        %p655 = pneg %p214
        %p656 = pneg %p238
        %p657 = pneg %p235
        %p658 = pneg %p259
        %p659 = pneg %p256
        %p660 = pneg %p280
        %p661 = pneg %p277
        %p662 = pneg %p301
        %p663 = pneg %p298
        %p664 = pneg %p322
        %p665 = pneg %p319
        %p666 = pneg %p350
        %p667 = pneg %p347
        %s668 = sand.u32 %s337, 1
        %s669 = scalar_lea.sflag [#allocation5], %s668
        %s670 = sand.u32 %s337, 1
        %s671 = smul.addr %s670, 8
        %s672 = scalar_lea.vmem [#allocation23], %s671
        %v674 = vld [vmem:[%s567] sm:$0xf]
        %s675 = scalar_lea.vmem %s567, 4 [#allocation6]
        %v676 = vld [vmem:[%s675] sm:$0xf]
        %s677 = scalar_lea.vmem %s567, 8 [#allocation6]
        %v678 = vld [vmem:[%s677] sm:$0xf]
        %s679 = scalar_lea.vmem %s567, 12 [#allocation6]
        %v680 = vld [vmem:[%s679] sm:$0xf]
        // While loop
        $region117: #{transformer_forward.6} parent=67 // loop_pre_header
          _
        $region118: #{transformer_forward.6} parent=67 // loop_header
          %s682 = sphi 0, %s684
          %p683 = scmp.ge.s32.totalorder %s682, %s44
          %v687 = vphi -1e+30, %v756
          %v688 = vphi 0.0, %v767
          %v689 = vphi 0.0, %v816
          %v690 = vphi -1e+30, %v873
          %v691 = vphi 0.0, %v884
          %v692 = vphi 0.0, %v933
          %v693 = vphi -1e+30, %v990
          %v694 = vphi 0.0, %v1001
          %v695 = vphi 0.0, %v1050
          %v696 = vphi -1e+30, %v1107
          %v697 = vphi 0.0, %v1118
          %v698 = vphi 0.0, %v1167
        $region119: #{transformer_forward.6} parent=67 // loop_header_branch
          %686 = sbr.rel (%p683) target = $region123
        $region120: #{transformer_forward.6} parent=67 // loop_body
          %s699 = smul.addr %s682, 4
          %s700 = scalar_lea.vmem %s576, %s699 [#allocation8]
          %v701 = vld [vmem:[%s700] sm:$0xf]
          %s702 = smul.addr %s682, 4
          %s703 = scalar_lea.vmem %s585, %s702 [#allocation9]
          %v704 = vld [vmem:[%s703] sm:$0xf]
          %vm705 = vcmask 64512
          %v707 = vsel %vm705, %v674, 0
          %vm709 = vcmask 1043456
          %v711 = vsel %vm709, %v701, 0
          %713 = vmatprep.subr.bf16.mxu0 0
          %714 = vmatpush1.bf16.msra.mxu0 %v711
          %715 = vmatprep.subr.bf16.mxu0 0
          %716 = vmatpush1.bf16.msra.mxu0 0
          %717 = vmatprep.subr.bf16.mxu0 0
          %718 = vmatpush1.bf16.msra.mxu0 0
          %719 = vmatprep.subr.bf16.mxu0 0
          %720 = vmatpush1.bf16.msra.mxu0 0
          %721 = vmatprep.subr.bf16.mxu0 0
          %722 = vmatpush1.bf16.msra.mxu0 0
          %723 = vmatprep.subr.bf16.mxu0 0
          %724 = vmatpush1.bf16.msra.mxu0 0
          %725 = vmatprep.subr.bf16.mxu0 0
          %726 = vmatpush1.bf16.msra.mxu0 0
          %727 = vmatprep.subr.bf16.mxu0 0
          %728 = vmatpush1.bf16.msra.mxu0 0
          %729 = vmatprep.subr.bf16.mxu0 0
          %730 = vmatpush1.bf16.msra.mxu0 0
          %731 = vmatprep.subr.bf16.mxu0 0
          %732 = vmatpush1.bf16.msra.mxu0 0
          %733 = vmatprep.subr.bf16.mxu0 0
          %734 = vmatpush1.bf16.msra.mxu0 0
          %735 = vmatprep.subr.bf16.mxu0 0
          %736 = vmatpush1.bf16.msra.mxu0 0
          %737 = vmatprep.subr.bf16.mxu0 0
          %738 = vmatpush1.bf16.msra.mxu0 0
          %739 = vmatprep.subr.bf16.mxu0 0
          %740 = vmatpush1.bf16.msra.mxu0 0
          %741 = vmatprep.subr.bf16.mxu0 0
          %742 = vmatpush1.bf16.msra.mxu0 0
          %743 = vmatprep.subr.bf16.mxu0 0
          %744 = vmatpush1.bf16.msra.mxu0 0
          %745 = vmatprep.mubr.bf16.mxu0 0
          %746 = vmatmul.mubr.bf16.gmra.mrb[0].mxu0 %v707
          %v747 = vpop.f32.mrb[0].mxu0
          %v748 = vadd.f32 0.0, %v747
          %v749 = vpop.f32.mrb[0].mxu0
          %v750 = vpop.f32.mrb[0].mxu0
          %v751 = vpop.f32.mrb[0].mxu0
          %752 = vdwg.mxu0
          %v753 = vsel %vm705, %v748, -inf
          %754 = vmax.xlane.f32.xlu0 %v753
          %v755 = vpop.xlane.xlu0 %754
          %v756 = vmax.f32 %v687, %v755
          %v757 = vsub.f32 %v687, %v756
          %v758 = vmul.f32 %v757, 1.442695
          %v759 = vpow.pop %v758
          %v760 = vsub.f32 %v748, %v756
          %v761 = vmul.f32 %v760, 1.442695
          %v762 = vpow.pop %v761
          %v763 = vmul.f32 %v759, %v688
          %v764 = vsel %vm705, %v762, 0.0
          %765 = vadd.xlane.f32.xlu0 %v764
          %v766 = vpop.xlane.xlu0 %765
          %v767 = vadd.f32 %v763, %v766
          %v768 = vpack.c.bf16 %v762, %v762
          %v770 = vsel %vm705, %v768, 0
          %v773 = vsel %vm709, %v704, 0
          %775 = vmatprep.subr.bf16.mxu0 0
          %776 = vmatpush1.bf16.msra.mxu0 %v773
          %777 = vmatprep.subr.bf16.mxu0 0
          %778 = vmatpush1.bf16.msra.mxu0 0
          %779 = vmatprep.subr.bf16.mxu0 0
          %780 = vmatpush1.bf16.msra.mxu0 0
          %781 = vmatprep.subr.bf16.mxu0 0
          %782 = vmatpush1.bf16.msra.mxu0 0
          %783 = vmatprep.subr.bf16.mxu0 0
          %784 = vmatpush1.bf16.msra.mxu0 0
          %785 = vmatprep.subr.bf16.mxu0 0
          %786 = vmatpush1.bf16.msra.mxu0 0
          %787 = vmatprep.subr.bf16.mxu0 0
          %788 = vmatpush1.bf16.msra.mxu0 0
          %789 = vmatprep.subr.bf16.mxu0 0
          %790 = vmatpush1.bf16.msra.mxu0 0
          %791 = vmatprep.subr.bf16.mxu0 0
          %792 = vmatpush1.bf16.msra.mxu0 0
          %793 = vmatprep.subr.bf16.mxu0 0
          %794 = vmatpush1.bf16.msra.mxu0 0
          %795 = vmatprep.subr.bf16.mxu0 0
          %796 = vmatpush1.bf16.msra.mxu0 0
          %797 = vmatprep.subr.bf16.mxu0 0
          %798 = vmatpush1.bf16.msra.mxu0 0
          %799 = vmatprep.subr.bf16.mxu0 0
          %800 = vmatpush1.bf16.msra.mxu0 0
          %801 = vmatprep.subr.bf16.mxu0 0
          %802 = vmatpush1.bf16.msra.mxu0 0
          %803 = vmatprep.subr.bf16.mxu0 0
          %804 = vmatpush1.bf16.msra.mxu0 0
          %805 = vmatprep.subr.bf16.mxu0 0
          %806 = vmatpush1.bf16.msra.mxu0 0
          %807 = vmatprep.mubr.bf16.mxu0 0
          %808 = vmatmul.mubr.bf16.gmra.mrb[0].mxu0 %v770
          %v809 = vpop.f32.mrb[0].mxu0
          %v810 = vadd.f32 0.0, %v809
          %v811 = vpop.f32.mrb[0].mxu0
          %v812 = vpop.f32.mrb[0].mxu0
          %v813 = vpop.f32.mrb[0].mxu0
          %814 = vdwg.mxu0
          %v815 = vmul.f32 %v759, %v689
          %v816 = vadd.f32 %v815, %v810
          %s817 = sadd.s32 %s682, 2
          %s818 = smul.addr %s817, 4
          %s819 = scalar_lea.vmem %s576, %s818 [#allocation8]
          %v820 = vld [vmem:[%s819] sm:$0xf]
          %s821 = smul.addr %s817, 4
          %s822 = scalar_lea.vmem %s585, %s821 [#allocation9]
          %v823 = vld [vmem:[%s822] sm:$0xf]
          %v825 = vsel %vm705, %v676, 0
          %v828 = vsel %vm709, %v820, 0
          %830 = vmatprep.subr.bf16.mxu0 0
          %831 = vmatpush1.bf16.msra.mxu0 %v828
          %832 = vmatprep.subr.bf16.mxu0 0
          %833 = vmatpush1.bf16.msra.mxu0 0
          %834 = vmatprep.subr.bf16.mxu0 0
          %835 = vmatpush1.bf16.msra.mxu0 0
          %836 = vmatprep.subr.bf16.mxu0 0
          %837 = vmatpush1.bf16.msra.mxu0 0
          %838 = vmatprep.subr.bf16.mxu0 0
          %839 = vmatpush1.bf16.msra.mxu0 0
          %840 = vmatprep.subr.bf16.mxu0 0
          %841 = vmatpush1.bf16.msra.mxu0 0
          %842 = vmatprep.subr.bf16.mxu0 0
          %843 = vmatpush1.bf16.msra.mxu0 0
          %844 = vmatprep.subr.bf16.mxu0 0
          %845 = vmatpush1.bf16.msra.mxu0 0
          %846 = vmatprep.subr.bf16.mxu0 0
          %847 = vmatpush1.bf16.msra.mxu0 0
          %848 = vmatprep.subr.bf16.mxu0 0
          %849 = vmatpush1.bf16.msra.mxu0 0
          %850 = vmatprep.subr.bf16.mxu0 0
          %851 = vmatpush1.bf16.msra.mxu0 0
          %852 = vmatprep.subr.bf16.mxu0 0
          %853 = vmatpush1.bf16.msra.mxu0 0
          %854 = vmatprep.subr.bf16.mxu0 0
          %855 = vmatpush1.bf16.msra.mxu0 0
          %856 = vmatprep.subr.bf16.mxu0 0
          %857 = vmatpush1.bf16.msra.mxu0 0
          %858 = vmatprep.subr.bf16.mxu0 0
          %859 = vmatpush1.bf16.msra.mxu0 0
          %860 = vmatprep.subr.bf16.mxu0 0
          %861 = vmatpush1.bf16.msra.mxu0 0
          %862 = vmatprep.mubr.bf16.mxu0 0
          %863 = vmatmul.mubr.bf16.gmra.mrb[0].mxu0 %v825
          %v864 = vpop.f32.mrb[0].mxu0
          %v865 = vadd.f32 0.0, %v864
          %v866 = vpop.f32.mrb[0].mxu0
          %v867 = vpop.f32.mrb[0].mxu0
          %v868 = vpop.f32.mrb[0].mxu0
          %869 = vdwg.mxu0
          %v870 = vsel %vm705, %v865, -inf
          %871 = vmax.xlane.f32.xlu0 %v870
          %v872 = vpop.xlane.xlu0 %871
          %v873 = vmax.f32 %v690, %v872
          %v874 = vsub.f32 %v690, %v873
          %v875 = vmul.f32 %v874, 1.442695
          %v876 = vpow.pop %v875
          %v877 = vsub.f32 %v865, %v873
          %v878 = vmul.f32 %v877, 1.442695
          %v879 = vpow.pop %v878
          %v880 = vmul.f32 %v876, %v691
          %v881 = vsel %vm705, %v879, 0.0
          %882 = vadd.xlane.f32.xlu0 %v881
          %v883 = vpop.xlane.xlu0 %882
          %v884 = vadd.f32 %v880, %v883
          %v885 = vpack.c.bf16 %v879, %v879
          %v887 = vsel %vm705, %v885, 0
          %v890 = vsel %vm709, %v823, 0
          %892 = vmatprep.subr.bf16.mxu0 0
          %893 = vmatpush1.bf16.msra.mxu0 %v890
          %894 = vmatprep.subr.bf16.mxu0 0
          %895 = vmatpush1.bf16.msra.mxu0 0
          %896 = vmatprep.subr.bf16.mxu0 0
          %897 = vmatpush1.bf16.msra.mxu0 0
          %898 = vmatprep.subr.bf16.mxu0 0
          %899 = vmatpush1.bf16.msra.mxu0 0
          %900 = vmatprep.subr.bf16.mxu0 0
          %901 = vmatpush1.bf16.msra.mxu0 0
          %902 = vmatprep.subr.bf16.mxu0 0
          %903 = vmatpush1.bf16.msra.mxu0 0
          %904 = vmatprep.subr.bf16.mxu0 0
          %905 = vmatpush1.bf16.msra.mxu0 0
          %906 = vmatprep.subr.bf16.mxu0 0
          %907 = vmatpush1.bf16.msra.mxu0 0
          %908 = vmatprep.subr.bf16.mxu0 0
          %909 = vmatpush1.bf16.msra.mxu0 0
          %910 = vmatprep.subr.bf16.mxu0 0
          %911 = vmatpush1.bf16.msra.mxu0 0
          %912 = vmatprep.subr.bf16.mxu0 0
          %913 = vmatpush1.bf16.msra.mxu0 0
          %914 = vmatprep.subr.bf16.mxu0 0
          %915 = vmatpush1.bf16.msra.mxu0 0
          %916 = vmatprep.subr.bf16.mxu0 0
          %917 = vmatpush1.bf16.msra.mxu0 0
          %918 = vmatprep.subr.bf16.mxu0 0
          %919 = vmatpush1.bf16.msra.mxu0 0
          %920 = vmatprep.subr.bf16.mxu0 0
          %921 = vmatpush1.bf16.msra.mxu0 0
          %922 = vmatprep.subr.bf16.mxu0 0
          %923 = vmatpush1.bf16.msra.mxu0 0
          %924 = vmatprep.mubr.bf16.mxu0 0
          %925 = vmatmul.mubr.bf16.gmra.mrb[0].mxu0 %v887
          %v926 = vpop.f32.mrb[0].mxu0
          %v927 = vadd.f32 0.0, %v926
          %v928 = vpop.f32.mrb[0].mxu0
          %v929 = vpop.f32.mrb[0].mxu0
          %v930 = vpop.f32.mrb[0].mxu0
          %931 = vdwg.mxu0
          %v932 = vmul.f32 %v876, %v692
          %v933 = vadd.f32 %v932, %v927
          %s934 = sadd.s32 %s682, 4
          %s935 = smul.addr %s934, 4
          %s936 = scalar_lea.vmem %s576, %s935 [#allocation8]
          %v937 = vld [vmem:[%s936] sm:$0xf]
          %s938 = smul.addr %s934, 4
          %s939 = scalar_lea.vmem %s585, %s938 [#allocation9]
          %v940 = vld [vmem:[%s939] sm:$0xf]
          %v942 = vsel %vm705, %v678, 0
          %v945 = vsel %vm709, %v937, 0
          %947 = vmatprep.subr.bf16.mxu0 0
          %948 = vmatpush1.bf16.msra.mxu0 %v945
          %949 = vmatprep.subr.bf16.mxu0 0
          %950 = vmatpush1.bf16.msra.mxu0 0
          %951 = vmatprep.subr.bf16.mxu0 0
          %952 = vmatpush1.bf16.msra.mxu0 0
          %953 = vmatprep.subr.bf16.mxu0 0
          %954 = vmatpush1.bf16.msra.mxu0 0
          %955 = vmatprep.subr.bf16.mxu0 0
          %956 = vmatpush1.bf16.msra.mxu0 0
          %957 = vmatprep.subr.bf16.mxu0 0
          %958 = vmatpush1.bf16.msra.mxu0 0
          %959 = vmatprep.subr.bf16.mxu0 0
          %960 = vmatpush1.bf16.msra.mxu0 0
          %961 = vmatprep.subr.bf16.mxu0 0
          %962 = vmatpush1.bf16.msra.mxu0 0
          %963 = vmatprep.subr.bf16.mxu0 0
          %964 = vmatpush1.bf16.msra.mxu0 0
          %965 = vmatprep.subr.bf16.mxu0 0
          %966 = vmatpush1.bf16.msra.mxu0 0
          %967 = vmatprep.subr.bf16.mxu0 0
          %968 = vmatpush1.bf16.msra.mxu0 0
          %969 = vmatprep.subr.bf16.mxu0 0
          %970 = vmatpush1.bf16.msra.mxu0 0
          %971 = vmatprep.subr.bf16.mxu0 0
          %972 = vmatpush1.bf16.msra.mxu0 0
          %973 = vmatprep.subr.bf16.mxu0 0
          %974 = vmatpush1.bf16.msra.mxu0 0
          %975 = vmatprep.subr.bf16.mxu0 0
          %976 = vmatpush1.bf16.msra.mxu0 0
          %977 = vmatprep.subr.bf16.mxu0 0
          %978 = vmatpush1.bf16.msra.mxu0 0
          %979 = vmatprep.mubr.bf16.mxu0 0
          %980 = vmatmul.mubr.bf16.gmra.mrb[0].mxu0 %v942
          %v981 = vpop.f32.mrb[0].mxu0
          %v982 = vadd.f32 0.0, %v981
          %v983 = vpop.f32.mrb[0].mxu0
          %v984 = vpop.f32.mrb[0].mxu0
          %v985 = vpop.f32.mrb[0].mxu0
          %986 = vdwg.mxu0
          %v987 = vsel %vm705, %v982, -inf
          %988 = vmax.xlane.f32.xlu0 %v987
          %v989 = vpop.xlane.xlu0 %988
          %v990 = vmax.f32 %v693, %v989
          %v991 = vsub.f32 %v693, %v990
          %v992 = vmul.f32 %v991, 1.442695
          %v993 = vpow.pop %v992
          %v994 = vsub.f32 %v982, %v990
          %v995 = vmul.f32 %v994, 1.442695
          %v996 = vpow.pop %v995
          %v997 = vmul.f32 %v993, %v694
          %v998 = vsel %vm705, %v996, 0.0
          %999 = vadd.xlane.f32.xlu0 %v998
          %v1000 = vpop.xlane.xlu0 %999
          %v1001 = vadd.f32 %v997, %v1000
          %v1002 = vpack.c.bf16 %v996, %v996
          %v1004 = vsel %vm705, %v1002, 0
          %v1007 = vsel %vm709, %v940, 0
          %1009 = vmatprep.subr.bf16.mxu0 0
          %1010 = vmatpush1.bf16.msra.mxu0 %v1007
          %1011 = vmatprep.subr.bf16.mxu0 0
          %1012 = vmatpush1.bf16.msra.mxu0 0
          %1013 = vmatprep.subr.bf16.mxu0 0
          %1014 = vmatpush1.bf16.msra.mxu0 0
          %1015 = vmatprep.subr.bf16.mxu0 0
          %1016 = vmatpush1.bf16.msra.mxu0 0
          %1017 = vmatprep.subr.bf16.mxu0 0
          %1018 = vmatpush1.bf16.msra.mxu0 0
          %1019 = vmatprep.subr.bf16.mxu0 0
          %1020 = vmatpush1.bf16.msra.mxu0 0
          %1021 = vmatprep.subr.bf16.mxu0 0
          %1022 = vmatpush1.bf16.msra.mxu0 0
          %1023 = vmatprep.subr.bf16.mxu0 0
          %1024 = vmatpush1.bf16.msra.mxu0 0
          %1025 = vmatprep.subr.bf16.mxu0 0
          %1026 = vmatpush1.bf16.msra.mxu0 0
          %1027 = vmatprep.subr.bf16.mxu0 0
          %1028 = vmatpush1.bf16.msra.mxu0 0
          %1029 = vmatprep.subr.bf16.mxu0 0
          %1030 = vmatpush1.bf16.msra.mxu0 0
          %1031 = vmatprep.subr.bf16.mxu0 0
          %1032 = vmatpush1.bf16.msra.mxu0 0
          %1033 = vmatprep.subr.bf16.mxu0 0
          %1034 = vmatpush1.bf16.msra.mxu0 0
          %1035 = vmatprep.subr.bf16.mxu0 0
          %1036 = vmatpush1.bf16.msra.mxu0 0
          %1037 = vmatprep.subr.bf16.mxu0 0
          %1038 = vmatpush1.bf16.msra.mxu0 0
          %1039 = vmatprep.subr.bf16.mxu0 0
          %1040 = vmatpush1.bf16.msra.mxu0 0
          %1041 = vmatprep.mubr.bf16.mxu0 0
          %1042 = vmatmul.mubr.bf16.gmra.mrb[0].mxu0 %v1004
          %v1043 = vpop.f32.mrb[0].mxu0
          %v1044 = vadd.f32 0.0, %v1043
          %v1045 = vpop.f32.mrb[0].mxu0
          %v1046 = vpop.f32.mrb[0].mxu0
          %v1047 = vpop.f32.mrb[0].mxu0
          %1048 = vdwg.mxu0
          %v1049 = vmul.f32 %v993, %v695
          %v1050 = vadd.f32 %v1049, %v1044
          %s1051 = sadd.s32 %s682, 6
          %s1052 = smul.addr %s1051, 4
          %s1053 = scalar_lea.vmem %s576, %s1052 [#allocation8]
          %v1054 = vld [vmem:[%s1053] sm:$0xf]
          %s1055 = smul.addr %s1051, 4
          %s1056 = scalar_lea.vmem %s585, %s1055 [#allocation9]
          %v1057 = vld [vmem:[%s1056] sm:$0xf]
          %v1059 = vsel %vm705, %v680, 0
          %v1062 = vsel %vm709, %v1054, 0
          %1064 = vmatprep.subr.bf16.mxu0 0
          %1065 = vmatpush1.bf16.msra.mxu0 %v1062
          %1066 = vmatprep.subr.bf16.mxu0 0
          %1067 = vmatpush1.bf16.msra.mxu0 0
          %1068 = vmatprep.subr.bf16.mxu0 0
          %1069 = vmatpush1.bf16.msra.mxu0 0
          %1070 = vmatprep.subr.bf16.mxu0 0
          %1071 = vmatpush1.bf16.msra.mxu0 0
          %1072 = vmatprep.subr.bf16.mxu0 0
          %1073 = vmatpush1.bf16.msra.mxu0 0
          %1074 = vmatprep.subr.bf16.mxu0 0
          %1075 = vmatpush1.bf16.msra.mxu0 0
          %1076 = vmatprep.subr.bf16.mxu0 0
          %1077 = vmatpush1.bf16.msra.mxu0 0
          %1078 = vmatprep.subr.bf16.mxu0 0
          %1079 = vmatpush1.bf16.msra.mxu0 0
          %1080 = vmatprep.subr.bf16.mxu0 0
          %1081 = vmatpush1.bf16.msra.mxu0 0
          %1082 = vmatprep.subr.bf16.mxu0 0
          %1083 = vmatpush1.bf16.msra.mxu0 0
          %1084 = vmatprep.subr.bf16.mxu0 0
          %1085 = vmatpush1.bf16.msra.mxu0 0
          %1086 = vmatprep.subr.bf16.mxu0 0
          %1087 = vmatpush1.bf16.msra.mxu0 0
          %1088 = vmatprep.subr.bf16.mxu0 0
          %1089 = vmatpush1.bf16.msra.mxu0 0
          %1090 = vmatprep.subr.bf16.mxu0 0
          %1091 = vmatpush1.bf16.msra.mxu0 0
          %1092 = vmatprep.subr.bf16.mxu0 0
          %1093 = vmatpush1.bf16.msra.mxu0 0
          %1094 = vmatprep.subr.bf16.mxu0 0
          %1095 = vmatpush1.bf16.msra.mxu0 0
          %1096 = vmatprep.mubr.bf16.mxu0 0
          %1097 = vmatmul.mubr.bf16.gmra.mrb[0].mxu0 %v1059
          %v1098 = vpop.f32.mrb[0].mxu0
          %v1099 = vadd.f32 0.0, %v1098
          %v1100 = vpop.f32.mrb[0].mxu0
          %v1101 = vpop.f32.mrb[0].mxu0
          %v1102 = vpop.f32.mrb[0].mxu0
          %1103 = vdwg.mxu0
          %v1104 = vsel %vm705, %v1099, -inf
          %1105 = vmax.xlane.f32.xlu0 %v1104
          %v1106 = vpop.xlane.xlu0 %1105
          %v1107 = vmax.f32 %v696, %v1106
          %v1108 = vsub.f32 %v696, %v1107
          %v1109 = vmul.f32 %v1108, 1.442695
          %v1110 = vpow.pop %v1109
          %v1111 = vsub.f32 %v1099, %v1107
          %v1112 = vmul.f32 %v1111, 1.442695
          %v1113 = vpow.pop %v1112
          %v1114 = vmul.f32 %v1110, %v697
          %v1115 = vsel %vm705, %v1113, 0.0
          %1116 = vadd.xlane.f32.xlu0 %v1115
          %v1117 = vpop.xlane.xlu0 %1116
          %v1118 = vadd.f32 %v1114, %v1117
          %v1119 = vpack.c.bf16 %v1113, %v1113
          %v1121 = vsel %vm705, %v1119, 0
          %v1124 = vsel %vm709, %v1057, 0
          %1126 = vmatprep.subr.bf16.mxu0 0
          %1127 = vmatpush1.bf16.msra.mxu0 %v1124
          %1128 = vmatprep.subr.bf16.mxu0 0
          %1129 = vmatpush1.bf16.msra.mxu0 0
          %1130 = vmatprep.subr.bf16.mxu0 0
          %1131 = vmatpush1.bf16.msra.mxu0 0
          %1132 = vmatprep.subr.bf16.mxu0 0
          %1133 = vmatpush1.bf16.msra.mxu0 0
          %1134 = vmatprep.subr.bf16.mxu0 0
          %1135 = vmatpush1.bf16.msra.mxu0 0
          %1136 = vmatprep.subr.bf16.mxu0 0
          %1137 = vmatpush1.bf16.msra.mxu0 0
          %1138 = vmatprep.subr.bf16.mxu0 0
          %1139 = vmatpush1.bf16.msra.mxu0 0
          %1140 = vmatprep.subr.bf16.mxu0 0
          %1141 = vmatpush1.bf16.msra.mxu0 0
          %1142 = vmatprep.subr.bf16.mxu0 0
          %1143 = vmatpush1.bf16.msra.mxu0 0
          %1144 = vmatprep.subr.bf16.mxu0 0
          %1145 = vmatpush1.bf16.msra.mxu0 0
          %1146 = vmatprep.subr.bf16.mxu0 0
          %1147 = vmatpush1.bf16.msra.mxu0 0
          %1148 = vmatprep.subr.bf16.mxu0 0
          %1149 = vmatpush1.bf16.msra.mxu0 0
          %1150 = vmatprep.subr.bf16.mxu0 0
          %1151 = vmatpush1.bf16.msra.mxu0 0
          %1152 = vmatprep.subr.bf16.mxu0 0
          %1153 = vmatpush1.bf16.msra.mxu0 0
          %1154 = vmatprep.subr.bf16.mxu0 0
          %1155 = vmatpush1.bf16.msra.mxu0 0
          %1156 = vmatprep.subr.bf16.mxu0 0
          %1157 = vmatpush1.bf16.msra.mxu0 0
          %1158 = vmatprep.mubr.bf16.mxu0 0
          %1159 = vmatmul.mubr.bf16.gmra.mrb[0].mxu0 %v1121
          %v1160 = vpop.f32.mrb[0].mxu0
          %v1161 = vadd.f32 0.0, %v1160
          %v1162 = vpop.f32.mrb[0].mxu0
          %v1163 = vpop.f32.mrb[0].mxu0
          %v1164 = vpop.f32.mrb[0].mxu0
          %1165 = vdwg.mxu0
          %v1166 = vmul.f32 %v1110, %v698
          %v1167 = vadd.f32 %v1166, %v1161
        $region121: #{transformer_forward.6} parent=67 // loop_footer
          %s684 = sadd.s32 %s682, 1
        $region122: #{transformer_forward.6} parent=67 // loop_footer_branch
          %681 = sbr.rel target = $region118
        $region123: #{transformer_forward.6} parent=67 // loop_exit
          _
        %v1168 = vlaneseq
        %v1169 = vand.u32 %v1168, 127
        %v1170 = vlaneseq
        %v1171 = vshrl.u32 %v1170, 7
        %vm1172 = vcmp.le.s32.totalorder %v1169, %v1171
        %s1173 = smul.addr %s44, 4
        %s1174 = scalar_lea.vmem %s576, %s1173 [#allocation8]
        %v1175 = vld [vmem:[%s1174] sm:$0xf]
        %s1176 = smul.addr %s44, 4
        %s1177 = scalar_lea.vmem %s585, %s1176 [#allocation9]
        %v1178 = vld [vmem:[%s1177] sm:$0xf]
        %vm1179 = vcmask 64512
        %v1181 = vsel %vm1179, %v674, 0
        %vm1183 = vcmask 1043456
        %v1185 = vsel %vm1183, %v1175, 0
        %1187 = vmatprep.subr.bf16.mxu0 0
        %1188 = vmatpush1.bf16.msra.mxu0 %v1185
        %1189 = vmatprep.subr.bf16.mxu0 0
        %1190 = vmatpush1.bf16.msra.mxu0 0
        %1191 = vmatprep.subr.bf16.mxu0 0
        %1192 = vmatpush1.bf16.msra.mxu0 0
        %1193 = vmatprep.subr.bf16.mxu0 0
        %1194 = vmatpush1.bf16.msra.mxu0 0
        %1195 = vmatprep.subr.bf16.mxu0 0
        %1196 = vmatpush1.bf16.msra.mxu0 0
        %1197 = vmatprep.subr.bf16.mxu0 0
        %1198 = vmatpush1.bf16.msra.mxu0 0
        %1199 = vmatprep.subr.bf16.mxu0 0
        %1200 = vmatpush1.bf16.msra.mxu0 0
        %1201 = vmatprep.subr.bf16.mxu0 0
        %1202 = vmatpush1.bf16.msra.mxu0 0
        %1203 = vmatprep.subr.bf16.mxu0 0
        %1204 = vmatpush1.bf16.msra.mxu0 0
        %1205 = vmatprep.subr.bf16.mxu0 0
        %1206 = vmatpush1.bf16.msra.mxu0 0
        %1207 = vmatprep.subr.bf16.mxu0 0
        %1208 = vmatpush1.bf16.msra.mxu0 0
        %1209 = vmatprep.subr.bf16.mxu0 0
        %1210 = vmatpush1.bf16.msra.mxu0 0
        %1211 = vmatprep.subr.bf16.mxu0 0
        %1212 = vmatpush1.bf16.msra.mxu0 0
        %1213 = vmatprep.subr.bf16.mxu0 0
        %1214 = vmatpush1.bf16.msra.mxu0 0
        %1215 = vmatprep.subr.bf16.mxu0 0
        %1216 = vmatpush1.bf16.msra.mxu0 0
        %1217 = vmatprep.subr.bf16.mxu0 0
        %1218 = vmatpush1.bf16.msra.mxu0 0
        %1219 = vmatprep.mubr.bf16.mxu0 0
        %1220 = vmatmul.mubr.bf16.gmra.mrb[0].mxu0 %v1181
        %v1221 = vpop.f32.mrb[0].mxu0
        %v1222 = vadd.f32 0.0, %v1221
        %v1223 = vpop.f32.mrb[0].mxu0
        %v1224 = vpop.f32.mrb[0].mxu0
        %v1225 = vpop.f32.mrb[0].mxu0
        %1226 = vdwg.mxu0
        %v1227 = vsel %vm1172, %v1222, -1e+30
        %v1228 = vsel %vm1179, %v1227, -inf
        %1229 = vmax.xlane.f32.xlu0 %v1228
        %v1230 = vpop.xlane.xlu0 %1229
        %v1231 = vmax.f32 %v687, %v1230
        %v1232 = vsub.f32 %v687, %v1231
        %v1233 = vmul.f32 %v1232, 1.442695
        %v1234 = vpow.pop %v1233
        %v1235 = vsub.f32 %v1227, %v1231
        %v1236 = vmul.f32 %v1235, 1.442695
        %v1237 = vpow.pop %v1236
        %v1238 = vmul.f32 %v1234, %v688
        %v1239 = vsel %vm1179, %v1237, 0.0
        %1240 = vadd.xlane.f32.xlu0 %v1239
        %v1241 = vpop.xlane.xlu0 %1240
        %v1242 = vadd.f32 %v1238, %v1241
        %v1243 = vpack.c.bf16 %v1237, %v1237
        %v1245 = vsel %vm1179, %v1243, 0
        %v1248 = vsel %vm1183, %v1178, 0
        %1250 = vmatprep.subr.bf16.mxu0 0
        %1251 = vmatpush1.bf16.msra.mxu0 %v1248
        %1252 = vmatprep.subr.bf16.mxu0 0
        %1253 = vmatpush1.bf16.msra.mxu0 0
        %1254 = vmatprep.subr.bf16.mxu0 0
        %1255 = vmatpush1.bf16.msra.mxu0 0
        %1256 = vmatprep.subr.bf16.mxu0 0
        %1257 = vmatpush1.bf16.msra.mxu0 0
        %1258 = vmatprep.subr.bf16.mxu0 0
        %1259 = vmatpush1.bf16.msra.mxu0 0
        %1260 = vmatprep.subr.bf16.mxu0 0
        %1261 = vmatpush1.bf16.msra.mxu0 0
        %1262 = vmatprep.subr.bf16.mxu0 0
        %1263 = vmatpush1.bf16.msra.mxu0 0
        %1264 = vmatprep.subr.bf16.mxu0 0
        %1265 = vmatpush1.bf16.msra.mxu0 0
        %1266 = vmatprep.subr.bf16.mxu0 0
        %1267 = vmatpush1.bf16.msra.mxu0 0
        %1268 = vmatprep.subr.bf16.mxu0 0
        %1269 = vmatpush1.bf16.msra.mxu0 0
        %1270 = vmatprep.subr.bf16.mxu0 0
        %1271 = vmatpush1.bf16.msra.mxu0 0
        %1272 = vmatprep.subr.bf16.mxu0 0
        %1273 = vmatpush1.bf16.msra.mxu0 0
        %1274 = vmatprep.subr.bf16.mxu0 0
        %1275 = vmatpush1.bf16.msra.mxu0 0
        %1276 = vmatprep.subr.bf16.mxu0 0
        %1277 = vmatpush1.bf16.msra.mxu0 0
        %1278 = vmatprep.subr.bf16.mxu0 0
        %1279 = vmatpush1.bf16.msra.mxu0 0
        %1280 = vmatprep.subr.bf16.mxu0 0
        %1281 = vmatpush1.bf16.msra.mxu0 0
        %1282 = vmatprep.mubr.bf16.mxu0 0
        %1283 = vmatmul.mubr.bf16.gmra.mrb[0].mxu0 %v1245
        %v1284 = vpop.f32.mrb[0].mxu0
        %v1285 = vadd.f32 0.0, %v1284
        %v1286 = vpop.f32.mrb[0].mxu0
        %v1287 = vpop.f32.mrb[0].mxu0
        %v1288 = vpop.f32.mrb[0].mxu0
        %1289 = vdwg.mxu0
        %v1290 = vmul.f32 %v1234, %v689
        %v1291 = vadd.f32 %v1290, %v1285
        %s1292 = sadd.s32 %s44, 2
        %s1293 = smul.addr %s1292, 4
        %s1294 = scalar_lea.vmem %s576, %s1293 [#allocation8]
        %v1295 = vld [vmem:[%s1294] sm:$0xf]
        %s1296 = smul.addr %s1292, 4
        %s1297 = scalar_lea.vmem %s585, %s1296 [#allocation9]
        %v1298 = vld [vmem:[%s1297] sm:$0xf]
        %v1300 = vsel %vm1179, %v676, 0
        %v1303 = vsel %vm1183, %v1295, 0
        %1305 = vmatprep.subr.bf16.mxu0 0
        %1306 = vmatpush1.bf16.msra.mxu0 %v1303
        %1307 = vmatprep.subr.bf16.mxu0 0
        %1308 = vmatpush1.bf16.msra.mxu0 0
        %1309 = vmatprep.subr.bf16.mxu0 0
        %1310 = vmatpush1.bf16.msra.mxu0 0
        %1311 = vmatprep.subr.bf16.mxu0 0
        %1312 = vmatpush1.bf16.msra.mxu0 0
        %1313 = vmatprep.subr.bf16.mxu0 0
        %1314 = vmatpush1.bf16.msra.mxu0 0
        %1315 = vmatprep.subr.bf16.mxu0 0
        %1316 = vmatpush1.bf16.msra.mxu0 0
        %1317 = vmatprep.subr.bf16.mxu0 0
        %1318 = vmatpush1.bf16.msra.mxu0 0
        %1319 = vmatprep.subr.bf16.mxu0 0
        %1320 = vmatpush1.bf16.msra.mxu0 0
        %1321 = vmatprep.subr.bf16.mxu0 0
        %1322 = vmatpush1.bf16.msra.mxu0 0
        %1323 = vmatprep.subr.bf16.mxu0 0
        %1324 = vmatpush1.bf16.msra.mxu0 0
        %1325 = vmatprep.subr.bf16.mxu0 0
        %1326 = vmatpush1.bf16.msra.mxu0 0
        %1327 = vmatprep.subr.bf16.mxu0 0
        %1328 = vmatpush1.bf16.msra.mxu0 0
        %1329 = vmatprep.subr.bf16.mxu0 0
        %1330 = vmatpush1.bf16.msra.mxu0 0
        %1331 = vmatprep.subr.bf16.mxu0 0
        %1332 = vmatpush1.bf16.msra.mxu0 0
        %1333 = vmatprep.subr.bf16.mxu0 0
        %1334 = vmatpush1.bf16.msra.mxu0 0
        %1335 = vmatprep.subr.bf16.mxu0 0
        %1336 = vmatpush1.bf16.msra.mxu0 0
        %1337 = vmatprep.mubr.bf16.mxu0 0
        %1338 = vmatmul.mubr.bf16.gmra.mrb[0].mxu0 %v1300
        %v1339 = vpop.f32.mrb[0].mxu0
        %v1340 = vadd.f32 0.0, %v1339
        %v1341 = vpop.f32.mrb[0].mxu0
        %v1342 = vpop.f32.mrb[0].mxu0
        %v1343 = vpop.f32.mrb[0].mxu0
        %1344 = vdwg.mxu0
        %v1345 = vsel %vm1172, %v1340, -1e+30
        %v1346 = vsel %vm1179, %v1345, -inf
        %1347 = vmax.xlane.f32.xlu0 %v1346
        %v1348 = vpop.xlane.xlu0 %1347
        %v1349 = vmax.f32 %v690, %v1348
        %v1350 = vsub.f32 %v690, %v1349
        %v1351 = vmul.f32 %v1350, 1.442695
        %v1352 = vpow.pop %v1351
        %v1353 = vsub.f32 %v1345, %v1349
        %v1354 = vmul.f32 %v1353, 1.442695
        %v1355 = vpow.pop %v1354
        %v1356 = vmul.f32 %v1352, %v691
        %v1357 = vsel %vm1179, %v1355, 0.0
        %1358 = vadd.xlane.f32.xlu0 %v1357
        %v1359 = vpop.xlane.xlu0 %1358
        %v1360 = vadd.f32 %v1356, %v1359
        %v1361 = vpack.c.bf16 %v1355, %v1355
        %v1363 = vsel %vm1179, %v1361, 0
        %v1366 = vsel %vm1183, %v1298, 0
        %1368 = vmatprep.subr.bf16.mxu0 0
        %1369 = vmatpush1.bf16.msra.mxu0 %v1366
        %1370 = vmatprep.subr.bf16.mxu0 0
        %1371 = vmatpush1.bf16.msra.mxu0 0
        %1372 = vmatprep.subr.bf16.mxu0 0
        %1373 = vmatpush1.bf16.msra.mxu0 0
        %1374 = vmatprep.subr.bf16.mxu0 0
        %1375 = vmatpush1.bf16.msra.mxu0 0
        %1376 = vmatprep.subr.bf16.mxu0 0
        %1377 = vmatpush1.bf16.msra.mxu0 0
        %1378 = vmatprep.subr.bf16.mxu0 0
        %1379 = vmatpush1.bf16.msra.mxu0 0
        %1380 = vmatprep.subr.bf16.mxu0 0
        %1381 = vmatpush1.bf16.msra.mxu0 0
        %1382 = vmatprep.subr.bf16.mxu0 0
        %1383 = vmatpush1.bf16.msra.mxu0 0
        %1384 = vmatprep.subr.bf16.mxu0 0
        %1385 = vmatpush1.bf16.msra.mxu0 0
        %1386 = vmatprep.subr.bf16.mxu0 0
        %1387 = vmatpush1.bf16.msra.mxu0 0
        %1388 = vmatprep.subr.bf16.mxu0 0
        %1389 = vmatpush1.bf16.msra.mxu0 0
        %1390 = vmatprep.subr.bf16.mxu0 0
        %1391 = vmatpush1.bf16.msra.mxu0 0
        %1392 = vmatprep.subr.bf16.mxu0 0
        %1393 = vmatpush1.bf16.msra.mxu0 0
        %1394 = vmatprep.subr.bf16.mxu0 0
        %1395 = vmatpush1.bf16.msra.mxu0 0
        %1396 = vmatprep.subr.bf16.mxu0 0
        %1397 = vmatpush1.bf16.msra.mxu0 0
        %1398 = vmatprep.subr.bf16.mxu0 0
        %1399 = vmatpush1.bf16.msra.mxu0 0
        %1400 = vmatprep.mubr.bf16.mxu0 0
        %1401 = vmatmul.mubr.bf16.gmra.mrb[0].mxu0 %v1363
        %v1402 = vpop.f32.mrb[0].mxu0
        %v1403 = vadd.f32 0.0, %v1402
        %v1404 = vpop.f32.mrb[0].mxu0
        %v1405 = vpop.f32.mrb[0].mxu0
        %v1406 = vpop.f32.mrb[0].mxu0
        %1407 = vdwg.mxu0
        %v1408 = vmul.f32 %v1352, %v692
        %v1409 = vadd.f32 %v1408, %v1403
        %s1410 = sadd.s32 %s44, 4
        %s1411 = smul.addr %s1410, 4
        %s1412 = scalar_lea.vmem %s576, %s1411 [#allocation8]
        %v1413 = vld [vmem:[%s1412] sm:$0xf]
        %s1414 = smul.addr %s1410, 4
        %s1415 = scalar_lea.vmem %s585, %s1414 [#allocation9]
        %v1416 = vld [vmem:[%s1415] sm:$0xf]
        %v1418 = vsel %vm1179, %v678, 0
        %v1421 = vsel %vm1183, %v1413, 0
        %1423 = vmatprep.subr.bf16.mxu0 0
        %1424 = vmatpush1.bf16.msra.mxu0 %v1421
        %1425 = vmatprep.subr.bf16.mxu0 0
        %1426 = vmatpush1.bf16.msra.mxu0 0
        %1427 = vmatprep.subr.bf16.mxu0 0
        %1428 = vmatpush1.bf16.msra.mxu0 0
        %1429 = vmatprep.subr.bf16.mxu0 0
        %1430 = vmatpush1.bf16.msra.mxu0 0
        %1431 = vmatprep.subr.bf16.mxu0 0
        %1432 = vmatpush1.bf16.msra.mxu0 0
        %1433 = vmatprep.subr.bf16.mxu0 0
        %1434 = vmatpush1.bf16.msra.mxu0 0
        %1435 = vmatprep.subr.bf16.mxu0 0
        %1436 = vmatpush1.bf16.msra.mxu0 0
        %1437 = vmatprep.subr.bf16.mxu0 0
        %1438 = vmatpush1.bf16.msra.mxu0 0
        %1439 = vmatprep.subr.bf16.mxu0 0
        %1440 = vmatpush1.bf16.msra.mxu0 0
        %1441 = vmatprep.subr.bf16.mxu0 0
        %1442 = vmatpush1.bf16.msra.mxu0 0
        %1443 = vmatprep.subr.bf16.mxu0 0
        %1444 = vmatpush1.bf16.msra.mxu0 0
        %1445 = vmatprep.subr.bf16.mxu0 0
        %1446 = vmatpush1.bf16.msra.mxu0 0
        %1447 = vmatprep.subr.bf16.mxu0 0
        %1448 = vmatpush1.bf16.msra.mxu0 0
        %1449 = vmatprep.subr.bf16.mxu0 0
        %1450 = vmatpush1.bf16.msra.mxu0 0
        %1451 = vmatprep.subr.bf16.mxu0 0
        %1452 = vmatpush1.bf16.msra.mxu0 0
        %1453 = vmatprep.subr.bf16.mxu0 0
        %1454 = vmatpush1.bf16.msra.mxu0 0
        %1455 = vmatprep.mubr.bf16.mxu0 0
        %1456 = vmatmul.mubr.bf16.gmra.mrb[0].mxu0 %v1418
        %v1457 = vpop.f32.mrb[0].mxu0
        %v1458 = vadd.f32 0.0, %v1457
        %v1459 = vpop.f32.mrb[0].mxu0
        %v1460 = vpop.f32.mrb[0].mxu0
        %v1461 = vpop.f32.mrb[0].mxu0
        %1462 = vdwg.mxu0
        %v1463 = vsel %vm1172, %v1458, -1e+30
        %v1464 = vsel %vm1179, %v1463, -inf
        %1465 = vmax.xlane.f32.xlu0 %v1464
        %v1466 = vpop.xlane.xlu0 %1465
        %v1467 = vmax.f32 %v693, %v1466
        %v1468 = vsub.f32 %v693, %v1467
        %v1469 = vmul.f32 %v1468, 1.442695
        %v1470 = vpow.pop %v1469
        %v1471 = vsub.f32 %v1463, %v1467
        %v1472 = vmul.f32 %v1471, 1.442695
        %v1473 = vpow.pop %v1472
        %v1474 = vmul.f32 %v1470, %v694
        %v1475 = vsel %vm1179, %v1473, 0.0
        %1476 = vadd.xlane.f32.xlu0 %v1475
        %v1477 = vpop.xlane.xlu0 %1476
        %v1478 = vadd.f32 %v1474, %v1477
        %v1479 = vpack.c.bf16 %v1473, %v1473
        %v1481 = vsel %vm1179, %v1479, 0
        %v1484 = vsel %vm1183, %v1416, 0
        %1486 = vmatprep.subr.bf16.mxu0 0
        %1487 = vmatpush1.bf16.msra.mxu0 %v1484
        %1488 = vmatprep.subr.bf16.mxu0 0
        %1489 = vmatpush1.bf16.msra.mxu0 0
        %1490 = vmatprep.subr.bf16.mxu0 0
        %1491 = vmatpush1.bf16.msra.mxu0 0
        %1492 = vmatprep.subr.bf16.mxu0 0
        %1493 = vmatpush1.bf16.msra.mxu0 0
        %1494 = vmatprep.subr.bf16.mxu0 0
        %1495 = vmatpush1.bf16.msra.mxu0 0
        %1496 = vmatprep.subr.bf16.mxu0 0
        %1497 = vmatpush1.bf16.msra.mxu0 0
        %1498 = vmatprep.subr.bf16.mxu0 0
        %1499 = vmatpush1.bf16.msra.mxu0 0
        %1500 = vmatprep.subr.bf16.mxu0 0
        %1501 = vmatpush1.bf16.msra.mxu0 0
        %1502 = vmatprep.subr.bf16.mxu0 0
        %1503 = vmatpush1.bf16.msra.mxu0 0
        %1504 = vmatprep.subr.bf16.mxu0 0
        %1505 = vmatpush1.bf16.msra.mxu0 0
        %1506 = vmatprep.subr.bf16.mxu0 0
        %1507 = vmatpush1.bf16.msra.mxu0 0
        %1508 = vmatprep.subr.bf16.mxu0 0
        %1509 = vmatpush1.bf16.msra.mxu0 0
        %1510 = vmatprep.subr.bf16.mxu0 0
        %1511 = vmatpush1.bf16.msra.mxu0 0
        %1512 = vmatprep.subr.bf16.mxu0 0
        %1513 = vmatpush1.bf16.msra.mxu0 0
        %1514 = vmatprep.subr.bf16.mxu0 0
        %1515 = vmatpush1.bf16.msra.mxu0 0
        %1516 = vmatprep.subr.bf16.mxu0 0
        %1517 = vmatpush1.bf16.msra.mxu0 0
        %1518 = vmatprep.mubr.bf16.mxu0 0
        %1519 = vmatmul.mubr.bf16.gmra.mrb[0].mxu0 %v1481
        %v1520 = vpop.f32.mrb[0].mxu0
        %v1521 = vadd.f32 0.0, %v1520
        %v1522 = vpop.f32.mrb[0].mxu0
        %v1523 = vpop.f32.mrb[0].mxu0
        %v1524 = vpop.f32.mrb[0].mxu0
        %1525 = vdwg.mxu0
        %v1526 = vmul.f32 %v1470, %v695
        %v1527 = vadd.f32 %v1526, %v1521
        %s1528 = sadd.s32 %s44, 6
        %s1529 = smul.addr %s1528, 4
        %s1530 = scalar_lea.vmem %s576, %s1529 [#allocation8]
        %v1531 = vld [vmem:[%s1530] sm:$0xf]
        %s1532 = smul.addr %s1528, 4
        %s1533 = scalar_lea.vmem %s585, %s1532 [#allocation9]
        %v1534 = vld [vmem:[%s1533] sm:$0xf]
        %v1536 = vsel %vm1179, %v680, 0
        %v1539 = vsel %vm1183, %v1531, 0
        %1541 = vmatprep.subr.bf16.mxu0 0
        %1542 = vmatpush1.bf16.msra.mxu0 %v1539
        %1543 = vmatprep.subr.bf16.mxu0 0
        %1544 = vmatpush1.bf16.msra.mxu0 0
        %1545 = vmatprep.subr.bf16.mxu0 0
        %1546 = vmatpush1.bf16.msra.mxu0 0
        %1547 = vmatprep.subr.bf16.mxu0 0
        %1548 = vmatpush1.bf16.msra.mxu0 0
        %1549 = vmatprep.subr.bf16.mxu0 0
        %1550 = vmatpush1.bf16.msra.mxu0 0
        %1551 = vmatprep.subr.bf16.mxu0 0
        %1552 = vmatpush1.bf16.msra.mxu0 0
        %1553 = vmatprep.subr.bf16.mxu0 0
        %1554 = vmatpush1.bf16.msra.mxu0 0
        %1555 = vmatprep.subr.bf16.mxu0 0
        %1556 = vmatpush1.bf16.msra.mxu0 0
        %1557 = vmatprep.subr.bf16.mxu0 0
        %1558 = vmatpush1.bf16.msra.mxu0 0
        %1559 = vmatprep.subr.bf16.mxu0 0
        %1560 = vmatpush1.bf16.msra.mxu0 0
        %1561 = vmatprep.subr.bf16.mxu0 0
        %1562 = vmatpush1.bf16.msra.mxu0 0
        %1563 = vmatprep.subr.bf16.mxu0 0
        %1564 = vmatpush1.bf16.msra.mxu0 0
        %1565 = vmatprep.subr.bf16.mxu0 0
        %1566 = vmatpush1.bf16.msra.mxu0 0
        %1567 = vmatprep.subr.bf16.mxu0 0
        %1568 = vmatpush1.bf16.msra.mxu0 0
        %1569 = vmatprep.subr.bf16.mxu0 0
        %1570 = vmatpush1.bf16.msra.mxu0 0
        %1571 = vmatprep.subr.bf16.mxu0 0
        %1572 = vmatpush1.bf16.msra.mxu0 0
        %1573 = vmatprep.mubr.bf16.mxu0 0
        %1574 = vmatmul.mubr.bf16.gmra.mrb[0].mxu0 %v1536
        %v1575 = vpop.f32.mrb[0].mxu0
        %v1576 = vadd.f32 0.0, %v1575
        %v1577 = vpop.f32.mrb[0].mxu0
        %v1578 = vpop.f32.mrb[0].mxu0
        %v1579 = vpop.f32.mrb[0].mxu0
        %1580 = vdwg.mxu0
        %v1581 = vsel %vm1172, %v1576, -1e+30
        %v1582 = vsel %vm1179, %v1581, -inf
        %1583 = vmax.xlane.f32.xlu0 %v1582
        %v1584 = vpop.xlane.xlu0 %1583
        %v1585 = vmax.f32 %v696, %v1584
        %v1586 = vsub.f32 %v696, %v1585
        %v1587 = vmul.f32 %v1586, 1.442695
        %v1588 = vpow.pop %v1587
        %v1589 = vsub.f32 %v1581, %v1585
        %v1590 = vmul.f32 %v1589, 1.442695
        %v1591 = vpow.pop %v1590
        %v1592 = vmul.f32 %v1588, %v697
        %v1593 = vsel %vm1179, %v1591, 0.0
        %1594 = vadd.xlane.f32.xlu0 %v1593
        %v1595 = vpop.xlane.xlu0 %1594
        %v1596 = vadd.f32 %v1592, %v1595
        %v1597 = vpack.c.bf16 %v1591, %v1591
        %v1599 = vsel %vm1179, %v1597, 0
        %v1602 = vsel %vm1183, %v1534, 0
        %1604 = vmatprep.subr.bf16.mxu0 0
        %1605 = vmatpush1.bf16.msra.mxu0 %v1602
        %1606 = vmatprep.subr.bf16.mxu0 0
        %1607 = vmatpush1.bf16.msra.mxu0 0
        %1608 = vmatprep.subr.bf16.mxu0 0
        %1609 = vmatpush1.bf16.msra.mxu0 0
        %1610 = vmatprep.subr.bf16.mxu0 0
        %1611 = vmatpush1.bf16.msra.mxu0 0
        %1612 = vmatprep.subr.bf16.mxu0 0
        %1613 = vmatpush1.bf16.msra.mxu0 0
        %1614 = vmatprep.subr.bf16.mxu0 0
        %1615 = vmatpush1.bf16.msra.mxu0 0
        %1616 = vmatprep.subr.bf16.mxu0 0
        %1617 = vmatpush1.bf16.msra.mxu0 0
        %1618 = vmatprep.subr.bf16.mxu0 0
        %1619 = vmatpush1.bf16.msra.mxu0 0
        %1620 = vmatprep.subr.bf16.mxu0 0
        %1621 = vmatpush1.bf16.msra.mxu0 0
        %1622 = vmatprep.subr.bf16.mxu0 0
        %1623 = vmatpush1.bf16.msra.mxu0 0
        %1624 = vmatprep.subr.bf16.mxu0 0
        %1625 = vmatpush1.bf16.msra.mxu0 0
        %1626 = vmatprep.subr.bf16.mxu0 0
        %1627 = vmatpush1.bf16.msra.mxu0 0
        %1628 = vmatprep.subr.bf16.mxu0 0
        %1629 = vmatpush1.bf16.msra.mxu0 0
        %1630 = vmatprep.subr.bf16.mxu0 0
        %1631 = vmatpush1.bf16.msra.mxu0 0
        %1632 = vmatprep.subr.bf16.mxu0 0
        %1633 = vmatpush1.bf16.msra.mxu0 0
        %1634 = vmatprep.subr.bf16.mxu0 0
        %1635 = vmatpush1.bf16.msra.mxu0 0
        %1636 = vmatprep.mubr.bf16.mxu0 0
        %1637 = vmatmul.mubr.bf16.gmra.mrb[0].mxu0 %v1599
        %v1638 = vpop.f32.mrb[0].mxu0
        %v1639 = vadd.f32 0.0, %v1638
        %v1640 = vpop.f32.mrb[0].mxu0
        %v1641 = vpop.f32.mrb[0].mxu0
        %v1642 = vpop.f32.mrb[0].mxu0
        %1643 = vdwg.mxu0
        %v1644 = vmul.f32 %v1588, %v698
        %v1645 = vadd.f32 %v1644, %v1639
        %v1646 = vrcp.pop %v1242
        %v1647 = vmul.f32 %v1291, %v1646
        %1648 = vst.msk [vmem:[#allocation2] sm:$0xff] %vm1179, %v1647
        %v1649 = vrcp.pop %v1360
        %v1650 = vmul.f32 %v1409, %v1649
        %1652 = vrot.lane.b32.xlu0 %v1650, 8
        %v1653 = vpop.permute.xlu0 %1652
        %vm1655 = vcmask 130112
        %1656 = vst.msk [vmem:[#allocation2] sm:$0xff] %vm1655, %v1653
        %v1657 = vrcp.pop %v1478
        %v1658 = vmul.f32 %v1527, %v1657
        %1660 = vrot.lane.b32.xlu0 %v1658, 16
        %v1661 = vpop.permute.xlu0 %1660
        %vm1663 = vcmask 195712
        %1664 = vst.msk [vmem:[#allocation2] sm:$0xff] %vm1663, %v1661
        %v1665 = vrcp.pop %v1596
        %v1666 = vmul.f32 %v1645, %v1665
        %1668 = vrot.lane.b32.xlu0 %v1666, 24
        %v1669 = vpop.permute.xlu0 %1668
        %vm1671 = vcmask 261312
        %1672 = vst.msk [vmem:[#allocation2] sm:$0xff] %vm1671, %v1669
        %v1673 = vld [vmem:[#allocation2] sm:$0xff]
        %v1674 = vpack.c.bf16 %v1673, %v1673
        %v1675 = vld [vmem:[#allocation11] sm:$0xf]
        %v1676 = vld [vmem:[#allocation11 + $0x4] sm:$0xf]
        %v1677 = vld [vmem:[#allocation11 + $0x8] sm:$0xf]
        %v1678 = vld [vmem:[#allocation11 + $0xc] sm:$0xf]
        %v1679 = vld [vmem:[#allocation12] sm:$0x1]
        %v1681 = vlaneseq
        %v1682 = vshrl.u32 %v1681, 7
        %v1683 = vsub.s32 0, %v1682
        %v1684 = vrot.slane %v1679, %v1683
        %v1690 = vunpack.c.l.b16 %v1675
        %v1691 = vunpack.c.l.b16 %v1676
        %v1692 = vunpack.c.l.b16 %v1677
        %v1693 = vunpack.c.l.b16 %v1678
        %v1694 = vpack.c.b16 %v1691, %v1690
        %v1695 = vpack.c.b16 %v1693, %v1692
        %vm1698 = vcmask 261120
        %v1700 = vsel %vm1698, %v1674, 0
        %1702 = vmatprep.subr.bf16.mxu0 0
        %1703 = vmatpush1.bf16.msra.mxu0 %v1694
        %1704 = vmatprep.subr.bf16.mxu0 0
        %1705 = vmatpush1.bf16.msra.mxu0 %v1695
        %1706 = vmatprep.subr.bf16.mxu0 0
        %1707 = vmatpush1.bf16.msra.mxu0 0
        %1708 = vmatprep.subr.bf16.mxu0 0
        %1709 = vmatpush1.bf16.msra.mxu0 0
        %1710 = vmatprep.subr.bf16.mxu0 0
        %1711 = vmatpush1.bf16.msra.mxu0 0
        %1712 = vmatprep.subr.bf16.mxu0 0
        %1713 = vmatpush1.bf16.msra.mxu0 0
        %1714 = vmatprep.subr.bf16.mxu0 0
        %1715 = vmatpush1.bf16.msra.mxu0 0
        %1716 = vmatprep.subr.bf16.mxu0 0
        %1717 = vmatpush1.bf16.msra.mxu0 0
        %1718 = vmatprep.subr.bf16.mxu0 0
        %1719 = vmatpush1.bf16.msra.mxu0 0
        %1720 = vmatprep.subr.bf16.mxu0 0
        %1721 = vmatpush1.bf16.msra.mxu0 0
        %1722 = vmatprep.subr.bf16.mxu0 0
        %1723 = vmatpush1.bf16.msra.mxu0 0
        %1724 = vmatprep.subr.bf16.mxu0 0
        %1725 = vmatpush1.bf16.msra.mxu0 0
        %1726 = vmatprep.subr.bf16.mxu0 0
        %1727 = vmatpush1.bf16.msra.mxu0 0
        %1728 = vmatprep.subr.bf16.mxu0 0
        %1729 = vmatpush1.bf16.msra.mxu0 0
        %1730 = vmatprep.subr.bf16.mxu0 0
        %1731 = vmatpush1.bf16.msra.mxu0 0
        %1732 = vmatprep.subr.bf16.mxu0 0
        %1733 = vmatpush1.bf16.msra.mxu0 0
        %1734 = vmatprep.mubr.bf16.mxu0 0
        %1735 = vmatmul.mubr.bf16.gmra.mrb[0].mxu0 %v1700
        %v1736 = vpop.f32.mrb[0].mxu0
        %v1737 = vadd.f32 %v1684, %v1736
        %v1738 = vpop.f32.mrb[0].mxu0
        %v1739 = vpop.f32.mrb[0].mxu0
        %v1740 = vpop.f32.mrb[0].mxu0
        %1741 = vdwg.mxu0
        %v1742 = vld [vmem:[%s558] sm:$0xff]
        %v1743 = vadd.f32 %v1742, %v1737
        %v1744 = vld [vmem:[#allocation14] sm:$0x1]
        %v1745 = vld [vmem:[#allocation15] sm:$0x1]
        %v1746 = vsel %vm1698, %v1743, 0.0
        %1747 = vadd.xlane.f32.xlu0 %v1746
        %v1748 = vpop.xlane.xlu0 %1747
        %v1749 = vrcp.pop 32.0
        %v1750 = vmul.f32 %v1748, %v1749
        %v1751 = vsub.f32 %v1743, %v1750
        %v1752 = vmul.f32 %v1751, %v1751
        %v1753 = vsel %vm1698, %v1752, 0.0
        %1754 = vadd.xlane.f32.xlu0 %v1753
        %v1755 = vpop.xlane.xlu0 %1754
        %v1756 = vmul.f32 %v1755, %v1749
        %v1757 = vadd.f32 %v1756, 1e-05
        %v1758 = vrsqrt.pop %v1757
        %v1759 = vmul.f32 %v1751, %v1758
        %v1761 = vlaneseq
        %v1762 = vshrl.u32 %v1761, 7
        %v1763 = vsub.s32 0, %v1762
        %v1764 = vrot.slane %v1744, %v1763
        %v1766 = vmul.f32 %v1759, %v1764
        %v1768 = vlaneseq
        %v1769 = vshrl.u32 %v1768, 7
        %v1770 = vsub.s32 0, %v1769
        %v1771 = vrot.slane %v1745, %v1770
        %v1773 = vadd.f32 %v1766, %v1771
        %v1774 = vpack.c.bf16 %v1773, %v1773
        %v1775 = vld [vmem:[#allocation17] sm:$0xf]
        %v1776 = vld [vmem:[#allocation17 + $0x4] sm:$0xf]
        %v1777 = vld [vmem:[#allocation17 + $0x8] sm:$0xf]
        %v1778 = vld [vmem:[#allocation17 + $0xc] sm:$0xf]
        %v1779 = vld [vmem:[#allocation18] sm:$0x1]
        %v1781 = vlaneseq
        %v1782 = vshrl.u32 %v1781, 7
        %v1783 = vsub.s32 0, %v1782
        %v1784 = vrot.slane %v1779, %v1783
        %v1790 = vunpack.c.l.b16 %v1775
        %v1791 = vunpack.c.l.b16 %v1776
        %v1792 = vunpack.c.l.b16 %v1777
        %v1793 = vunpack.c.l.b16 %v1778
        %v1794 = vpack.c.b16 %v1791, %v1790
        %v1795 = vpack.c.b16 %v1793, %v1792
        %v1799 = vsel %vm1698, %v1774, 0
        %1801 = vmatprep.subr.bf16.mxu0 0
        %1802 = vmatpush1.bf16.msra.mxu0 %v1794
        %1803 = vmatprep.subr.bf16.mxu0 0
        %1804 = vmatpush1.bf16.msra.mxu0 %v1795
        %1805 = vmatprep.subr.bf16.mxu0 0
        %1806 = vmatpush1.bf16.msra.mxu0 0
        %1807 = vmatprep.subr.bf16.mxu0 0
        %1808 = vmatpush1.bf16.msra.mxu0 0
        %1809 = vmatprep.subr.bf16.mxu0 0
        %1810 = vmatpush1.bf16.msra.mxu0 0
        %1811 = vmatprep.subr.bf16.mxu0 0
        %1812 = vmatpush1.bf16.msra.mxu0 0
        %1813 = vmatprep.subr.bf16.mxu0 0
        %1814 = vmatpush1.bf16.msra.mxu0 0
        %1815 = vmatprep.subr.bf16.mxu0 0
        %1816 = vmatpush1.bf16.msra.mxu0 0
        %1817 = vmatprep.subr.bf16.mxu0 0
        %1818 = vmatpush1.bf16.msra.mxu0 0
        %1819 = vmatprep.subr.bf16.mxu0 0
        %1820 = vmatpush1.bf16.msra.mxu0 0
        %1821 = vmatprep.subr.bf16.mxu0 0
        %1822 = vmatpush1.bf16.msra.mxu0 0
        %1823 = vmatprep.subr.bf16.mxu0 0
        %1824 = vmatpush1.bf16.msra.mxu0 0
        %1825 = vmatprep.subr.bf16.mxu0 0
        %1826 = vmatpush1.bf16.msra.mxu0 0
        %1827 = vmatprep.subr.bf16.mxu0 0
        %1828 = vmatpush1.bf16.msra.mxu0 0
        %1829 = vmatprep.subr.bf16.mxu0 0
        %1830 = vmatpush1.bf16.msra.mxu0 0
        %1831 = vmatprep.subr.bf16.mxu0 0
        %1832 = vmatpush1.bf16.msra.mxu0 0
        %1833 = vmatprep.mubr.bf16.mxu0 0
        %1834 = vmatmul.mubr.bf16.gmra.mrb[0].mxu0 %v1799
        %v1835 = vpop.f32.mrb[0].mxu0
        %v1836 = vadd.f32 %v1784, %v1835
        %v1837 = vpop.f32.mrb[0].mxu0
        %v1838 = vpop.f32.mrb[0].mxu0
        %v1839 = vpop.f32.mrb[0].mxu0
        %1840 = vdwg.mxu0
        %v1841 = vmul.f32 %v1836, 0.5
        %v1842 = vmul.f32 %v1836, 0.044715
        %v1843 = vmul.f32 %v1842, %v1836
        %v1844 = vmul.f32 %v1843, %v1836
        %v1845 = vadd.f32 %v1836, %v1844
        %v1846 = vmul.f32 %v1845, 0.7978846
        %v1847 = vtanh.pop %v1846
        %v1848 = vadd.f32 %v1847, 1.0
        %v1849 = vmul.f32 %v1841, %v1848
        %v1850 = vpack.c.bf16 %v1849, %v1849
        %v1851 = vld [vmem:[#allocation20] sm:$0xf]
        %v1852 = vld [vmem:[#allocation20 + $0x4] sm:$0xf]
        %v1853 = vld [vmem:[#allocation20 + $0x8] sm:$0xf]
        %v1854 = vld [vmem:[#allocation20 + $0xc] sm:$0xf]
        %v1855 = vld [vmem:[#allocation20 + $0x10] sm:$0xf]
        %v1856 = vld [vmem:[#allocation20 + $0x14] sm:$0xf]
        %v1857 = vld [vmem:[#allocation20 + $0x18] sm:$0xf]
        %v1858 = vld [vmem:[#allocation20 + $0x1c] sm:$0xf]
        %v1859 = vld [vmem:[#allocation20 + $0x20] sm:$0xf]
        %v1860 = vld [vmem:[#allocation20 + $0x24] sm:$0xf]
        %v1861 = vld [vmem:[#allocation20 + $0x28] sm:$0xf]
        %v1862 = vld [vmem:[#allocation20 + $0x2c] sm:$0xf]
        %v1863 = vld [vmem:[#allocation20 + $0x30] sm:$0xf]
        %v1864 = vld [vmem:[#allocation20 + $0x34] sm:$0xf]
        %v1865 = vld [vmem:[#allocation20 + $0x38] sm:$0xf]
        %v1866 = vld [vmem:[#allocation20 + $0x3c] sm:$0xf]
        %v1883 = vunpack.c.l.b16 %v1851
        %v1884 = vunpack.c.l.b16 %v1852
        %v1885 = vunpack.c.l.b16 %v1853
        %v1886 = vunpack.c.l.b16 %v1854
        %v1887 = vunpack.c.l.b16 %v1855
        %v1888 = vunpack.c.l.b16 %v1856
        %v1889 = vunpack.c.l.b16 %v1857
        %v1890 = vunpack.c.l.b16 %v1858
        %v1891 = vunpack.c.l.b16 %v1859
        %v1892 = vunpack.c.l.b16 %v1860
        %v1893 = vunpack.c.l.b16 %v1861
        %v1894 = vunpack.c.l.b16 %v1862
        %v1895 = vunpack.c.l.b16 %v1863
        %v1896 = vunpack.c.l.b16 %v1864
        %v1897 = vunpack.c.l.b16 %v1865
        %v1898 = vunpack.c.l.b16 %v1866
        %v1899 = vpack.c.b16 %v1884, %v1883
        %v1900 = vpack.c.b16 %v1886, %v1885
        %v1901 = vpack.c.b16 %v1888, %v1887
        %v1902 = vpack.c.b16 %v1890, %v1889
        %v1903 = vpack.c.b16 %v1892, %v1891
        %v1904 = vpack.c.b16 %v1894, %v1893
        %v1905 = vpack.c.b16 %v1896, %v1895
        %v1906 = vpack.c.b16 %v1898, %v1897
        %1915 = vmatprep.subr.bf16.mxu0 0
        %1916 = vmatpush1.bf16.msra.mxu0 %v1899
        %1917 = vmatprep.subr.bf16.mxu0 0
        %1918 = vmatpush1.bf16.msra.mxu0 %v1900
        %1919 = vmatprep.subr.bf16.mxu0 0
        %1920 = vmatpush1.bf16.msra.mxu0 %v1901
        %1921 = vmatprep.subr.bf16.mxu0 0
        %1922 = vmatpush1.bf16.msra.mxu0 %v1902
        %1923 = vmatprep.subr.bf16.mxu0 0
        %1924 = vmatpush1.bf16.msra.mxu0 %v1903
        %1925 = vmatprep.subr.bf16.mxu0 0
        %1926 = vmatpush1.bf16.msra.mxu0 %v1904
        %1927 = vmatprep.subr.bf16.mxu0 0
        %1928 = vmatpush1.bf16.msra.mxu0 %v1905
        %1929 = vmatprep.subr.bf16.mxu0 0
        %1930 = vmatpush1.bf16.msra.mxu0 %v1906
        %1931 = vmatprep.subr.bf16.mxu0 0
        %1932 = vmatpush1.bf16.msra.mxu0 0
        %1933 = vmatprep.subr.bf16.mxu0 0
        %1934 = vmatpush1.bf16.msra.mxu0 0
        %1935 = vmatprep.subr.bf16.mxu0 0
        %1936 = vmatpush1.bf16.msra.mxu0 0
        %1937 = vmatprep.subr.bf16.mxu0 0
        %1938 = vmatpush1.bf16.msra.mxu0 0
        %1939 = vmatprep.subr.bf16.mxu0 0
        %1940 = vmatpush1.bf16.msra.mxu0 0
        %1941 = vmatprep.subr.bf16.mxu0 0
        %1942 = vmatpush1.bf16.msra.mxu0 0
        %1943 = vmatprep.subr.bf16.mxu0 0
        %1944 = vmatpush1.bf16.msra.mxu0 0
        %1945 = vmatprep.subr.bf16.mxu0 0
        %1946 = vmatpush1.bf16.msra.mxu0 0
        %1947 = vmatprep.mubr.bf16.mxu0 0
        %1948 = vmatmul.mubr.bf16.gmra.mrb[0].mxu0 %v1850
        %v1949 = vpop.f32.mrb[0].mxu0
        %v1950 = vadd.f32 0.0, %v1949
        %v1951 = vpop.f32.mrb[0].mxu0
        %v1952 = vpop.f32.mrb[0].mxu0
        %v1953 = vpop.f32.mrb[0].mxu0
        %1954 = vdwg.mxu0
        %v1955 = vadd.f32 %v1743, %v1950
        %v1956 = vld [vmem:[#allocation21] sm:$0x1]
        %v1958 = vlaneseq
        %v1959 = vshrl.u32 %v1958, 7
        %v1960 = vsub.s32 0, %v1959
        %v1961 = vrot.slane %v1956, %v1960
        %v1963 = vadd.f32 %v1955, %v1961
        %1964 = vst.msk [vmem:[%s672] sm:$0xff] %vm1698, %v1963
        %s1965 = sand.u32 %s337, 1
        %s1966 = scalar_lea.sflag [#allocation5], %s1965
        %s1967 = sand.u32 %s337, 1
        %s1968 = smul.addr %s1967, 8
        %s1969 = scalar_lea.vmem [#allocation23], %s1968
        // Predicated region
        $region124: #{transformer_forward.6} parent=67 // pred_check
          %p1970 = pneg %p347
        $region125: #{transformer_forward.6} parent=67 // pred_check_branch
          %1972 = sbr.rel (%p1970) target = $region127
        $region126: #{transformer_forward.6} parent=67 // pred_region
          %s1974 = ssub.s32 128, 128
          %1975 = vsyncadd %s1966, %s1974
          %s1976 = smul.addr %s43, 2
          %s1977 = sadd.s32 %s44, %s1976
          %s1978 = smul.addr %s1977, 128
          %s1979 = scalar_lea.hbm %s12, %s1978
          %s1981 = sshll.u32 %s1969, 4
          %s1982 = int_to_ptr.vmem [resolvable:$true] %s1981
          %1984 = dma.vmem_to_hbm [thread:$0]  %s1982, 128, %s1979, %s1966
        $region127: #{transformer_forward.6} parent=67 // pred_fallthru
          _
      $region68: #{transformer_forward.6} parent=5 // pred_fallthru
        _
      %p1985 = scmp.le.s32.totalorder 2, %s34
      // Predicated region
      $region128: #{transformer_forward.6} parent=5 // pred_check
        %p1986 = pneg %p1985
      $region129: #{transformer_forward.6} parent=5 // pred_check_branch
        %1988 = sbr.rel (%p1986) target = $region131
      $region130: #{transformer_forward.6} parent=5 // pred_region
        %s1989 = ssub.s32 %s34, 2
        // Predicated region
        $region132: #{transformer_forward.6} parent=130 // pred_check
          %p1990 = pneg %p353
        $region133: #{transformer_forward.6} parent=130 // pred_check_branch
          %1992 = sbr.rel (%p1990) target = $region135
        $region134: #{transformer_forward.6} parent=130 // pred_region
          %s1993 = sand.u32 %s338, 1
          %s1994 = scalar_lea.sflag [#allocation5], %s1993
          %s1995 = sand.u32 %s338, 1
          %s1996 = smul.addr %s1995, 8
          %s1997 = scalar_lea.vmem [#allocation23], %s1996
          %1998 = dma.done %s1994, 128
        $region135: #{transformer_forward.6} parent=130 // pred_fallthru
          _
      $region131: #{transformer_forward.6} parent=5 // pred_fallthru
        _
    $region6: #{transformer_forward.6} parent=1 // loop_footer
      %s38 = sadd.s32 1, %s34
    $region7: #{transformer_forward.6} parent=1 // loop_footer_branch
      %33 = sbr.rel target = $region3
    $region8: #{transformer_forward.6} parent=1 // loop_exit
      _
    %1999 = vsyncpa [#allocation4], 1
    %s2000 = scalar_lea.sflag [#allocation4], 1
    %2001 = vsyncpa %s2000, 1
    %2002 = vsyncpa [#allocation7], 1
    %s2003 = scalar_lea.sflag [#allocation7], 1
    %2004 = vsyncpa %s2003, 1
    %2005 = vsyncpa [#allocation10], 1
    %s2006 = scalar_lea.sflag [#allocation10], 1
    %2007 = vsyncpa %s2006, 1
    %2008 = vsyncpa [#allocation13], 1
    %2009 = vsyncpa [#allocation16], 1
    %2010 = vsyncpa [#allocation19], 1
    %2011 = vsyncpa [#allocation22], 1
    %2012 = vsyncpa [#allocation5], 1
    %s2013 = scalar_lea.sflag [#allocation5], 1
    %2014 = vsyncpa %s2013, 1

</llo_original>
